<compile_context>
chip_gen: v7x
topology: tpu7x:2x2x1
jax: 0.10.0
libtpu: 0.0.40
codegen_flags: <defaults>
</compile_context>

<pallas_src>
import jax
import jax.numpy as jnp
from jax.experimental import pallas as pl
from jax.experimental.pallas import tpu as pltpu

# ----------------------------- hyperparameters -----------------------------
N_CLASSES = 10
LATENT_DIM = 32
CHANNELS = 1
IMG_SIZE = 16
IMG_SHAPE = (CHANNELS, IMG_SIZE, IMG_SIZE)
IMG_FLAT = CHANNELS * IMG_SIZE * IMG_SIZE      # 256
BN_EPS = 0.8            # BatchNorm1d(out_feat, 0.8) -> eps = 0.8
LEAKY_SLOPE = 0.2


# ------------------------------ Pallas kernel -------------------------------
def _leaky(y):
    return jnp.where(y > 0, y, LEAKY_SLOPE * y)


def _bn_leaky(y, gamma, beta, inv_b):
    # training-mode BatchNorm1d: biased batch statistics over the batch dim,
    # folded into one per-feature scale/shift (single reduction pass).
    mean = jnp.sum(y, axis=0, keepdims=True) * inv_b
    mean_sq = jnp.sum(y * y, axis=0, keepdims=True) * inv_b
    var = mean_sq - mean * mean                    # eps=0.8 keeps rsqrt benign
    scale = gamma * jax.lax.rsqrt(var + BN_EPS)
    shift = beta - mean * scale
    return _leaky(y * scale + shift)


def generator_kernel(noise_ref, lab_ref,
                     w0_ref,
                     w1_ref, g1_ref, be1_ref,
                     w2_ref, g2_ref, be2_ref,
                     w3_ref, g3_ref, be3_ref,
                     w4_ref, b4_ref,
                     o_ref):
    """Whole Generator forward in one kernel; all operands resident in VMEM."""
    inv_b = 1.0 / noise_ref.shape[0]

    def mm(x, w_ref):
        # bf16 x bf16 -> f32 accumulation on the MXU
        return jnp.dot(x.astype(jnp.bfloat16), w_ref[...],
                       preferred_element_type=jnp.float32)

    # layer 0: Linear(n_classes+latent -> 128) + LeakyReLU  (no BN).
    # The embedding columns of W0 and its bias are pre-folded into lab_ref.
    h = _leaky(mm(noise_ref[...], w0_ref) + lab_ref[...])

    # layers 1..3: Linear -> BatchNorm1d(eps=0.8) -> LeakyReLU
    # (Linear bias omitted: a per-feature constant before BN is cancelled
    #  exactly by the mean subtraction.)
    h = _bn_leaky(mm(h, w1_ref), g1_ref[...], be1_ref[...], inv_b)
    h = _bn_leaky(mm(h, w2_ref), g2_ref[...], be2_ref[...], inv_b)
    h = _bn_leaky(mm(h, w3_ref), g3_ref[...], be3_ref[...], inv_b)

    # final layer: Linear(1024 -> C*H*W) + Tanh
    o_ref[...] = jnp.tanh(mm(h, w4_ref) + b4_ref[...]).astype(o_ref.dtype)


def generator_pallas(noise, label_feat, p):
    """One fused pallas_call for the entire Generator MLP."""
    batch = noise.shape[0]
    n_inputs = 14
    return pl.pallas_call(
        generator_kernel,
        out_shape=jax.ShapeDtypeStruct((batch, IMG_FLAT), jnp.float32),
        in_specs=[pl.BlockSpec(memory_space=pltpu.VMEM)
                  for _ in range(n_inputs)],
        out_specs=pl.BlockSpec(memory_space=pltpu.VMEM),
    )(noise, label_feat,
      p["w0n"],
      p["w1"], p["g1"], p["be1"],
      p["w2"], p["g2"], p["be2"],
      p["w3"], p["g3"], p["be3"],
      p["w4"], p["b4"])


# --------------------------- parameter construction --------------------------
def _linear_params(key, in_feat, out_feat):
    """Deterministic PyTorch-style Linear init: U(-1/sqrt(in), 1/sqrt(in))."""
    kw, kb = jax.random.split(key)
    bound = 1.0 / jnp.sqrt(jnp.float32(in_feat))
    w = jax.random.uniform(kw, (in_feat, out_feat), jnp.float32, -bound, bound)
    b = jax.random.uniform(kb, (1, out_feat), jnp.float32, -bound, bound)
    return w, b


def init_generator_params(key):
    keys = jax.random.split(key, 6)
    # nn.Embedding(n_classes, n_classes): N(0, 1)
    emb = jax.random.normal(keys[0], (N_CLASSES, N_CLASSES), jnp.float32)

    w0, b0 = _linear_params(keys[1], N_CLASSES + LATENT_DIM, 128)
    w1, _ = _linear_params(keys[2], 128, 256)     # bias redundant before BN
    w2, _ = _linear_params(keys[3], 256, 512)
    w3, _ = _linear_params(keys[4], 512, 1024)
    w4, b4 = _linear_params(keys[5], 1024, IMG_FLAT)

    # Fold  concat(emb(label), noise) @ W0 + b0
    #    =  noise @ W0[n_classes:]  +  (emb @ W0[:n_classes] + b0)[label]
    label_table = emb @ w0[:N_CLASSES] + b0        # (n_classes, 128), f32

    def bf16(x):
        return x.astype(jnp.bfloat16)

    return {
        "label_table": label_table,
        "w0n": bf16(w0[N_CLASSES:]),
        "w1": bf16(w1),
        "g1": jnp.ones((1, 256), jnp.float32),
        "be1": jnp.zeros((1, 256), jnp.float32),
        "w2": bf16(w2),
        "g2": jnp.ones((1, 512), jnp.float32),
        "be2": jnp.zeros((1, 512), jnp.float32),
        "w3": bf16(w3),
        "g3": jnp.ones((1, 1024), jnp.float32),
        "be3": jnp.zeros((1, 1024), jnp.float32),
        "w4": bf16(w4),
        "b4": b4,
    }


# --------------------------------- forward ----------------------------------
@jax.jit
def generator_forward(params, noise, labels):
    # Tiny (B, 128) gather of the pre-folded per-class layer-0 contribution
    # stays in JAX; everything else runs inside the single fused Pallas kernel.
    label_feat = jnp.take(params["label_table"], labels, axis=0)
    img_flat = generator_pallas(noise, label_feat, params)
    return img_flat.reshape(noise.shape[0], *IMG_SHAPE)      # NCHW


# ----------------------------------- main ------------------------------------
if __name__ == "__main__":
    key = jax.random.PRNGKey(0)
    k_params, k_noise, k_labels = jax.random.split(key, 3)

    params = init_generator_params(k_params)

    BATCH = 8  # >1 so training-mode batch statistics are well defined
    noise = jax.random.normal(k_noise, (BATCH, LATENT_DIM), jnp.float32)
    labels = jax.random.randint(k_labels, (BATCH,), 0, N_CLASSES, jnp.int32)

    img = generator_forward(params, noise, labels)
    img = jax.block_until_ready(img)

    assert img.shape == (BATCH, CHANNELS, IMG_SIZE, IMG_SIZE), img.shape
    assert img.dtype == jnp.float32
    assert bool(jnp.all(jnp.isfinite(img)))
    assert bool(jnp.all(jnp.abs(img) <= 1.0 + 1e-6))  # tanh range
    print("KERNEL_OK")
</pallas_src>

<mosaic_0001>
module attributes {stable_mosaic.version = 11 : i64} {
  func.func @generator_kernel(%arg0: memref<8x32xf32, #tpu.memory_space<vmem>>, %arg1: memref<8x128xf32, #tpu.memory_space<vmem>>, %arg2: memref<32x128xbf16, #tpu.memory_space<vmem>>, %arg3: memref<128x256xbf16, #tpu.memory_space<vmem>>, %arg4: memref<1x256xf32, #tpu.memory_space<vmem>>, %arg5: memref<1x256xf32, #tpu.memory_space<vmem>>, %arg6: memref<256x512xbf16, #tpu.memory_space<vmem>>, %arg7: memref<1x512xf32, #tpu.memory_space<vmem>>, %arg8: memref<1x512xf32, #tpu.memory_space<vmem>>, %arg9: memref<512x1024xbf16, #tpu.memory_space<vmem>>, %arg10: memref<1x1024xf32, #tpu.memory_space<vmem>>, %arg11: memref<1x1024xf32, #tpu.memory_space<vmem>>, %arg12: memref<1024x256xbf16, #tpu.memory_space<vmem>>, %arg13: memref<1x256xf32, #tpu.memory_space<vmem>>, %arg14: memref<8x256xf32, #tpu.memory_space<vmem>>) attributes {dimension_semantics = [], scalar_prefetch = 0 : i64, scratch_operands = 0 : i64, tpu.core_type = #tpu.core_type<tc>} {
    %c0 = arith.constant 0 : index
    %c0_0 = arith.constant 0 : index
    %0 = vector.load %arg0[%c0, %c0_0] : memref<8x32xf32, #tpu.memory_space<vmem>>, vector<8x32xf32>
    %1 = arith.truncf %0 : vector<8x32xf32> to vector<8x32xbf16>
    %c0_1 = arith.constant 0 : index
    %c0_2 = arith.constant 0 : index
    %2 = vector.load %arg2[%c0_1, %c0_2] : memref<32x128xbf16, #tpu.memory_space<vmem>>, vector<32x128xbf16>
    %cst = arith.constant dense<0.000000e+00> : vector<8x128xf32>
    %3 = tpu.matmul %1, %2, %cst {dimension_numbers = #tpu.dot_dimension_numbers<[1], [0], [0], [1], [0, 0, 1, 1], [], []>} : vector<8x32xbf16>, vector<32x128xbf16>, vector<8x128xf32> -> vector<8x128xf32>
    %c0_3 = arith.constant 0 : index
    %c0_4 = arith.constant 0 : index
    %4 = vector.load %arg1[%c0_3, %c0_4] : memref<8x128xf32, #tpu.memory_space<vmem>>, vector<8x128xf32>
    %5 = arith.addf %3, %4 : vector<8x128xf32>
    %cst_5 = arith.constant 0.000000e+00 : f32
    %6 = vector.broadcast %cst_5 : f32 to vector<8x128xf32>
    %7 = arith.cmpf ogt, %5, %6 : vector<8x128xf32>
    %cst_6 = arith.constant 2.000000e-01 : f32
    %8 = vector.broadcast %cst_6 : f32 to vector<8x128xf32>
    %9 = arith.mulf %8, %5 : vector<8x128xf32>
    %10 = arith.select %7, %5, %9 : vector<8x128xi1>, vector<8x128xf32>
    %11 = arith.truncf %10 : vector<8x128xf32> to vector<8x128xbf16>
    %c0_7 = arith.constant 0 : index
    %c0_8 = arith.constant 0 : index
    %12 = vector.load %arg3[%c0_7, %c0_8] : memref<128x256xbf16, #tpu.memory_space<vmem>>, vector<128x256xbf16>
    %cst_9 = arith.constant dense<0.000000e+00> : vector<8x256xf32>
    %13 = tpu.matmul %11, %12, %cst_9 {dimension_numbers = #tpu.dot_dimension_numbers<[1], [0], [0], [1], [0, 0, 1, 1], [], []>} : vector<8x128xbf16>, vector<128x256xbf16>, vector<8x256xf32> -> vector<8x256xf32>
    %c0_10 = arith.constant 0 : index
    %c0_11 = arith.constant 0 : index
    %14 = vector.load %arg4[%c0_10, %c0_11] : memref<1x256xf32, #tpu.memory_space<vmem>>, vector<1x256xf32>
    %c0_12 = arith.constant 0 : index
    %c0_13 = arith.constant 0 : index
    %15 = vector.load %arg5[%c0_12, %c0_13] : memref<1x256xf32, #tpu.memory_space<vmem>>, vector<1x256xf32>
    %cst_14 = arith.constant dense<0.000000e+00> : vector<256xf32>
    %16 = vector.multi_reduction <add>, %13, %cst_14 [0] : vector<8x256xf32> to vector<256xf32>
    %17 = vector.shape_cast %16 : vector<256xf32> to vector<1x256xf32>
    %cst_15 = arith.constant 1.250000e-01 : f32
    %18 = vector.broadcast %cst_15 : f32 to vector<1x256xf32>
    %19 = arith.mulf %17, %18 : vector<1x256xf32>
    %20 = arith.mulf %13, %13 : vector<8x256xf32>
    %cst_16 = arith.constant dense<0.000000e+00> : vector<256xf32>
    %21 = vector.multi_reduction <add>, %20, %cst_16 [0] : vector<8x256xf32> to vector<256xf32>
    %22 = vector.shape_cast %21 : vector<256xf32> to vector<1x256xf32>
    %cst_17 = arith.constant 1.250000e-01 : f32
    %23 = vector.broadcast %cst_17 : f32 to vector<1x256xf32>
    %24 = arith.mulf %22, %23 : vector<1x256xf32>
    %25 = arith.mulf %19, %19 : vector<1x256xf32>
    %26 = arith.subf %24, %25 : vector<1x256xf32>
    %cst_18 = arith.constant 8.000000e-01 : f32
    %27 = vector.broadcast %cst_18 : f32 to vector<1x256xf32>
    %28 = arith.addf %26, %27 : vector<1x256xf32>
    %29 = math.rsqrt %28 : vector<1x256xf32>
    %30 = arith.mulf %14, %29 : vector<1x256xf32>
    %31 = arith.mulf %19, %30 : vector<1x256xf32>
    %32 = arith.subf %15, %31 : vector<1x256xf32>
    %33 = vector.broadcast %30 : vector<1x256xf32> to vector<8x256xf32>
    %34 = arith.mulf %13, %33 : vector<8x256xf32>
    %35 = vector.broadcast %32 : vector<1x256xf32> to vector<8x256xf32>
    %36 = arith.addf %34, %35 : vector<8x256xf32>
    %cst_19 = arith.constant 0.000000e+00 : f32
    %37 = vector.broadcast %cst_19 : f32 to vector<8x256xf32>
    %38 = arith.cmpf ogt, %36, %37 : vector<8x256xf32>
    %cst_20 = arith.constant 2.000000e-01 : f32
    %39 = vector.broadcast %cst_20 : f32 to vector<8x256xf32>
    %40 = arith.mulf %39, %36 : vector<8x256xf32>
    %41 = arith.select %38, %36, %40 : vector<8x256xi1>, vector<8x256xf32>
    %42 = arith.truncf %41 : vector<8x256xf32> to vector<8x256xbf16>
    %c0_21 = arith.constant 0 : index
    %c0_22 = arith.constant 0 : index
    %43 = vector.load %arg6[%c0_21, %c0_22] : memref<256x512xbf16, #tpu.memory_space<vmem>>, vector<256x512xbf16>
    %cst_23 = arith.constant dense<0.000000e+00> : vector<8x512xf32>
    %44 = tpu.matmul %42, %43, %cst_23 {dimension_numbers = #tpu.dot_dimension_numbers<[1], [0], [0], [1], [0, 0, 1, 1], [], []>} : vector<8x256xbf16>, vector<256x512xbf16>, vector<8x512xf32> -> vector<8x512xf32>
    %c0_24 = arith.constant 0 : index
    %c0_25 = arith.constant 0 : index
    %45 = vector.load %arg7[%c0_24, %c0_25] : memref<1x512xf32, #tpu.memory_space<vmem>>, vector<1x512xf32>
    %c0_26 = arith.constant 0 : index
    %c0_27 = arith.constant 0 : index
    %46 = vector.load %arg8[%c0_26, %c0_27] : memref<1x512xf32, #tpu.memory_space<vmem>>, vector<1x512xf32>
    %cst_28 = arith.constant dense<0.000000e+00> : vector<512xf32>
    %47 = vector.multi_reduction <add>, %44, %cst_28 [0] : vector<8x512xf32> to vector<512xf32>
    %48 = vector.shape_cast %47 : vector<512xf32> to vector<1x512xf32>
    %cst_29 = arith.constant 1.250000e-01 : f32
    %49 = vector.broadcast %cst_29 : f32 to vector<1x512xf32>
    %50 = arith.mulf %48, %49 : vector<1x512xf32>
    %51 = arith.mulf %44, %44 : vector<8x512xf32>
    %cst_30 = arith.constant dense<0.000000e+00> : vector<512xf32>
    %52 = vector.multi_reduction <add>, %51, %cst_30 [0] : vector<8x512xf32> to vector<512xf32>
    %53 = vector.shape_cast %52 : vector<512xf32> to vector<1x512xf32>
    %cst_31 = arith.constant 1.250000e-01 : f32
    %54 = vector.broadcast %cst_31 : f32 to vector<1x512xf32>
    %55 = arith.mulf %53, %54 : vector<1x512xf32>
    %56 = arith.mulf %50, %50 : vector<1x512xf32>
    %57 = arith.subf %55, %56 : vector<1x512xf32>
    %cst_32 = arith.constant 8.000000e-01 : f32
    %58 = vector.broadcast %cst_32 : f32 to vector<1x512xf32>
    %59 = arith.addf %57, %58 : vector<1x512xf32>
    %60 = math.rsqrt %59 : vector<1x512xf32>
    %61 = arith.mulf %45, %60 : vector<1x512xf32>
    %62 = arith.mulf %50, %61 : vector<1x512xf32>
    %63 = arith.subf %46, %62 : vector<1x512xf32>
    %64 = vector.broadcast %61 : vector<1x512xf32> to vector<8x512xf32>
    %65 = arith.mulf %44, %64 : vector<8x512xf32>
    %66 = vector.broadcast %63 : vector<1x512xf32> to vector<8x512xf32>
    %67 = arith.addf %65, %66 : vector<8x512xf32>
    %cst_33 = arith.constant 0.000000e+00 : f32
    %68 = vector.broadcast %cst_33 : f32 to vector<8x512xf32>
    %69 = arith.cmpf ogt, %67, %68 : vector<8x512xf32>
    %cst_34 = arith.constant 2.000000e-01 : f32
    %70 = vector.broadcast %cst_34 : f32 to vector<8x512xf32>
    %71 = arith.mulf %70, %67 : vector<8x512xf32>
    %72 = arith.select %69, %67, %71 : vector<8x512xi1>, vector<8x512xf32>
    %73 = arith.truncf %72 : vector<8x512xf32> to vector<8x512xbf16>
    %c0_35 = arith.constant 0 : index
    %c0_36 = arith.constant 0 : index
    %74 = vector.load %arg9[%c0_35, %c0_36] : memref<512x1024xbf16, #tpu.memory_space<vmem>>, vector<512x1024xbf16>
    %cst_37 = arith.constant dense<0.000000e+00> : vector<8x1024xf32>
    %75 = tpu.matmul %73, %74, %cst_37 {dimension_numbers = #tpu.dot_dimension_numbers<[1], [0], [0], [1], [0, 0, 1, 1], [], []>} : vector<8x512xbf16>, vector<512x1024xbf16>, vector<8x1024xf32> -> vector<8x1024xf32>
    %c0_38 = arith.constant 0 : index
    %c0_39 = arith.constant 0 : index
    %76 = vector.load %arg10[%c0_38, %c0_39] : memref<1x1024xf32, #tpu.memory_space<vmem>>, vector<1x1024xf32>
    %c0_40 = arith.constant 0 : index
    %c0_41 = arith.constant 0 : index
    %77 = vector.load %arg11[%c0_40, %c0_41] : memref<1x1024xf32, #tpu.memory_space<vmem>>, vector<1x1024xf32>
    %cst_42 = arith.constant dense<0.000000e+00> : vector<1024xf32>
    %78 = vector.multi_reduction <add>, %75, %cst_42 [0] : vector<8x1024xf32> to vector<1024xf32>
    %79 = vector.shape_cast %78 : vector<1024xf32> to vector<1x1024xf32>
    %cst_43 = arith.constant 1.250000e-01 : f32
    %80 = vector.broadcast %cst_43 : f32 to vector<1x1024xf32>
    %81 = arith.mulf %79, %80 : vector<1x1024xf32>
    %82 = arith.mulf %75, %75 : vector<8x1024xf32>
    %cst_44 = arith.constant dense<0.000000e+00> : vector<1024xf32>
    %83 = vector.multi_reduction <add>, %82, %cst_44 [0] : vector<8x1024xf32> to vector<1024xf32>
    %84 = vector.shape_cast %83 : vector<1024xf32> to vector<1x1024xf32>
    %cst_45 = arith.constant 1.250000e-01 : f32
    %85 = vector.broadcast %cst_45 : f32 to vector<1x1024xf32>
    %86 = arith.mulf %84, %85 : vector<1x1024xf32>
    %87 = arith.mulf %81, %81 : vector<1x1024xf32>
    %88 = arith.subf %86, %87 : vector<1x1024xf32>
    %cst_46 = arith.constant 8.000000e-01 : f32
    %89 = vector.broadcast %cst_46 : f32 to vector<1x1024xf32>
    %90 = arith.addf %88, %89 : vector<1x1024xf32>
    %91 = math.rsqrt %90 : vector<1x1024xf32>
    %92 = arith.mulf %76, %91 : vector<1x1024xf32>
    %93 = arith.mulf %81, %92 : vector<1x1024xf32>
    %94 = arith.subf %77, %93 : vector<1x1024xf32>
    %95 = vector.broadcast %92 : vector<1x1024xf32> to vector<8x1024xf32>
    %96 = arith.mulf %75, %95 : vector<8x1024xf32>
    %97 = vector.broadcast %94 : vector<1x1024xf32> to vector<8x1024xf32>
    %98 = arith.addf %96, %97 : vector<8x1024xf32>
    %cst_47 = arith.constant 0.000000e+00 : f32
    %99 = vector.broadcast %cst_47 : f32 to vector<8x1024xf32>
    %100 = arith.cmpf ogt, %98, %99 : vector<8x1024xf32>
    %cst_48 = arith.constant 2.000000e-01 : f32
    %101 = vector.broadcast %cst_48 : f32 to vector<8x1024xf32>
    %102 = arith.mulf %101, %98 : vector<8x1024xf32>
    %103 = arith.select %100, %98, %102 : vector<8x1024xi1>, vector<8x1024xf32>
    %104 = arith.truncf %103 : vector<8x1024xf32> to vector<8x1024xbf16>
    %c0_49 = arith.constant 0 : index
    %c0_50 = arith.constant 0 : index
    %105 = vector.load %arg12[%c0_49, %c0_50] : memref<1024x256xbf16, #tpu.memory_space<vmem>>, vector<1024x256xbf16>
    %cst_51 = arith.constant dense<0.000000e+00> : vector<8x256xf32>
    %106 = tpu.matmul %104, %105, %cst_51 {dimension_numbers = #tpu.dot_dimension_numbers<[1], [0], [0], [1], [0, 0, 1, 1], [], []>} : vector<8x1024xbf16>, vector<1024x256xbf16>, vector<8x256xf32> -> vector<8x256xf32>
    %c0_52 = arith.constant 0 : index
    %c0_53 = arith.constant 0 : index
    %107 = vector.load %arg13[%c0_52, %c0_53] : memref<1x256xf32, #tpu.memory_space<vmem>>, vector<1x256xf32>
    %108 = vector.broadcast %107 : vector<1x256xf32> to vector<8x256xf32>
    %109 = arith.addf %106, %108 : vector<8x256xf32>
    %110 = math.tanh %109 : vector<8x256xf32>
    %c0_54 = arith.constant 0 : index
    %c0_55 = arith.constant 0 : index
    %111 = vector.load %arg14[%c0_54, %c0_55] : memref<8x256xf32, #tpu.memory_space<vmem>>, vector<8x256xf32>
    tpu.vector_store %arg14[%c0_54, %c0_55], %110 {strides = array<i32>} : memref<8x256xf32, #tpu.memory_space<vmem>>, vector<8x256xf32>,
    return
  }
}

</mosaic_0001>

<llo_original>
// kernel: generator_forward.1
$region0: #{generator_forward.1}
  #allocation0 [shape = 'u32[]', space=smem, size = 0x4, offset = 0x4, fixed_abs, tag = 'smem constant byte address 0x4 - core index']
  #allocation1 [shape = 'u32[144,128]{1,0:T(1,128)}', space=vmem, size = 0x12000, scoped, tag = 'internal scratch']
  %s0 = inlined_call_operand.vmem [shape: f32[8,32], index: 0, kind: input, shape index: {}]
  %s1 = inlined_call_operand.vmem [shape: f32[8,128], index: 1, kind: input, shape index: {}]
  %s2 = inlined_call_operand.hbm [shape: bf16[32,128], index: 2, kind: input, shape index: {}]
  %s3 = inlined_call_operand.vmem [shape: bf16[128,256], index: 3, kind: input, shape index: {}]
  %s4 = inlined_call_operand.hbm [shape: f32[1,256], index: 4, kind: input, shape index: {}]
  %s5 = inlined_call_operand.hbm [shape: f32[1,256], index: 5, kind: input, shape index: {}]
  %s6 = inlined_call_operand.hbm [shape: bf16[256,512], index: 6, kind: input, shape index: {}]
  %s7 = inlined_call_operand.vmem [shape: f32[1,512], index: 7, kind: input, shape index: {}]
  %s8 = inlined_call_operand.hbm [shape: f32[1,512], index: 8, kind: input, shape index: {}]
  %s9 = inlined_call_operand.hbm [shape: bf16[512,1024], index: 9, kind: input, shape index: {}]
  %s10 = inlined_call_operand.hbm [shape: f32[1,1024], index: 10, kind: input, shape index: {}]
  %s11 = inlined_call_operand.hbm [shape: f32[1,1024], index: 11, kind: input, shape index: {}]
  %s12 = inlined_call_operand.hbm [shape: bf16[1024,256], index: 12, kind: input, shape index: {}]
  %s13 = inlined_call_operand.hbm [shape: f32[1,256], index: 13, kind: input, shape index: {}]
  %s14 = inlined_call_operand.vmem [shape: f32[8,256], index: 14, kind: output, shape index: {}]
  %s15 = sld [smem:[#allocation0]]
  $region106: #{generator_forward.1} parent=0
    _
  %s17 = ssub.s32 1, %s15
  %s18 = scalar_select 0, %s17, %s15
  $region1: #{generator_forward.1} parent=0
    #allocation2 [shape = 'u8[8192]{0}', space=vmem, size = 0x2000, scoped, tag = 'input window, operand 2, single buffered']
    #allocation3 [shape = 's32[1]{0}', space=sflag, size = 0x4, scoped, tag = 'scoped memory for generator_forward.1']
    #allocation4 [shape = 'u8[1024]{0}', space=vmem, size = 0x400, scoped, tag = 'input window, operand 4, single buffered']
    #allocation5 [shape = 's32[1]{0}', space=sflag, size = 0x4, scoped, tag = 'scoped memory for generator_forward.1']
    #allocation6 [shape = 'u8[1024]{0}', space=vmem, size = 0x400, scoped, tag = 'input window, operand 5, single buffered']
    #allocation7 [shape = 'u8[262144]{0}', space=vmem, size = 0x40000, scoped, tag = 'input window, operand 6, single buffered']
    #allocation8 [shape = 's32[1]{0}', space=sflag, size = 0x4, scoped, tag = 'scoped memory for generator_forward.1']
    #allocation9 [shape = 'u8[2048]{0}', space=vmem, size = 0x800, scoped, tag = 'input window, operand 8, single buffered']
    #allocation10 [shape = 'u8[1048576]{0}', space=vmem, size = 0x100000, scoped, tag = 'input window, operand 9, single buffered']
    #allocation11 [shape = 's32[1]{0}', space=sflag, size = 0x4, scoped, tag = 'scoped memory for generator_forward.1']
    #allocation12 [shape = 'u8[4096]{0}', space=vmem, size = 0x1000, scoped, tag = 'input window, operand 10, single buffered']
    #allocation13 [shape = 'u8[4096]{0}', space=vmem, size = 0x1000, scoped, tag = 'input window, operand 11, single buffered']
    #allocation14 [shape = 's32[1]{0}', space=sflag, size = 0x4, scoped, tag = 'scoped memory for generator_forward.1']
    #allocation15 [shape = 'u8[524288]{0}', space=vmem, size = 0x80000, scoped, tag = 'input window, operand 12, single buffered']
    #allocation16 [shape = 'u8[1024]{0}', space=vmem, size = 0x400, scoped, tag = 'input window, operand 13, single buffered']
    #allocation17 [shape = 's32[1]{0}', space=sflag, size = 0x4, scoped, tag = 'scoped memory for generator_forward.1']
    %19 = vsyncpa [#allocation3], 0
    %20 = vsyncpa [#allocation5], 0
    %21 = vsyncpa [#allocation8], 0
    %22 = vsyncpa [#allocation11], 0
    %23 = vsyncpa [#allocation14], 0
    %24 = vsyncpa [#allocation17], 0
    // Predicated region
    $region2: #{generator_forward.1} parent=1 // pred_check
      _
    $region3: #{generator_forward.1} parent=1 // pred_check_branch
      %26 = sbr.rel (0) target = $region5
    $region4: #{generator_forward.1} parent=1 // pred_region
      _
    $region5: #{generator_forward.1} parent=1 // pred_fallthru
      _
    // Predicated region
    $region6: #{generator_forward.1} parent=1 // pred_check
      _
    $region7: #{generator_forward.1} parent=1 // pred_check_branch
      %28 = sbr.rel (0) target = $region9
    $region8: #{generator_forward.1} parent=1 // pred_region
      _
    $region9: #{generator_forward.1} parent=1 // pred_fallthru
      _
    // Predicated region
    $region10: #{generator_forward.1} parent=1 // pred_check
      _
    $region11: #{generator_forward.1} parent=1 // pred_check_branch
      %30 = sbr.rel (0) target = $region13
    $region12: #{generator_forward.1} parent=1 // pred_region
      %s32 = ssub.s32 256, 256
      %33 = vsyncadd [#allocation3], %s32
      %s34 = sshll.u32 [#allocation2], 4
      %s35 = int_to_ptr.vmem [resolvable:$true] %s34
      %40 = dma.hbm_to_vmem [thread:$0]  %s2, 256, %s35, [#allocation3], 64, 64, 4
    $region13: #{generator_forward.1} parent=1 // pred_fallthru
      _
    // Predicated region
    $region14: #{generator_forward.1} parent=1 // pred_check
      _
    $region15: #{generator_forward.1} parent=1 // pred_check_branch
      %42 = sbr.rel (0) target = $region17
    $region16: #{generator_forward.1} parent=1 // pred_region
      _
    $region17: #{generator_forward.1} parent=1 // pred_fallthru
      _
    // Predicated region
    $region18: #{generator_forward.1} parent=1 // pred_check
      _
    $region19: #{generator_forward.1} parent=1 // pred_check_branch
      %44 = sbr.rel (0) target = $region21
    $region20: #{generator_forward.1} parent=1 // pred_region
      %s46 = ssub.s32 32, 32
      %47 = vsyncadd [#allocation5], %s46
      %s49 = sshll.u32 [#allocation4], 4
      %s50 = int_to_ptr.vmem [resolvable:$true] %s49
      %52 = dma.hbm_to_vmem [thread:$0]  %s4, 32, %s50, [#allocation5]
    $region21: #{generator_forward.1} parent=1 // pred_fallthru
      _
    // Predicated region
    $region22: #{generator_forward.1} parent=1 // pred_check
      _
    $region23: #{generator_forward.1} parent=1 // pred_check_branch
      %54 = sbr.rel (0) target = $region25
    $region24: #{generator_forward.1} parent=1 // pred_region
      %s56 = ssub.s32 32, 32
      %57 = vsyncadd [#allocation5], %s56
      %s59 = sshll.u32 [#allocation6], 4
      %s60 = int_to_ptr.vmem [resolvable:$true] %s59
      %62 = dma.hbm_to_vmem [thread:$0]  %s5, 32, %s60, [#allocation5]
    $region25: #{generator_forward.1} parent=1 // pred_fallthru
      _
    // Predicated region
    $region26: #{generator_forward.1} parent=1 // pred_check
      _
    $region27: #{generator_forward.1} parent=1 // pred_check_branch
      %64 = sbr.rel (0) target = $region29
    $region28: #{generator_forward.1} parent=1 // pred_region
      %s66 = ssub.s32 8192, 8192
      %67 = vsyncadd [#allocation8], %s66
      %s68 = sshll.u32 [#allocation7], 4
      %s69 = int_to_ptr.vmem [resolvable:$true] %s68
      %74 = dma.hbm_to_vmem [thread:$0]  %s6, 8192, %s69, [#allocation8], 256, 256, 16
    $region29: #{generator_forward.1} parent=1 // pred_fallthru
      _
    // Predicated region
    $region30: #{generator_forward.1} parent=1 // pred_check
      _
    $region31: #{generator_forward.1} parent=1 // pred_check_branch
      %76 = sbr.rel (0) target = $region33
    $region32: #{generator_forward.1} parent=1 // pred_region
      _
    $region33: #{generator_forward.1} parent=1 // pred_fallthru
      _
    // Predicated region
    $region34: #{generator_forward.1} parent=1 // pred_check
      _
    $region35: #{generator_forward.1} parent=1 // pred_check_branch
      %78 = sbr.rel (0) target = $region37
    $region36: #{generator_forward.1} parent=1 // pred_region
      %s80 = ssub.s32 64, 64
      %81 = vsyncadd [#allocation8], %s80
      %s83 = sshll.u32 [#allocation9], 4
      %s84 = int_to_ptr.vmem [resolvable:$true] %s83
      %86 = dma.hbm_to_vmem [thread:$0]  %s8, 64, %s84, [#allocation8]
    $region37: #{generator_forward.1} parent=1 // pred_fallthru
      _
    // Predicated region
    $region38: #{generator_forward.1} parent=1 // pred_check
      _
    $region39: #{generator_forward.1} parent=1 // pred_check_branch
      %88 = sbr.rel (0) target = $region41
    $region40: #{generator_forward.1} parent=1 // pred_region
      %s90 = ssub.s32 32768, 32768
      %91 = vsyncadd [#allocation11], %s90
      %s92 = sshll.u32 [#allocation10], 4
      %s93 = int_to_ptr.vmem [resolvable:$true] %s92
      %98 = dma.hbm_to_vmem [thread:$0]  %s9, 32768, %s93, [#allocation11], 512, 512, 32
    $region41: #{generator_forward.1} parent=1 // pred_fallthru
      _
    // Predicated region
    $region42: #{generator_forward.1} parent=1 // pred_check
      _
    $region43: #{generator_forward.1} parent=1 // pred_check_branch
      %100 = sbr.rel (0) target = $region45
    $region44: #{generator_forward.1} parent=1 // pred_region
      %s102 = ssub.s32 128, 128
      %103 = vsyncadd [#allocation11], %s102
      %s105 = sshll.u32 [#allocation12], 4
      %s106 = int_to_ptr.vmem [resolvable:$true] %s105
      %108 = dma.hbm_to_vmem [thread:$0]  %s10, 128, %s106, [#allocation11]
    $region45: #{generator_forward.1} parent=1 // pred_fallthru
      _
    // Predicated region
    $region46: #{generator_forward.1} parent=1 // pred_check
      _
    $region47: #{generator_forward.1} parent=1 // pred_check_branch
      %110 = sbr.rel (0) target = $region49
    $region48: #{generator_forward.1} parent=1 // pred_region
      %s112 = ssub.s32 128, 128
      %113 = vsyncadd [#allocation14], %s112
      %s115 = sshll.u32 [#allocation13], 4
      %s116 = int_to_ptr.vmem [resolvable:$true] %s115
      %118 = dma.hbm_to_vmem [thread:$0]  %s11, 128, %s116, [#allocation14]
    $region49: #{generator_forward.1} parent=1 // pred_fallthru
      _
    // Predicated region
    $region50: #{generator_forward.1} parent=1 // pred_check
      _
    $region51: #{generator_forward.1} parent=1 // pred_check_branch
      %120 = sbr.rel (0) target = $region53
    $region52: #{generator_forward.1} parent=1 // pred_region
      %s122 = ssub.s32 16384, 16384
      %123 = vsyncadd [#allocation14], %s122
      %s124 = sshll.u32 [#allocation15], 4
      %s125 = int_to_ptr.vmem [resolvable:$true] %s124
      %130 = dma.hbm_to_vmem [thread:$0]  %s12, 16384, %s125, [#allocation14], 128, 128, 8
    $region53: #{generator_forward.1} parent=1 // pred_fallthru
      _
    // Predicated region
    $region54: #{generator_forward.1} parent=1 // pred_check
      _
    $region55: #{generator_forward.1} parent=1 // pred_check_branch
      %132 = sbr.rel (0) target = $region57
    $region56: #{generator_forward.1} parent=1 // pred_region
      %s134 = ssub.s32 32, 32
      %135 = vsyncadd [#allocation17], %s134
      %s137 = sshll.u32 [#allocation16], 4
      %s138 = int_to_ptr.vmem [resolvable:$true] %s137
      %140 = dma.hbm_to_vmem [thread:$0]  %s13, 32, %s138, [#allocation17]
    $region57: #{generator_forward.1} parent=1 // pred_fallthru
      _
    // Predicated region
    $region58: #{generator_forward.1} parent=1 // pred_check
      _
    $region59: #{generator_forward.1} parent=1 // pred_check_branch
      %142 = sbr.rel (0) target = $region61
    $region60: #{generator_forward.1} parent=1 // pred_region
      %143 = dma.done [#allocation3], 256
    $region61: #{generator_forward.1} parent=1 // pred_fallthru
      _
    // Predicated region
    $region62: #{generator_forward.1} parent=1 // pred_check
      _
    $region63: #{generator_forward.1} parent=1 // pred_check_branch
      %145 = sbr.rel (0) target = $region65
    $region64: #{generator_forward.1} parent=1 // pred_region
      %146 = dma.done [#allocation5], 32
    $region65: #{generator_forward.1} parent=1 // pred_fallthru
      _
    // Predicated region
    $region66: #{generator_forward.1} parent=1 // pred_check
      _
    $region67: #{generator_forward.1} parent=1 // pred_check_branch
      %148 = sbr.rel (0) target = $region69
    $region68: #{generator_forward.1} parent=1 // pred_region
      %149 = dma.done [#allocation5], 32
    $region69: #{generator_forward.1} parent=1 // pred_fallthru
      _
    // Predicated region
    $region70: #{generator_forward.1} parent=1 // pred_check
      _
    $region71: #{generator_forward.1} parent=1 // pred_check_branch
      %151 = sbr.rel (0) target = $region73
    $region72: #{generator_forward.1} parent=1 // pred_region
      %152 = dma.done [#allocation8], 8192
    $region73: #{generator_forward.1} parent=1 // pred_fallthru
      _
    // Predicated region
    $region74: #{generator_forward.1} parent=1 // pred_check
      _
    $region75: #{generator_forward.1} parent=1 // pred_check_branch
      %154 = sbr.rel (0) target = $region77
    $region76: #{generator_forward.1} parent=1 // pred_region
      %155 = dma.done [#allocation8], 64
    $region77: #{generator_forward.1} parent=1 // pred_fallthru
      _
    // Predicated region
    $region78: #{generator_forward.1} parent=1 // pred_check
      _
    $region79: #{generator_forward.1} parent=1 // pred_check_branch
      %157 = sbr.rel (0) target = $region81
    $region80: #{generator_forward.1} parent=1 // pred_region
      %158 = dma.done [#allocation11], 32768
    $region81: #{generator_forward.1} parent=1 // pred_fallthru
      _
    // Predicated region
    $region82: #{generator_forward.1} parent=1 // pred_check
      _
    $region83: #{generator_forward.1} parent=1 // pred_check_branch
      %160 = sbr.rel (0) target = $region85
    $region84: #{generator_forward.1} parent=1 // pred_region
      %161 = dma.done [#allocation11], 128
    $region85: #{generator_forward.1} parent=1 // pred_fallthru
      _
    // Predicated region
    $region86: #{generator_forward.1} parent=1 // pred_check
      _
    $region87: #{generator_forward.1} parent=1 // pred_check_branch
      %163 = sbr.rel (0) target = $region89
    $region88: #{generator_forward.1} parent=1 // pred_region
      %164 = dma.done [#allocation14], 128
    $region89: #{generator_forward.1} parent=1 // pred_fallthru
      _
    // Predicated region
    $region90: #{generator_forward.1} parent=1 // pred_check
      _
    $region91: #{generator_forward.1} parent=1 // pred_check_branch
      %166 = sbr.rel (0) target = $region93
    $region92: #{generator_forward.1} parent=1 // pred_region
      %167 = dma.done [#allocation14], 16384
    $region93: #{generator_forward.1} parent=1 // pred_fallthru
      _
    // Predicated region
    $region94: #{generator_forward.1} parent=1 // pred_check
      _
    $region95: #{generator_forward.1} parent=1 // pred_check_branch
      %169 = sbr.rel (0) target = $region97
    $region96: #{generator_forward.1} parent=1 // pred_region
      %170 = dma.done [#allocation17], 32
    $region97: #{generator_forward.1} parent=1 // pred_fallthru
      _
    %v172 = vld [vmem:[%s0] sm:$0xff]
    %v173 = vpack.c.bf16 %v172, %v172
    %v174 = vld [vmem:[#allocation2] sm:$0xf]
    %v175 = vld [vmem:[#allocation2 + $0x4] sm:$0xf]
    %v176 = vld [vmem:[#allocation2 + $0x8] sm:$0xf]
    %v177 = vld [vmem:[#allocation2 + $0xc] sm:$0xf]
    %v178 = vld [vmem:[%s1] sm:$0xff]
    %v183 = vunpack.c.l.b16 %v174
    %v184 = vunpack.c.l.b16 %v175
    %v185 = vunpack.c.l.b16 %v176
    %v186 = vunpack.c.l.b16 %v177
    %v187 = vpack.c.b16 %v184, %v183
    %v188 = vpack.c.b16 %v186, %v185
    %vm191 = vcmask 261120
    %v193 = vsel %vm191, %v173, 0
    %195 = vmatprep.subr.bf16.mxu0 0
    %196 = vmatpush1.bf16.msra.mxu0 %v187
    %197 = vmatprep.subr.bf16.mxu0 0
    %198 = vmatpush1.bf16.msra.mxu0 %v188
    %199 = vmatprep.subr.bf16.mxu0 0
    %200 = vmatpush1.bf16.msra.mxu0 0
    %201 = vmatprep.subr.bf16.mxu0 0
    %202 = vmatpush1.bf16.msra.mxu0 0
    %203 = vmatprep.subr.bf16.mxu0 0
    %204 = vmatpush1.bf16.msra.mxu0 0
    %205 = vmatprep.subr.bf16.mxu0 0
    %206 = vmatpush1.bf16.msra.mxu0 0
    %207 = vmatprep.subr.bf16.mxu0 0
    %208 = vmatpush1.bf16.msra.mxu0 0
    %209 = vmatprep.subr.bf16.mxu0 0
    %210 = vmatpush1.bf16.msra.mxu0 0
    %211 = vmatprep.subr.bf16.mxu0 0
    %212 = vmatpush1.bf16.msra.mxu0 0
    %213 = vmatprep.subr.bf16.mxu0 0
    %214 = vmatpush1.bf16.msra.mxu0 0
    %215 = vmatprep.subr.bf16.mxu0 0
    %216 = vmatpush1.bf16.msra.mxu0 0
    %217 = vmatprep.subr.bf16.mxu0 0
    %218 = vmatpush1.bf16.msra.mxu0 0
    %219 = vmatprep.subr.bf16.mxu0 0
    %220 = vmatpush1.bf16.msra.mxu0 0
    %221 = vmatprep.subr.bf16.mxu0 0
    %222 = vmatpush1.bf16.msra.mxu0 0
    %223 = vmatprep.subr.bf16.mxu0 0
    %224 = vmatpush1.bf16.msra.mxu0 0
    %225 = vmatprep.subr.bf16.mxu0 0
    %226 = vmatpush1.bf16.msra.mxu0 0
    %227 = vmatprep.mubr.bf16.mxu0 0
    %228 = vmatmul.mubr.bf16.gmra.mrb[0].mxu0 %v193
    %v229 = vpop.f32.mrb[0].mxu0
    %v230 = vadd.f32 %v178, %v229
    %v231 = vpop.f32.mrb[0].mxu0
    %v232 = vpop.f32.mrb[0].mxu0
    %v233 = vpop.f32.mrb[0].mxu0
    %234 = vdwg.mxu0
    %vm235 = vcmp.gt.f32.partialorder %v230, 0.0
    %v236 = vmul.f32 %v230, 0.2
    %v237 = vsel %vm235, %v230, %v236
    %v238 = vpack.c.bf16 %v237, %v237
    %v239 = vld [vmem:[%s3] sm:$0xff]
    %v240 = vld [vmem:[%s3 + $0x8] sm:$0xff]
    %v241 = vld [vmem:[%s3 + $0x10] sm:$0xff]
    %v242 = vld [vmem:[%s3 + $0x18] sm:$0xff]
    %v243 = vld [vmem:[%s3 + $0x20] sm:$0xff]
    %v244 = vld [vmem:[%s3 + $0x28] sm:$0xff]
    %v245 = vld [vmem:[%s3 + $0x30] sm:$0xff]
    %v246 = vld [vmem:[%s3 + $0x38] sm:$0xff]
    %v247 = vld [vmem:[%s3 + $0x40] sm:$0xff]
    %v248 = vld [vmem:[%s3 + $0x48] sm:$0xff]
    %v249 = vld [vmem:[%s3 + $0x50] sm:$0xff]
    %v250 = vld [vmem:[%s3 + $0x58] sm:$0xff]
    %v251 = vld [vmem:[%s3 + $0x60] sm:$0xff]
    %v252 = vld [vmem:[%s3 + $0x68] sm:$0xff]
    %v253 = vld [vmem:[%s3 + $0x70] sm:$0xff]
    %v254 = vld [vmem:[%s3 + $0x78] sm:$0xff]
    %v271 = vunpack.c.l.b16 %v239
    %v272 = vunpack.c.h.b16 %v239
    %v273 = vunpack.c.l.b16 %v240
    %v274 = vunpack.c.h.b16 %v240
    %v275 = vunpack.c.l.b16 %v241
    %v276 = vunpack.c.h.b16 %v241
    %v277 = vunpack.c.l.b16 %v242
    %v278 = vunpack.c.h.b16 %v242
    %v279 = vunpack.c.l.b16 %v243
    %v280 = vunpack.c.h.b16 %v243
    %v281 = vunpack.c.l.b16 %v244
    %v282 = vunpack.c.h.b16 %v244
    %v283 = vunpack.c.l.b16 %v245
    %v284 = vunpack.c.h.b16 %v245
    %v285 = vunpack.c.l.b16 %v246
    %v286 = vunpack.c.h.b16 %v246
    %v287 = vunpack.c.l.b16 %v247
    %v288 = vunpack.c.h.b16 %v247
    %v289 = vunpack.c.l.b16 %v248
    %v290 = vunpack.c.h.b16 %v248
    %v291 = vunpack.c.l.b16 %v249
    %v292 = vunpack.c.h.b16 %v249
    %v293 = vunpack.c.l.b16 %v250
    %v294 = vunpack.c.h.b16 %v250
    %v295 = vunpack.c.l.b16 %v251
    %v296 = vunpack.c.h.b16 %v251
    %v297 = vunpack.c.l.b16 %v252
    %v298 = vunpack.c.h.b16 %v252
    %v299 = vunpack.c.l.b16 %v253
    %v300 = vunpack.c.h.b16 %v253
    %v301 = vunpack.c.l.b16 %v254
    %v302 = vunpack.c.h.b16 %v254
    %v303 = vpack.c.b16 %v273, %v271
    %v304 = vpack.c.b16 %v274, %v272
    %v305 = vpack.c.b16 %v277, %v275
    %v306 = vpack.c.b16 %v278, %v276
    %v307 = vpack.c.b16 %v281, %v279
    %v308 = vpack.c.b16 %v282, %v280
    %v309 = vpack.c.b16 %v285, %v283
    %v310 = vpack.c.b16 %v286, %v284
    %v311 = vpack.c.b16 %v289, %v287
    %v312 = vpack.c.b16 %v290, %v288
    %v313 = vpack.c.b16 %v293, %v291
    %v314 = vpack.c.b16 %v294, %v292
    %v315 = vpack.c.b16 %v297, %v295
    %v316 = vpack.c.b16 %v298, %v296
    %v317 = vpack.c.b16 %v301, %v299
    %v318 = vpack.c.b16 %v302, %v300
    %335 = vmatprep.subr.bf16.mxu0 %v304
    %336 = vmatpush1.bf16.msra.mxu0 %v303
    %337 = vmatprep.subr.bf16.mxu0 %v306
    %338 = vmatpush1.bf16.msra.mxu0 %v305
    %339 = vmatprep.subr.bf16.mxu0 %v308
    %340 = vmatpush1.bf16.msra.mxu0 %v307
    %341 = vmatprep.subr.bf16.mxu0 %v310
    %342 = vmatpush1.bf16.msra.mxu0 %v309
    %343 = vmatprep.subr.bf16.mxu0 %v312
    %344 = vmatpush1.bf16.msra.mxu0 %v311
    %345 = vmatprep.subr.bf16.mxu0 %v314
    %346 = vmatpush1.bf16.msra.mxu0 %v313
    %347 = vmatprep.subr.bf16.mxu0 %v316
    %348 = vmatpush1.bf16.msra.mxu0 %v315
    %349 = vmatprep.subr.bf16.mxu0 %v318
    %350 = vmatpush1.bf16.msra.mxu0 %v317
    %351 = vmatprep.subr.bf16.mxu0 0
    %352 = vmatpush1.bf16.msra.mxu0 0
    %353 = vmatprep.subr.bf16.mxu0 0
    %354 = vmatpush1.bf16.msra.mxu0 0
    %355 = vmatprep.subr.bf16.mxu0 0
    %356 = vmatpush1.bf16.msra.mxu0 0
    %357 = vmatprep.subr.bf16.mxu0 0
    %358 = vmatpush1.bf16.msra.mxu0 0
    %359 = vmatprep.subr.bf16.mxu0 0
    %360 = vmatpush1.bf16.msra.mxu0 0
    %361 = vmatprep.subr.bf16.mxu0 0
    %362 = vmatpush1.bf16.msra.mxu0 0
    %363 = vmatprep.subr.bf16.mxu0 0
    %364 = vmatpush1.bf16.msra.mxu0 0
    %365 = vmatprep.subr.bf16.mxu0 0
    %366 = vmatpush1.bf16.msra.mxu0 0
    %367 = vmatprep.mubr.bf16.mxu0 0
    %368 = vmatmul.mubr.bf16.gmra.mrb[0].mxu0 %v238
    %v369 = vpop.f32.mrb[0].mxu0
    %v370 = vadd.f32 0.0, %v369
    %v371 = vpop.f32.mrb[0].mxu0
    %v372 = vadd.f32 0.0, %v371
    %v373 = vpop.f32.mrb[0].mxu0
    %v374 = vpop.f32.mrb[0].mxu0
    %375 = vdwg.mxu0
    %v376 = vld [vmem:[#allocation4] sm:$0x3]
    %v377 = vld [vmem:[#allocation6] sm:$0x3]
    %v378 = vrot.slane %v370, 4
    %v379 = vadd.f32 %v370, %v378
    %v380 = vrot.slane %v379, 2
    %v381 = vadd.f32 %v379, %v380
    %v382 = vrot.slane %v381, 1
    %v383 = vadd.f32 %v381, %v382
    %v384 = vrot.slane %v372, 4
    %v385 = vadd.f32 %v372, %v384
    %v386 = vrot.slane %v385, 2
    %v387 = vadd.f32 %v385, %v386
    %v388 = vrot.slane %v387, 1
    %v389 = vadd.f32 %v387, %v388
    %v390 = vmul.f32 %v383, 0.125
    %v391 = vmul.f32 %v389, 0.125
    %v392 = vmul.f32 %v370, %v370
    %v393 = vmul.f32 %v372, %v372
    %v394 = vrot.slane %v392, 4
    %v395 = vadd.f32 %v392, %v394
    %v396 = vrot.slane %v395, 2
    %v397 = vadd.f32 %v395, %v396
    %v398 = vrot.slane %v397, 1
    %v399 = vadd.f32 %v397, %v398
    %v400 = vrot.slane %v393, 4
    %v401 = vadd.f32 %v393, %v400
    %v402 = vrot.slane %v401, 2
    %v403 = vadd.f32 %v401, %v402
    %v404 = vrot.slane %v403, 1
    %v405 = vadd.f32 %v403, %v404
    %v406 = vmul.f32 %v399, 0.125
    %v407 = vmul.f32 %v405, 0.125
    %v408 = vmul.f32 %v390, %v390
    %v409 = vmul.f32 %v391, %v391
    %v410 = vsub.f32 %v406, %v408
    %v411 = vsub.f32 %v407, %v409
    %v412 = vadd.f32 %v410, 0.8
    %v413 = vadd.f32 %v411, 0.8
    %v414 = vrsqrt.pop %v412
    %v415 = vrsqrt.pop %v413
    %v418 = vcombine.low %v414, %v415
    %v420 = vunpack.c.l.s4 1966171168
    %v421 = vunpack.c.0.s8 %v420
    %v422 = vlaneseq
    %v423 = vshrl.u32 %v422, 7
    %v424 = vsub.s32 %v421, %v423
    %v425 = vrot.slane %v418, %v424
    %v427 = vunpack.c.l.s4 1966171168
    %v428 = vunpack.c.0.s8 %v427
    %v429 = vlaneseq
    %v430 = vshrl.u32 %v429, 7
    %v431 = vsub.s32 %v428, %v430
    %v432 = vrot.slane %v425, %v431
    %v434 = vmul.f32 %v376, %v432
    %v436 = vlaneseq
    %v437 = vshrl.u32 %v436, 7
    %v438 = vsub.s32 0, %v437
    %v439 = vrot.slane %v434, %v438
    %v440 = vlaneseq
    %v441 = vshrl.u32 %v440, 7
    %v442 = vsub.s32 1, %v441
    %v443 = vrot.slane %v434, %v442
    %v446 = vmul.f32 %v390, %v439
    %v447 = vmul.f32 %v391, %v443
    %v450 = vcombine.low %v446, %v447
    %v452 = vunpack.c.l.s4 1966171168
    %v453 = vunpack.c.0.s8 %v452
    %v454 = vlaneseq
    %v455 = vshrl.u32 %v454, 7
    %v456 = vsub.s32 %v453, %v455
    %v457 = vrot.slane %v450, %v456
    %v459 = vunpack.c.l.s4 1966171168
    %v460 = vunpack.c.0.s8 %v459
    %v461 = vlaneseq
    %v462 = vshrl.u32 %v461, 7
    %v463 = vsub.s32 %v460, %v462
    %v464 = vrot.slane %v457, %v463
    %v466 = vsub.f32 %v377, %v464
    %v467 = vmul.f32 %v370, %v439
    %v468 = vmul.f32 %v372, %v443
    %v470 = vlaneseq
    %v471 = vshrl.u32 %v470, 7
    %v472 = vsub.s32 0, %v471
    %v473 = vrot.slane %v466, %v472
    %v474 = vlaneseq
    %v475 = vshrl.u32 %v474, 7
    %v476 = vsub.s32 1, %v475
    %v477 = vrot.slane %v466, %v476
    %v480 = vadd.f32 %v467, %v473
    %v481 = vadd.f32 %v468, %v477
    %vm482 = vcmp.gt.f32.partialorder %v480, 0.0
    %vm483 = vcmp.gt.f32.partialorder %v481, 0.0
    %v484 = vmul.f32 %v480, 0.2
    %v485 = vmul.f32 %v481, 0.2
    %v486 = vsel %vm482, %v480, %v484
    %v487 = vsel %vm483, %v481, %v485
    %v488 = vpack.c.bf16 %v486, %v486
    %v489 = vpack.c.bf16 %v487, %v487
    %v490 = vld [vmem:[#allocation7] sm:$0xff]
    %v491 = vld [vmem:[#allocation7 + $0x8] sm:$0xff]
    %v492 = vld [vmem:[#allocation7 + $0x10] sm:$0xff]
    %v493 = vld [vmem:[#allocation7 + $0x18] sm:$0xff]
    %v494 = vld [vmem:[#allocation7 + $0x20] sm:$0xff]
    %v495 = vld [vmem:[#allocation7 + $0x28] sm:$0xff]
    %v496 = vld [vmem:[#allocation7 + $0x30] sm:$0xff]
    %v497 = vld [vmem:[#allocation7 + $0x38] sm:$0xff]
    %v498 = vld [vmem:[#allocation7 + $0x40] sm:$0xff]
    %v499 = vld [vmem:[#allocation7 + $0x48] sm:$0xff]
    %v500 = vld [vmem:[#allocation7 + $0x50] sm:$0xff]
    %v501 = vld [vmem:[#allocation7 + $0x58] sm:$0xff]
    %v502 = vld [vmem:[#allocation7 + $0x60] sm:$0xff]
    %v503 = vld [vmem:[#allocation7 + $0x68] sm:$0xff]
    %v504 = vld [vmem:[#allocation7 + $0x70] sm:$0xff]
    %v505 = vld [vmem:[#allocation7 + $0x78] sm:$0xff]
    %v506 = vld [vmem:[#allocation7 + $0x80] sm:$0xff]
    %v507 = vld [vmem:[#allocation7 + $0x88] sm:$0xff]
    %v508 = vld [vmem:[#allocation7 + $0x90] sm:$0xff]
    %v509 = vld [vmem:[#allocation7 + $0x98] sm:$0xff]
    %v510 = vld [vmem:[#allocation7 + $0xa0] sm:$0xff]
    %v511 = vld [vmem:[#allocation7 + $0xa8] sm:$0xff]
    %v512 = vld [vmem:[#allocation7 + $0xb0] sm:$0xff]
    %v513 = vld [vmem:[#allocation7 + $0xb8] sm:$0xff]
    %v514 = vld [vmem:[#allocation7 + $0xc0] sm:$0xff]
    %v515 = vld [vmem:[#allocation7 + $0xc8] sm:$0xff]
    %v516 = vld [vmem:[#allocation7 + $0xd0] sm:$0xff]
    %v517 = vld [vmem:[#allocation7 + $0xd8] sm:$0xff]
    %v518 = vld [vmem:[#allocation7 + $0xe0] sm:$0xff]
    %v519 = vld [vmem:[#allocation7 + $0xe8] sm:$0xff]
    %v520 = vld [vmem:[#allocation7 + $0xf0] sm:$0xff]
    %v521 = vld [vmem:[#allocation7 + $0xf8] sm:$0xff]
    %v522 = vld [vmem:[#allocation7 + $0x100] sm:$0xff]
    %v523 = vld [vmem:[#allocation7 + $0x108] sm:$0xff]
    %v524 = vld [vmem:[#allocation7 + $0x110] sm:$0xff]
    %v525 = vld [vmem:[#allocation7 + $0x118] sm:$0xff]
    %v526 = vld [vmem:[#allocation7 + $0x120] sm:$0xff]
    %v527 = vld [vmem:[#allocation7 + $0x128] sm:$0xff]
    %v528 = vld [vmem:[#allocation7 + $0x130] sm:$0xff]
    %v529 = vld [vmem:[#allocation7 + $0x138] sm:$0xff]
    %v530 = vld [vmem:[#allocation7 + $0x140] sm:$0xff]
    %v531 = vld [vmem:[#allocation7 + $0x148] sm:$0xff]
    %v532 = vld [vmem:[#allocation7 + $0x150] sm:$0xff]
    %v533 = vld [vmem:[#allocation7 + $0x158] sm:$0xff]
    %v534 = vld [vmem:[#allocation7 + $0x160] sm:$0xff]
    %v535 = vld [vmem:[#allocation7 + $0x168] sm:$0xff]
    %v536 = vld [vmem:[#allocation7 + $0x170] sm:$0xff]
    %v537 = vld [vmem:[#allocation7 + $0x178] sm:$0xff]
    %v538 = vld [vmem:[#allocation7 + $0x180] sm:$0xff]
    %v539 = vld [vmem:[#allocation7 + $0x188] sm:$0xff]
    %v540 = vld [vmem:[#allocation7 + $0x190] sm:$0xff]
    %v541 = vld [vmem:[#allocation7 + $0x198] sm:$0xff]
    %v542 = vld [vmem:[#allocation7 + $0x1a0] sm:$0xff]
    %v543 = vld [vmem:[#allocation7 + $0x1a8] sm:$0xff]
    %v544 = vld [vmem:[#allocation7 + $0x1b0] sm:$0xff]
    %v545 = vld [vmem:[#allocation7 + $0x1b8] sm:$0xff]
    %v546 = vld [vmem:[#allocation7 + $0x1c0] sm:$0xff]
    %v547 = vld [vmem:[#allocation7 + $0x1c8] sm:$0xff]
    %v548 = vld [vmem:[#allocation7 + $0x1d0] sm:$0xff]
    %v549 = vld [vmem:[#allocation7 + $0x1d8] sm:$0xff]
    %v550 = vld [vmem:[#allocation7 + $0x1e0] sm:$0xff]
    %v551 = vld [vmem:[#allocation7 + $0x1e8] sm:$0xff]
    %v552 = vld [vmem:[#allocation7 + $0x1f0] sm:$0xff]
    %v553 = vld [vmem:[#allocation7 + $0x1f8] sm:$0xff]
    %v618 = vunpack.c.l.b16 %v490
    %v619 = vunpack.c.h.b16 %v490
    %v620 = vunpack.c.l.b16 %v491
    %v621 = vunpack.c.h.b16 %v491
    %v622 = vunpack.c.l.b16 %v492
    %v623 = vunpack.c.h.b16 %v492
    %v624 = vunpack.c.l.b16 %v493
    %v625 = vunpack.c.h.b16 %v493
    %v626 = vunpack.c.l.b16 %v494
    %v627 = vunpack.c.h.b16 %v494
    %v628 = vunpack.c.l.b16 %v495
    %v629 = vunpack.c.h.b16 %v495
    %v630 = vunpack.c.l.b16 %v496
    %v631 = vunpack.c.h.b16 %v496
    %v632 = vunpack.c.l.b16 %v497
    %v633 = vunpack.c.h.b16 %v497
    %v634 = vunpack.c.l.b16 %v498
    %v635 = vunpack.c.h.b16 %v498
    %v636 = vunpack.c.l.b16 %v499
    %v637 = vunpack.c.h.b16 %v499
    %v638 = vunpack.c.l.b16 %v500
    %v639 = vunpack.c.h.b16 %v500
    %v640 = vunpack.c.l.b16 %v501
    %v641 = vunpack.c.h.b16 %v501
    %v642 = vunpack.c.l.b16 %v502
    %v643 = vunpack.c.h.b16 %v502
    %v644 = vunpack.c.l.b16 %v503
    %v645 = vunpack.c.h.b16 %v503
    %v646 = vunpack.c.l.b16 %v504
    %v647 = vunpack.c.h.b16 %v504
    %v648 = vunpack.c.l.b16 %v505
    %v649 = vunpack.c.h.b16 %v505
    %v650 = vunpack.c.l.b16 %v506
    %v651 = vunpack.c.h.b16 %v506
    %v652 = vunpack.c.l.b16 %v507
    %v653 = vunpack.c.h.b16 %v507
    %v654 = vunpack.c.l.b16 %v508
    %v655 = vunpack.c.h.b16 %v508
    %v656 = vunpack.c.l.b16 %v509
    %v657 = vunpack.c.h.b16 %v509
    %v658 = vunpack.c.l.b16 %v510
    %v659 = vunpack.c.h.b16 %v510
    %v660 = vunpack.c.l.b16 %v511
    %v661 = vunpack.c.h.b16 %v511
    %v662 = vunpack.c.l.b16 %v512
    %v663 = vunpack.c.h.b16 %v512
    %v664 = vunpack.c.l.b16 %v513
    %v665 = vunpack.c.h.b16 %v513
    %v666 = vunpack.c.l.b16 %v514
    %v667 = vunpack.c.h.b16 %v514
    %v668 = vunpack.c.l.b16 %v515
    %v669 = vunpack.c.h.b16 %v515
    %v670 = vunpack.c.l.b16 %v516
    %v671 = vunpack.c.h.b16 %v516
    %v672 = vunpack.c.l.b16 %v517
    %v673 = vunpack.c.h.b16 %v517
    %v674 = vunpack.c.l.b16 %v518
    %v675 = vunpack.c.h.b16 %v518
    %v676 = vunpack.c.l.b16 %v519
    %v677 = vunpack.c.h.b16 %v519
    %v678 = vunpack.c.l.b16 %v520
    %v679 = vunpack.c.h.b16 %v520
    %v680 = vunpack.c.l.b16 %v521
    %v681 = vunpack.c.h.b16 %v521
    %v682 = vunpack.c.l.b16 %v522
    %v683 = vunpack.c.h.b16 %v522
    %v684 = vunpack.c.l.b16 %v523
    %v685 = vunpack.c.h.b16 %v523
    %v686 = vunpack.c.l.b16 %v524
    %v687 = vunpack.c.h.b16 %v524
    %v688 = vunpack.c.l.b16 %v525
    %v689 = vunpack.c.h.b16 %v525
    %v690 = vunpack.c.l.b16 %v526
    %v691 = vunpack.c.h.b16 %v526
    %v692 = vunpack.c.l.b16 %v527
    %v693 = vunpack.c.h.b16 %v527
    %v694 = vunpack.c.l.b16 %v528
    %v695 = vunpack.c.h.b16 %v528
    %v696 = vunpack.c.l.b16 %v529
    %v697 = vunpack.c.h.b16 %v529
    %v698 = vunpack.c.l.b16 %v530
    %v699 = vunpack.c.h.b16 %v530
    %v700 = vunpack.c.l.b16 %v531
    %v701 = vunpack.c.h.b16 %v531
    %v702 = vunpack.c.l.b16 %v532
    %v703 = vunpack.c.h.b16 %v532
    %v704 = vunpack.c.l.b16 %v533
    %v705 = vunpack.c.h.b16 %v533
    %v706 = vunpack.c.l.b16 %v534
    %v707 = vunpack.c.h.b16 %v534
    %v708 = vunpack.c.l.b16 %v535
    %v709 = vunpack.c.h.b16 %v535
    %v710 = vunpack.c.l.b16 %v536
    %v711 = vunpack.c.h.b16 %v536
    %v712 = vunpack.c.l.b16 %v537
    %v713 = vunpack.c.h.b16 %v537
    %v714 = vunpack.c.l.b16 %v538
    %v715 = vunpack.c.h.b16 %v538
    %v716 = vunpack.c.l.b16 %v539
    %v717 = vunpack.c.h.b16 %v539
    %v718 = vunpack.c.l.b16 %v540
    %v719 = vunpack.c.h.b16 %v540
    %v720 = vunpack.c.l.b16 %v541
    %v721 = vunpack.c.h.b16 %v541
    %v722 = vunpack.c.l.b16 %v542
    %v723 = vunpack.c.h.b16 %v542
    %v724 = vunpack.c.l.b16 %v543
    %v725 = vunpack.c.h.b16 %v543
    %v726 = vunpack.c.l.b16 %v544
    %v727 = vunpack.c.h.b16 %v544
    %v728 = vunpack.c.l.b16 %v545
    %v729 = vunpack.c.h.b16 %v545
    %v730 = vunpack.c.l.b16 %v546
    %v731 = vunpack.c.h.b16 %v546
    %v732 = vunpack.c.l.b16 %v547
    %v733 = vunpack.c.h.b16 %v547
    %v734 = vunpack.c.l.b16 %v548
    %v735 = vunpack.c.h.b16 %v548
    %v736 = vunpack.c.l.b16 %v549
    %v737 = vunpack.c.h.b16 %v549
    %v738 = vunpack.c.l.b16 %v550
    %v739 = vunpack.c.h.b16 %v550
    %v740 = vunpack.c.l.b16 %v551
    %v741 = vunpack.c.h.b16 %v551
    %v742 = vunpack.c.l.b16 %v552
    %v743 = vunpack.c.h.b16 %v552
    %v744 = vunpack.c.l.b16 %v553
    %v745 = vunpack.c.h.b16 %v553
    %v746 = vpack.c.b16 %v622, %v618
    %v747 = vpack.c.b16 %v623, %v619
    %v748 = vpack.c.b16 %v624, %v620
    %v749 = vpack.c.b16 %v625, %v621
    %v750 = vpack.c.b16 %v630, %v626
    %v751 = vpack.c.b16 %v631, %v627
    %v752 = vpack.c.b16 %v632, %v628
    %v753 = vpack.c.b16 %v633, %v629
    %v754 = vpack.c.b16 %v638, %v634
    %v755 = vpack.c.b16 %v639, %v635
    %v756 = vpack.c.b16 %v640, %v636
    %v757 = vpack.c.b16 %v641, %v637
    %v758 = vpack.c.b16 %v646, %v642
    %v759 = vpack.c.b16 %v647, %v643
    %v760 = vpack.c.b16 %v648, %v644
    %v761 = vpack.c.b16 %v649, %v645
    %v762 = vpack.c.b16 %v654, %v650
    %v763 = vpack.c.b16 %v655, %v651
    %v764 = vpack.c.b16 %v656, %v652
    %v765 = vpack.c.b16 %v657, %v653
    %v766 = vpack.c.b16 %v662, %v658
    %v767 = vpack.c.b16 %v663, %v659
    %v768 = vpack.c.b16 %v664, %v660
    %v769 = vpack.c.b16 %v665, %v661
    %v770 = vpack.c.b16 %v670, %v666
    %v771 = vpack.c.b16 %v671, %v667
    %v772 = vpack.c.b16 %v672, %v668
    %v773 = vpack.c.b16 %v673, %v669
    %v774 = vpack.c.b16 %v678, %v674
    %v775 = vpack.c.b16 %v679, %v675
    %v776 = vpack.c.b16 %v680, %v676
    %v777 = vpack.c.b16 %v681, %v677
    %v778 = vpack.c.b16 %v686, %v682
    %v779 = vpack.c.b16 %v687, %v683
    %v780 = vpack.c.b16 %v688, %v684
    %v781 = vpack.c.b16 %v689, %v685
    %v782 = vpack.c.b16 %v694, %v690
    %v783 = vpack.c.b16 %v695, %v691
    %v784 = vpack.c.b16 %v696, %v692
    %v785 = vpack.c.b16 %v697, %v693
    %v786 = vpack.c.b16 %v702, %v698
    %v787 = vpack.c.b16 %v703, %v699
    %v788 = vpack.c.b16 %v704, %v700
    %v789 = vpack.c.b16 %v705, %v701
    %v790 = vpack.c.b16 %v710, %v706
    %v791 = vpack.c.b16 %v711, %v707
    %v792 = vpack.c.b16 %v712, %v708
    %v793 = vpack.c.b16 %v713, %v709
    %v794 = vpack.c.b16 %v718, %v714
    %v795 = vpack.c.b16 %v719, %v715
    %v796 = vpack.c.b16 %v720, %v716
    %v797 = vpack.c.b16 %v721, %v717
    %v798 = vpack.c.b16 %v726, %v722
    %v799 = vpack.c.b16 %v727, %v723
    %v800 = vpack.c.b16 %v728, %v724
    %v801 = vpack.c.b16 %v729, %v725
    %v802 = vpack.c.b16 %v734, %v730
    %v803 = vpack.c.b16 %v735, %v731
    %v804 = vpack.c.b16 %v736, %v732
    %v805 = vpack.c.b16 %v737, %v733
    %v806 = vpack.c.b16 %v742, %v738
    %v807 = vpack.c.b16 %v743, %v739
    %v808 = vpack.c.b16 %v744, %v740
    %v809 = vpack.c.b16 %v745, %v741
    %874 = vmatprep.subr.bf16.mxu0 %v747
    %875 = vmatpush1.bf16.msra.mxu0 %v746
    %876 = vmatprep.subr.bf16.mxu0 %v751
    %877 = vmatpush1.bf16.msra.mxu0 %v750
    %878 = vmatprep.subr.bf16.mxu0 %v755
    %879 = vmatpush1.bf16.msra.mxu0 %v754
    %880 = vmatprep.subr.bf16.mxu0 %v759
    %881 = vmatpush1.bf16.msra.mxu0 %v758
    %882 = vmatprep.subr.bf16.mxu0 %v763
    %883 = vmatpush1.bf16.msra.mxu0 %v762
    %884 = vmatprep.subr.bf16.mxu0 %v767
    %885 = vmatpush1.bf16.msra.mxu0 %v766
    %886 = vmatprep.subr.bf16.mxu0 %v771
    %887 = vmatpush1.bf16.msra.mxu0 %v770
    %888 = vmatprep.subr.bf16.mxu0 %v775
    %889 = vmatpush1.bf16.msra.mxu0 %v774
    %890 = vmatprep.subr.bf16.mxu0 %v779
    %891 = vmatpush1.bf16.msra.mxu0 %v778
    %892 = vmatprep.subr.bf16.mxu0 %v783
    %893 = vmatpush1.bf16.msra.mxu0 %v782
    %894 = vmatprep.subr.bf16.mxu0 %v787
    %895 = vmatpush1.bf16.msra.mxu0 %v786
    %896 = vmatprep.subr.bf16.mxu0 %v791
    %897 = vmatpush1.bf16.msra.mxu0 %v790
    %898 = vmatprep.subr.bf16.mxu0 %v795
    %899 = vmatpush1.bf16.msra.mxu0 %v794
    %900 = vmatprep.subr.bf16.mxu0 %v799
    %901 = vmatpush1.bf16.msra.mxu0 %v798
    %902 = vmatprep.subr.bf16.mxu0 %v803
    %903 = vmatpush1.bf16.msra.mxu0 %v802
    %904 = vmatprep.subr.bf16.mxu0 %v807
    %905 = vmatpush1.bf16.msra.mxu0 %v806
    %906 = vmatprep.mubr.bf16.mxu0 %v489
    %907 = vmatmul.mubr.bf16.gmra.mrb[0].mxu0 %v488
    %v908 = vpop.f32.mrb[0].mxu0
    %v909 = vadd.f32 0.0, %v908
    %v910 = vpop.f32.mrb[0].mxu0
    %v911 = vadd.f32 0.0, %v910
    %v912 = vpop.f32.mrb[0].mxu0
    %v913 = vpop.f32.mrb[0].mxu0
    %914 = vdwg.mxu0
    %915 = vmatprep.subr.bf16.mxu0 %v749
    %916 = vmatpush1.bf16.msra.mxu0 %v748
    %917 = vmatprep.subr.bf16.mxu0 %v753
    %918 = vmatpush1.bf16.msra.mxu0 %v752
    %919 = vmatprep.subr.bf16.mxu0 %v757
    %920 = vmatpush1.bf16.msra.mxu0 %v756
    %921 = vmatprep.subr.bf16.mxu0 %v761
    %922 = vmatpush1.bf16.msra.mxu0 %v760
    %923 = vmatprep.subr.bf16.mxu0 %v765
    %924 = vmatpush1.bf16.msra.mxu0 %v764
    %925 = vmatprep.subr.bf16.mxu0 %v769
    %926 = vmatpush1.bf16.msra.mxu0 %v768
    %927 = vmatprep.subr.bf16.mxu0 %v773
    %928 = vmatpush1.bf16.msra.mxu0 %v772
    %929 = vmatprep.subr.bf16.mxu0 %v777
    %930 = vmatpush1.bf16.msra.mxu0 %v776
    %931 = vmatprep.subr.bf16.mxu0 %v781
    %932 = vmatpush1.bf16.msra.mxu0 %v780
    %933 = vmatprep.subr.bf16.mxu0 %v785
    %934 = vmatpush1.bf16.msra.mxu0 %v784
    %935 = vmatprep.subr.bf16.mxu0 %v789
    %936 = vmatpush1.bf16.msra.mxu0 %v788
    %937 = vmatprep.subr.bf16.mxu0 %v793
    %938 = vmatpush1.bf16.msra.mxu0 %v792
    %939 = vmatprep.subr.bf16.mxu0 %v797
    %940 = vmatpush1.bf16.msra.mxu0 %v796
    %941 = vmatprep.subr.bf16.mxu0 %v801
    %942 = vmatpush1.bf16.msra.mxu0 %v800
    %943 = vmatprep.subr.bf16.mxu0 %v805
    %944 = vmatpush1.bf16.msra.mxu0 %v804
    %945 = vmatprep.subr.bf16.mxu0 %v809
    %946 = vmatpush1.bf16.msra.mxu0 %v808
    %947 = vmatprep.mubr.bf16.mxu0 %v489
    %948 = vmatmul.mubr.bf16.gmra.mrb[0].mxu0 %v488
    %v949 = vpop.f32.mrb[0].mxu0
    %v950 = vadd.f32 0.0, %v949
    %v951 = vpop.f32.mrb[0].mxu0
    %v952 = vadd.f32 0.0, %v951
    %v953 = vpop.f32.mrb[0].mxu0
    %v954 = vpop.f32.mrb[0].mxu0
    %955 = vdwg.mxu0
    %v956 = vld [vmem:[%s7] sm:$0xf]
    %v957 = vld [vmem:[#allocation9] sm:$0xf]
    %v958 = vrot.slane %v909, 4
    %v959 = vadd.f32 %v909, %v958
    %v960 = vrot.slane %v959, 2
    %v961 = vadd.f32 %v959, %v960
    %v962 = vrot.slane %v961, 1
    %v963 = vadd.f32 %v961, %v962
    %v964 = vrot.slane %v911, 4
    %v965 = vadd.f32 %v911, %v964
    %v966 = vrot.slane %v965, 2
    %v967 = vadd.f32 %v965, %v966
    %v968 = vrot.slane %v967, 1
    %v969 = vadd.f32 %v967, %v968
    %v970 = vrot.slane %v950, 4
    %v971 = vadd.f32 %v950, %v970
    %v972 = vrot.slane %v971, 2
    %v973 = vadd.f32 %v971, %v972
    %v974 = vrot.slane %v973, 1
    %v975 = vadd.f32 %v973, %v974
    %v976 = vrot.slane %v952, 4
    %v977 = vadd.f32 %v952, %v976
    %v978 = vrot.slane %v977, 2
    %v979 = vadd.f32 %v977, %v978
    %v980 = vrot.slane %v979, 1
    %v981 = vadd.f32 %v979, %v980
    %v982 = vmul.f32 %v963, 0.125
    %v983 = vmul.f32 %v969, 0.125
    %v984 = vmul.f32 %v975, 0.125
    %v985 = vmul.f32 %v981, 0.125
    %v986 = vmul.f32 %v909, %v909
    %v987 = vmul.f32 %v911, %v911
    %v988 = vmul.f32 %v950, %v950
    %v989 = vmul.f32 %v952, %v952
    %v990 = vrot.slane %v986, 4
    %v991 = vadd.f32 %v986, %v990
    %v992 = vrot.slane %v991, 2
    %v993 = vadd.f32 %v991, %v992
    %v994 = vrot.slane %v993, 1
    %v995 = vadd.f32 %v993, %v994
    %v996 = vrot.slane %v987, 4
    %v997 = vadd.f32 %v987, %v996
    %v998 = vrot.slane %v997, 2
    %v999 = vadd.f32 %v997, %v998
    %v1000 = vrot.slane %v999, 1
    %v1001 = vadd.f32 %v999, %v1000
    %v1002 = vrot.slane %v988, 4
    %v1003 = vadd.f32 %v988, %v1002
    %v1004 = vrot.slane %v1003, 2
    %v1005 = vadd.f32 %v1003, %v1004
    %v1006 = vrot.slane %v1005, 1
    %v1007 = vadd.f32 %v1005, %v1006
    %v1008 = vrot.slane %v989, 4
    %v1009 = vadd.f32 %v989, %v1008
    %v1010 = vrot.slane %v1009, 2
    %v1011 = vadd.f32 %v1009, %v1010
    %v1012 = vrot.slane %v1011, 1
    %v1013 = vadd.f32 %v1011, %v1012
    %v1014 = vmul.f32 %v995, 0.125
    %v1015 = vmul.f32 %v1001, 0.125
    %v1016 = vmul.f32 %v1007, 0.125
    %v1017 = vmul.f32 %v1013, 0.125
    %v1018 = vmul.f32 %v982, %v982
    %v1019 = vmul.f32 %v983, %v983
    %v1020 = vmul.f32 %v984, %v984
    %v1021 = vmul.f32 %v985, %v985
    %v1022 = vsub.f32 %v1014, %v1018
    %v1023 = vsub.f32 %v1015, %v1019
    %v1024 = vsub.f32 %v1016, %v1020
    %v1025 = vsub.f32 %v1017, %v1021
    %v1026 = vadd.f32 %v1022, 0.8
    %v1027 = vadd.f32 %v1023, 0.8
    %v1028 = vadd.f32 %v1024, 0.8
    %v1029 = vadd.f32 %v1025, 0.8
    %v1030 = vrsqrt.pop %v1026
    %v1031 = vrsqrt.pop %v1027
    %v1032 = vrsqrt.pop %v1028
    %v1033 = vrsqrt.pop %v1029
    %v1038 = vcombine.low %v1030, %v1031
    %v1039 = vcombine.low %v1032, %v1033
    %v1041 = vunpack.c.l.s4 1966171168
    %v1042 = vunpack.c.0.s8 %v1041
    %v1043 = vlaneseq
    %v1044 = vshrl.u32 %v1043, 7
    %v1045 = vsub.s32 %v1042, %v1044
    %v1046 = vrot.slane %v1038, %v1045
    %v1048 = vunpack.c.l.s4 1966171168
    %v1049 = vunpack.c.0.s8 %v1048
    %v1050 = vlaneseq
    %v1051 = vshrl.u32 %v1050, 7
    %v1052 = vsub.s32 %v1049, %v1051
    %v1053 = vrot.slane %v1039, %v1052
    %v1054 = vcombine.low %v1046, %v1053
    %v1056 = vunpack.c.l.s4 1966171168
    %v1057 = vunpack.c.0.s8 %v1056
    %v1058 = vlaneseq
    %v1059 = vshrl.u32 %v1058, 7
    %v1060 = vsub.s32 %v1057, %v1059
    %v1061 = vrot.slane %v1054, %v1060
    %v1063 = vmul.f32 %v956, %v1061
    %v1065 = vlaneseq
    %v1066 = vshrl.u32 %v1065, 7
    %v1067 = vsub.s32 0, %v1066
    %v1068 = vrot.slane %v1063, %v1067
    %v1069 = vlaneseq
    %v1070 = vshrl.u32 %v1069, 7
    %v1071 = vsub.s32 1, %v1070
    %v1072 = vrot.slane %v1063, %v1071
    %v1073 = vlaneseq
    %v1074 = vshrl.u32 %v1073, 7
    %v1075 = vsub.s32 2, %v1074
    %v1076 = vrot.slane %v1063, %v1075
    %v1077 = vlaneseq
    %v1078 = vshrl.u32 %v1077, 7
    %v1079 = vsub.s32 3, %v1078
    %v1080 = vrot.slane %v1063, %v1079
    %v1085 = vmul.f32 %v982, %v1068
    %v1086 = vmul.f32 %v983, %v1072
    %v1087 = vmul.f32 %v984, %v1076
    %v1088 = vmul.f32 %v985, %v1080
    %v1093 = vcombine.low %v1085, %v1086
    %v1094 = vcombine.low %v1087, %v1088
    %v1096 = vunpack.c.l.s4 1966171168
    %v1097 = vunpack.c.0.s8 %v1096
    %v1098 = vlaneseq
    %v1099 = vshrl.u32 %v1098, 7
    %v1100 = vsub.s32 %v1097, %v1099
    %v1101 = vrot.slane %v1093, %v1100
    %v1103 = vunpack.c.l.s4 1966171168
    %v1104 = vunpack.c.0.s8 %v1103
    %v1105 = vlaneseq
    %v1106 = vshrl.u32 %v1105, 7
    %v1107 = vsub.s32 %v1104, %v1106
    %v1108 = vrot.slane %v1094, %v1107
    %v1109 = vcombine.low %v1101, %v1108
    %v1111 = vunpack.c.l.s4 1966171168
    %v1112 = vunpack.c.0.s8 %v1111
    %v1113 = vlaneseq
    %v1114 = vshrl.u32 %v1113, 7
    %v1115 = vsub.s32 %v1112, %v1114
    %v1116 = vrot.slane %v1109, %v1115
    %v1118 = vsub.f32 %v957, %v1116
    %v1119 = vmul.f32 %v909, %v1068
    %v1120 = vmul.f32 %v911, %v1072
    %v1121 = vmul.f32 %v950, %v1076
    %v1122 = vmul.f32 %v952, %v1080
    %v1124 = vlaneseq
    %v1125 = vshrl.u32 %v1124, 7
    %v1126 = vsub.s32 0, %v1125
    %v1127 = vrot.slane %v1118, %v1126
    %v1128 = vlaneseq
    %v1129 = vshrl.u32 %v1128, 7
    %v1130 = vsub.s32 1, %v1129
    %v1131 = vrot.slane %v1118, %v1130
    %v1132 = vlaneseq
    %v1133 = vshrl.u32 %v1132, 7
    %v1134 = vsub.s32 2, %v1133
    %v1135 = vrot.slane %v1118, %v1134
    %v1136 = vlaneseq
    %v1137 = vshrl.u32 %v1136, 7
    %v1138 = vsub.s32 3, %v1137
    %v1139 = vrot.slane %v1118, %v1138
    %v1144 = vadd.f32 %v1119, %v1127
    %v1145 = vadd.f32 %v1120, %v1131
    %v1146 = vadd.f32 %v1121, %v1135
    %v1147 = vadd.f32 %v1122, %v1139
    %vm1148 = vcmp.gt.f32.partialorder %v1144, 0.0
    %vm1149 = vcmp.gt.f32.partialorder %v1145, 0.0
    %vm1150 = vcmp.gt.f32.partialorder %v1146, 0.0
    %vm1151 = vcmp.gt.f32.partialorder %v1147, 0.0
    %v1152 = vmul.f32 %v1144, 0.2
    %v1153 = vmul.f32 %v1145, 0.2
    %v1154 = vmul.f32 %v1146, 0.2
    %v1155 = vmul.f32 %v1147, 0.2
    %v1156 = vsel %vm1148, %v1144, %v1152
    %v1157 = vsel %vm1149, %v1145, %v1153
    %v1158 = vsel %vm1150, %v1146, %v1154
    %v1159 = vsel %vm1151, %v1147, %v1155
    %v1160 = vpack.c.bf16 %v1156, %v1156
    %v1161 = vpack.c.bf16 %v1157, %v1157
    %v1162 = vpack.c.bf16 %v1158, %v1158
    %v1163 = vpack.c.bf16 %v1159, %v1159
    %v1164 = vld [vmem:[#allocation10] sm:$0xff]
    %v1165 = vld [vmem:[#allocation10 + $0x8] sm:$0xff]
    %v1166 = vld [vmem:[#allocation10 + $0x10] sm:$0xff]
    %v1167 = vld [vmem:[#allocation10 + $0x18] sm:$0xff]
    %v1168 = vld [vmem:[#allocation10 + $0x20] sm:$0xff]
    %v1169 = vld [vmem:[#allocation10 + $0x28] sm:$0xff]
    %v1170 = vld [vmem:[#allocation10 + $0x30] sm:$0xff]
    %v1171 = vld [vmem:[#allocation10 + $0x38] sm:$0xff]
    %v1172 = vld [vmem:[#allocation10 + $0x40] sm:$0xff]
    %v1173 = vld [vmem:[#allocation10 + $0x48] sm:$0xff]
    %v1174 = vld [vmem:[#allocation10 + $0x50] sm:$0xff]
    %v1175 = vld [vmem:[#allocation10 + $0x58] sm:$0xff]
    %v1176 = vld [vmem:[#allocation10 + $0x60] sm:$0xff]
    %v1177 = vld [vmem:[#allocation10 + $0x68] sm:$0xff]
    %v1178 = vld [vmem:[#allocation10 + $0x70] sm:$0xff]
    %v1179 = vld [vmem:[#allocation10 + $0x78] sm:$0xff]
    %v1180 = vld [vmem:[#allocation10 + $0x80] sm:$0xff]
    %v1181 = vld [vmem:[#allocation10 + $0x88] sm:$0xff]
    %v1182 = vld [vmem:[#allocation10 + $0x90] sm:$0xff]
    %v1183 = vld [vmem:[#allocation10 + $0x98] sm:$0xff]
    %v1184 = vld [vmem:[#allocation10 + $0xa0] sm:$0xff]
    %v1185 = vld [vmem:[#allocation10 + $0xa8] sm:$0xff]
    %v1186 = vld [vmem:[#allocation10 + $0xb0] sm:$0xff]
    %v1187 = vld [vmem:[#allocation10 + $0xb8] sm:$0xff]
    %v1188 = vld [vmem:[#allocation10 + $0xc0] sm:$0xff]
    %v1189 = vld [vmem:[#allocation10 + $0xc8] sm:$0xff]
    %v1190 = vld [vmem:[#allocation10 + $0xd0] sm:$0xff]
    %v1191 = vld [vmem:[#allocation10 + $0xd8] sm:$0xff]
    %v1192 = vld [vmem:[#allocation10 + $0xe0] sm:$0xff]
    %v1193 = vld [vmem:[#allocation10 + $0xe8] sm:$0xff]
    %v1194 = vld [vmem:[#allocation10 + $0xf0] sm:$0xff]
    %v1195 = vld [vmem:[#allocation10 + $0xf8] sm:$0xff]
    %v1196 = vld [vmem:[#allocation10 + $0x100] sm:$0xff]
    %v1197 = vld [vmem:[#allocation10 + $0x108] sm:$0xff]
    %v1198 = vld [vmem:[#allocation10 + $0x110] sm:$0xff]
    %v1199 = vld [vmem:[#allocation10 + $0x118] sm:$0xff]
    %v1200 = vld [vmem:[#allocation10 + $0x120] sm:$0xff]
    %v1201 = vld [vmem:[#allocation10 + $0x128] sm:$0xff]
    %v1202 = vld [vmem:[#allocation10 + $0x130] sm:$0xff]
    %v1203 = vld [vmem:[#allocation10 + $0x138] sm:$0xff]
    %v1204 = vld [vmem:[#allocation10 + $0x140] sm:$0xff]
    %v1205 = vld [vmem:[#allocation10 + $0x148] sm:$0xff]
    %v1206 = vld [vmem:[#allocation10 + $0x150] sm:$0xff]
    %v1207 = vld [vmem:[#allocation10 + $0x158] sm:$0xff]
    %v1208 = vld [vmem:[#allocation10 + $0x160] sm:$0xff]
    %v1209 = vld [vmem:[#allocation10 + $0x168] sm:$0xff]
    %v1210 = vld [vmem:[#allocation10 + $0x170] sm:$0xff]
    %v1211 = vld [vmem:[#allocation10 + $0x178] sm:$0xff]
    %v1212 = vld [vmem:[#allocation10 + $0x180] sm:$0xff]
    %v1213 = vld [vmem:[#allocation10 + $0x188] sm:$0xff]
    %v1214 = vld [vmem:[#allocation10 + $0x190] sm:$0xff]
    %v1215 = vld [vmem:[#allocation10 + $0x198] sm:$0xff]
    %v1216 = vld [vmem:[#allocation10 + $0x1a0] sm:$0xff]
    %v1217 = vld [vmem:[#allocation10 + $0x1a8] sm:$0xff]
    %v1218 = vld [vmem:[#allocation10 + $0x1b0] sm:$0xff]
    %v1219 = vld [vmem:[#allocation10 + $0x1b8] sm:$0xff]
    %v1220 = vld [vmem:[#allocation10 + $0x1c0] sm:$0xff]
    %v1221 = vld [vmem:[#allocation10 + $0x1c8] sm:$0xff]
    %v1222 = vld [vmem:[#allocation10 + $0x1d0] sm:$0xff]
    %v1223 = vld [vmem:[#allocation10 + $0x1d8] sm:$0xff]
    %v1224 = vld [vmem:[#allocation10 + $0x1e0] sm:$0xff]
    %v1225 = vld [vmem:[#allocation10 + $0x1e8] sm:$0xff]
    %v1226 = vld [vmem:[#allocation10 + $0x1f0] sm:$0xff]
    %v1227 = vld [vmem:[#allocation10 + $0x1f8] sm:$0xff]
    %v1228 = vld [vmem:[#allocation10 + $0x200] sm:$0xff]
    %v1229 = vld [vmem:[#allocation10 + $0x208] sm:$0xff]
    %v1230 = vld [vmem:[#allocation10 + $0x210] sm:$0xff]
    %v1231 = vld [vmem:[#allocation10 + $0x218] sm:$0xff]
    %v1232 = vld [vmem:[#allocation10 + $0x220] sm:$0xff]
    %v1233 = vld [vmem:[#allocation10 + $0x228] sm:$0xff]
    %v1234 = vld [vmem:[#allocation10 + $0x230] sm:$0xff]
    %v1235 = vld [vmem:[#allocation10 + $0x238] sm:$0xff]
    %v1236 = vld [vmem:[#allocation10 + $0x240] sm:$0xff]
    %v1237 = vld [vmem:[#allocation10 + $0x248] sm:$0xff]
    %v1238 = vld [vmem:[#allocation10 + $0x250] sm:$0xff]
    %v1239 = vld [vmem:[#allocation10 + $0x258] sm:$0xff]
    %v1240 = vld [vmem:[#allocation10 + $0x260] sm:$0xff]
    %v1241 = vld [vmem:[#allocation10 + $0x268] sm:$0xff]
    %v1242 = vld [vmem:[#allocation10 + $0x270] sm:$0xff]
    %v1243 = vld [vmem:[#allocation10 + $0x278] sm:$0xff]
    %v1244 = vld [vmem:[#allocation10 + $0x280] sm:$0xff]
    %v1245 = vld [vmem:[#allocation10 + $0x288] sm:$0xff]
    %v1246 = vld [vmem:[#allocation10 + $0x290] sm:$0xff]
    %v1247 = vld [vmem:[#allocation10 + $0x298] sm:$0xff]
    %v1248 = vld [vmem:[#allocation10 + $0x2a0] sm:$0xff]
    %v1249 = vld [vmem:[#allocation10 + $0x2a8] sm:$0xff]
    %v1250 = vld [vmem:[#allocation10 + $0x2b0] sm:$0xff]
    %v1251 = vld [vmem:[#allocation10 + $0x2b8] sm:$0xff]
    %v1252 = vld [vmem:[#allocation10 + $0x2c0] sm:$0xff]
    %v1253 = vld [vmem:[#allocation10 + $0x2c8] sm:$0xff]
    %v1254 = vld [vmem:[#allocation10 + $0x2d0] sm:$0xff]
    %v1255 = vld [vmem:[#allocation10 + $0x2d8] sm:$0xff]
    %v1256 = vld [vmem:[#allocation10 + $0x2e0] sm:$0xff]
    %v1257 = vld [vmem:[#allocation10 + $0x2e8] sm:$0xff]
    %v1258 = vld [vmem:[#allocation10 + $0x2f0] sm:$0xff]
    %v1259 = vld [vmem:[#allocation10 + $0x2f8] sm:$0xff]
    %v1260 = vld [vmem:[#allocation10 + $0x300] sm:$0xff]
    %v1261 = vld [vmem:[#allocation10 + $0x308] sm:$0xff]
    %v1262 = vld [vmem:[#allocation10 + $0x310] sm:$0xff]
    %v1263 = vld [vmem:[#allocation10 + $0x318] sm:$0xff]
    %v1264 = vld [vmem:[#allocation10 + $0x320] sm:$0xff]
    %v1265 = vld [vmem:[#allocation10 + $0x328] sm:$0xff]
    %v1266 = vld [vmem:[#allocation10 + $0x330] sm:$0xff]
    %v1267 = vld [vmem:[#allocation10 + $0x338] sm:$0xff]
    %v1268 = vld [vmem:[#allocation10 + $0x340] sm:$0xff]
    %v1269 = vld [vmem:[#allocation10 + $0x348] sm:$0xff]
    %v1270 = vld [vmem:[#allocation10 + $0x350] sm:$0xff]
    %v1271 = vld [vmem:[#allocation10 + $0x358] sm:$0xff]
    %v1272 = vld [vmem:[#allocation10 + $0x360] sm:$0xff]
    %v1273 = vld [vmem:[#allocation10 + $0x368] sm:$0xff]
    %v1274 = vld [vmem:[#allocation10 + $0x370] sm:$0xff]
    %v1275 = vld [vmem:[#allocation10 + $0x378] sm:$0xff]
    %v1276 = vld [vmem:[#allocation10 + $0x380] sm:$0xff]
    %v1277 = vld [vmem:[#allocation10 + $0x388] sm:$0xff]
    %v1278 = vld [vmem:[#allocation10 + $0x390] sm:$0xff]
    %v1279 = vld [vmem:[#allocation10 + $0x398] sm:$0xff]
    %v1280 = vld [vmem:[#allocation10 + $0x3a0] sm:$0xff]
    %v1281 = vld [vmem:[#allocation10 + $0x3a8] sm:$0xff]
    %v1282 = vld [vmem:[#allocation10 + $0x3b0] sm:$0xff]
    %v1283 = vld [vmem:[#allocation10 + $0x3b8] sm:$0xff]
    %v1284 = vld [vmem:[#allocation10 + $0x3c0] sm:$0xff]
    %v1285 = vld [vmem:[#allocation10 + $0x3c8] sm:$0xff]
    %v1286 = vld [vmem:[#allocation10 + $0x3d0] sm:$0xff]
    %v1287 = vld [vmem:[#allocation10 + $0x3d8] sm:$0xff]
    %v1288 = vld [vmem:[#allocation10 + $0x3e0] sm:$0xff]
    %v1289 = vld [vmem:[#allocation10 + $0x3e8] sm:$0xff]
    %v1290 = vld [vmem:[#allocation10 + $0x3f0] sm:$0xff]
    %v1291 = vld [vmem:[#allocation10 + $0x3f8] sm:$0xff]
    %v1292 = vld [vmem:[#allocation10 + $0x400] sm:$0xff]
    %v1293 = vld [vmem:[#allocation10 + $0x408] sm:$0xff]
    %v1294 = vld [vmem:[#allocation10 + $0x410] sm:$0xff]
    %v1295 = vld [vmem:[#allocation10 + $0x418] sm:$0xff]
    %v1296 = vld [vmem:[#allocation10 + $0x420] sm:$0xff]
    %v1297 = vld [vmem:[#allocation10 + $0x428] sm:$0xff]
    %v1298 = vld [vmem:[#allocation10 + $0x430] sm:$0xff]
    %v1299 = vld [vmem:[#allocation10 + $0x438] sm:$0xff]
    %v1300 = vld [vmem:[#allocation10 + $0x440] sm:$0xff]
    %v1301 = vld [vmem:[#allocation10 + $0x448] sm:$0xff]
    %v1302 = vld [vmem:[#allocation10 + $0x450] sm:$0xff]
    %v1303 = vld [vmem:[#allocation10 + $0x458] sm:$0xff]
    %v1304 = vld [vmem:[#allocation10 + $0x460] sm:$0xff]
    %v1305 = vld [vmem:[#allocation10 + $0x468] sm:$0xff]
    %v1306 = vld [vmem:[#allocation10 + $0x470] sm:$0xff]
    %v1307 = vld [vmem:[#allocation10 + $0x478] sm:$0xff]
    %v1308 = vld [vmem:[#allocation10 + $0x480] sm:$0xff]
    %v1309 = vld [vmem:[#allocation10 + $0x488] sm:$0xff]
    %v1310 = vld [vmem:[#allocation10 + $0x490] sm:$0xff]
    %v1311 = vld [vmem:[#allocation10 + $0x498] sm:$0xff]
    %v1312 = vld [vmem:[#allocation10 + $0x4a0] sm:$0xff]
    %v1313 = vld [vmem:[#allocation10 + $0x4a8] sm:$0xff]
    %v1314 = vld [vmem:[#allocation10 + $0x4b0] sm:$0xff]
    %v1315 = vld [vmem:[#allocation10 + $0x4b8] sm:$0xff]
    %v1316 = vld [vmem:[#allocation10 + $0x4c0] sm:$0xff]
    %v1317 = vld [vmem:[#allocation10 + $0x4c8] sm:$0xff]
    %v1318 = vld [vmem:[#allocation10 + $0x4d0] sm:$0xff]
    %v1319 = vld [vmem:[#allocation10 + $0x4d8] sm:$0xff]
    %v1320 = vld [vmem:[#allocation10 + $0x4e0] sm:$0xff]
    %v1321 = vld [vmem:[#allocation10 + $0x4e8] sm:$0xff]
    %v1322 = vld [vmem:[#allocation10 + $0x4f0] sm:$0xff]
    %v1323 = vld [vmem:[#allocation10 + $0x4f8] sm:$0xff]
    %v1324 = vld [vmem:[#allocation10 + $0x500] sm:$0xff]
    %v1325 = vld [vmem:[#allocation10 + $0x508] sm:$0xff]
    %v1326 = vld [vmem:[#allocation10 + $0x510] sm:$0xff]
    %v1327 = vld [vmem:[#allocation10 + $0x518] sm:$0xff]
    %v1328 = vld [vmem:[#allocation10 + $0x520] sm:$0xff]
    %v1329 = vld [vmem:[#allocation10 + $0x528] sm:$0xff]
    %v1330 = vld [vmem:[#allocation10 + $0x530] sm:$0xff]
    %v1331 = vld [vmem:[#allocation10 + $0x538] sm:$0xff]
    %v1332 = vld [vmem:[#allocation10 + $0x540] sm:$0xff]
    %v1333 = vld [vmem:[#allocation10 + $0x548] sm:$0xff]
    %v1334 = vld [vmem:[#allocation10 + $0x550] sm:$0xff]
    %v1335 = vld [vmem:[#allocation10 + $0x558] sm:$0xff]
    %v1336 = vld [vmem:[#allocation10 + $0x560] sm:$0xff]
    %v1337 = vld [vmem:[#allocation10 + $0x568] sm:$0xff]
    %v1338 = vld [vmem:[#allocation10 + $0x570] sm:$0xff]
    %v1339 = vld [vmem:[#allocation10 + $0x578] sm:$0xff]
    %v1340 = vld [vmem:[#allocation10 + $0x580] sm:$0xff]
    %v1341 = vld [vmem:[#allocation10 + $0x588] sm:$0xff]
    %v1342 = vld [vmem:[#allocation10 + $0x590] sm:$0xff]
    %v1343 = vld [vmem:[#allocation10 + $0x598] sm:$0xff]
    %v1344 = vld [vmem:[#allocation10 + $0x5a0] sm:$0xff]
    %v1345 = vld [vmem:[#allocation10 + $0x5a8] sm:$0xff]
    %v1346 = vld [vmem:[#allocation10 + $0x5b0] sm:$0xff]
    %v1347 = vld [vmem:[#allocation10 + $0x5b8] sm:$0xff]
    %v1348 = vld [vmem:[#allocation10 + $0x5c0] sm:$0xff]
    %v1349 = vld [vmem:[#allocation10 + $0x5c8] sm:$0xff]
    %v1350 = vld [vmem:[#allocation10 + $0x5d0] sm:$0xff]
    %v1351 = vld [vmem:[#allocation10 + $0x5d8] sm:$0xff]
    %v1352 = vld [vmem:[#allocation10 + $0x5e0] sm:$0xff]
    %v1353 = vld [vmem:[#allocation10 + $0x5e8] sm:$0xff]
    %v1354 = vld [vmem:[#allocation10 + $0x5f0] sm:$0xff]
    %v1355 = vld [vmem:[#allocation10 + $0x5f8] sm:$0xff]
    %v1356 = vld [vmem:[#allocation10 + $0x600] sm:$0xff]
    %v1357 = vld [vmem:[#allocation10 + $0x608] sm:$0xff]
    %v1358 = vld [vmem:[#allocation10 + $0x610] sm:$0xff]
    %v1359 = vld [vmem:[#allocation10 + $0x618] sm:$0xff]
    %v1360 = vld [vmem:[#allocation10 + $0x620] sm:$0xff]
    %v1361 = vld [vmem:[#allocation10 + $0x628] sm:$0xff]
    %v1362 = vld [vmem:[#allocation10 + $0x630] sm:$0xff]
    %v1363 = vld [vmem:[#allocation10 + $0x638] sm:$0xff]
    %v1364 = vld [vmem:[#allocation10 + $0x640] sm:$0xff]
    %v1365 = vld [vmem:[#allocation10 + $0x648] sm:$0xff]
    %v1366 = vld [vmem:[#allocation10 + $0x650] sm:$0xff]
    %v1367 = vld [vmem:[#allocation10 + $0x658] sm:$0xff]
    %v1368 = vld [vmem:[#allocation10 + $0x660] sm:$0xff]
    %v1369 = vld [vmem:[#allocation10 + $0x668] sm:$0xff]
    %v1370 = vld [vmem:[#allocation10 + $0x670] sm:$0xff]
    %v1371 = vld [vmem:[#allocation10 + $0x678] sm:$0xff]
    %v1372 = vld [vmem:[#allocation10 + $0x680] sm:$0xff]
    %v1373 = vld [vmem:[#allocation10 + $0x688] sm:$0xff]
    %v1374 = vld [vmem:[#allocation10 + $0x690] sm:$0xff]
    %v1375 = vld [vmem:[#allocation10 + $0x698] sm:$0xff]
    %v1376 = vld [vmem:[#allocation10 + $0x6a0] sm:$0xff]
    %v1377 = vld [vmem:[#allocation10 + $0x6a8] sm:$0xff]
    %v1378 = vld [vmem:[#allocation10 + $0x6b0] sm:$0xff]
    %v1379 = vld [vmem:[#allocation10 + $0x6b8] sm:$0xff]
    %v1380 = vld [vmem:[#allocation10 + $0x6c0] sm:$0xff]
    %v1381 = vld [vmem:[#allocation10 + $0x6c8] sm:$0xff]
    %v1382 = vld [vmem:[#allocation10 + $0x6d0] sm:$0xff]
    %v1383 = vld [vmem:[#allocation10 + $0x6d8] sm:$0xff]
    %v1384 = vld [vmem:[#allocation10 + $0x6e0] sm:$0xff]
    %v1385 = vld [vmem:[#allocation10 + $0x6e8] sm:$0xff]
    %v1386 = vld [vmem:[#allocation10 + $0x6f0] sm:$0xff]
    %v1387 = vld [vmem:[#allocation10 + $0x6f8] sm:$0xff]
    %v1388 = vld [vmem:[#allocation10 + $0x700] sm:$0xff]
    %v1389 = vld [vmem:[#allocation10 + $0x708] sm:$0xff]
    %v1390 = vld [vmem:[#allocation10 + $0x710] sm:$0xff]
    %v1391 = vld [vmem:[#allocation10 + $0x718] sm:$0xff]
    %v1392 = vld [vmem:[#allocation10 + $0x720] sm:$0xff]
    %v1393 = vld [vmem:[#allocation10 + $0x728] sm:$0xff]
    %v1394 = vld [vmem:[#allocation10 + $0x730] sm:$0xff]
    %v1395 = vld [vmem:[#allocation10 + $0x738] sm:$0xff]
    %v1396 = vld [vmem:[#allocation10 + $0x740] sm:$0xff]
    %v1397 = vld [vmem:[#allocation10 + $0x748] sm:$0xff]
    %v1398 = vld [vmem:[#allocation10 + $0x750] sm:$0xff]
    %v1399 = vld [vmem:[#allocation10 + $0x758] sm:$0xff]
    %v1400 = vld [vmem:[#allocation10 + $0x760] sm:$0xff]
    %v1401 = vld [vmem:[#allocation10 + $0x768] sm:$0xff]
    %v1402 = vld [vmem:[#allocation10 + $0x770] sm:$0xff]
    %v1403 = vld [vmem:[#allocation10 + $0x778] sm:$0xff]
    %v1404 = vld [vmem:[#allocation10 + $0x780] sm:$0xff]
    %v1405 = vld [vmem:[#allocation10 + $0x788] sm:$0xff]
    %v1406 = vld [vmem:[#allocation10 + $0x790] sm:$0xff]
    %v1407 = vld [vmem:[#allocation10 + $0x798] sm:$0xff]
    %v1408 = vld [vmem:[#allocation10 + $0x7a0] sm:$0xff]
    %v1409 = vld [vmem:[#allocation10 + $0x7a8] sm:$0xff]
    %v1410 = vld [vmem:[#allocation10 + $0x7b0] sm:$0xff]
    %v1411 = vld [vmem:[#allocation10 + $0x7b8] sm:$0xff]
    %v1412 = vld [vmem:[#allocation10 + $0x7c0] sm:$0xff]
    %v1413 = vld [vmem:[#allocation10 + $0x7c8] sm:$0xff]
    %v1414 = vld [vmem:[#allocation10 + $0x7d0] sm:$0xff]
    %v1415 = vld [vmem:[#allocation10 + $0x7d8] sm:$0xff]
    %v1416 = vld [vmem:[#allocation10 + $0x7e0] sm:$0xff]
    %v1417 = vld [vmem:[#allocation10 + $0x7e8] sm:$0xff]
    %v1418 = vld [vmem:[#allocation10 + $0x7f0] sm:$0xff]
    %v1419 = vld [vmem:[#allocation10 + $0x7f8] sm:$0xff]
    %v1676 = vunpack.c.l.b16 %v1164
    %v1677 = vunpack.c.h.b16 %v1164
    %v1678 = vunpack.c.l.b16 %v1165
    %v1679 = vunpack.c.h.b16 %v1165
    %v1680 = vunpack.c.l.b16 %v1166
    %v1681 = vunpack.c.h.b16 %v1166
    %v1682 = vunpack.c.l.b16 %v1167
    %v1683 = vunpack.c.h.b16 %v1167
    %v1684 = vunpack.c.l.b16 %v1168
    %v1685 = vunpack.c.h.b16 %v1168
    %v1686 = vunpack.c.l.b16 %v1169
    %v1687 = vunpack.c.h.b16 %v1169
    %v1688 = vunpack.c.l.b16 %v1170
    %v1689 = vunpack.c.h.b16 %v1170
    %v1690 = vunpack.c.l.b16 %v1171
    %v1691 = vunpack.c.h.b16 %v1171
    %v1692 = vunpack.c.l.b16 %v1172
    %v1693 = vunpack.c.h.b16 %v1172
    %v1694 = vunpack.c.l.b16 %v1173
    %v1695 = vunpack.c.h.b16 %v1173
    %v1696 = vunpack.c.l.b16 %v1174
    %v1697 = vunpack.c.h.b16 %v1174
    %v1698 = vunpack.c.l.b16 %v1175
    %v1699 = vunpack.c.h.b16 %v1175
    %v1700 = vunpack.c.l.b16 %v1176
    %v1701 = vunpack.c.h.b16 %v1176
    %v1702 = vunpack.c.l.b16 %v1177
    %v1703 = vunpack.c.h.b16 %v1177
    %v1704 = vunpack.c.l.b16 %v1178
    %v1705 = vunpack.c.h.b16 %v1178
    %v1706 = vunpack.c.l.b16 %v1179
    %v1707 = vunpack.c.h.b16 %v1179
    %v1708 = vunpack.c.l.b16 %v1180
    %v1709 = vunpack.c.h.b16 %v1180
    %v1710 = vunpack.c.l.b16 %v1181
    %v1711 = vunpack.c.h.b16 %v1181
    %v1712 = vunpack.c.l.b16 %v1182
    %v1713 = vunpack.c.h.b16 %v1182
    %v1714 = vunpack.c.l.b16 %v1183
    %v1715 = vunpack.c.h.b16 %v1183
    %v1716 = vunpack.c.l.b16 %v1184
    %v1717 = vunpack.c.h.b16 %v1184
    %v1718 = vunpack.c.l.b16 %v1185
    %v1719 = vunpack.c.h.b16 %v1185
    %v1720 = vunpack.c.l.b16 %v1186
    %v1721 = vunpack.c.h.b16 %v1186
    %v1722 = vunpack.c.l.b16 %v1187
    %v1723 = vunpack.c.h.b16 %v1187
    %v1724 = vunpack.c.l.b16 %v1188
    %v1725 = vunpack.c.h.b16 %v1188
    %v1726 = vunpack.c.l.b16 %v1189
    %v1727 = vunpack.c.h.b16 %v1189
    %v1728 = vunpack.c.l.b16 %v1190
    %v1729 = vunpack.c.h.b16 %v1190
    %v1730 = vunpack.c.l.b16 %v1191
    %v1731 = vunpack.c.h.b16 %v1191
    %v1732 = vunpack.c.l.b16 %v1192
    %v1733 = vunpack.c.h.b16 %v1192
    %v1734 = vunpack.c.l.b16 %v1193
    %v1735 = vunpack.c.h.b16 %v1193
    %v1736 = vunpack.c.l.b16 %v1194
    %v1737 = vunpack.c.h.b16 %v1194
    %v1738 = vunpack.c.l.b16 %v1195
    %v1739 = vunpack.c.h.b16 %v1195
    %v1740 = vunpack.c.l.b16 %v1196
    %v1741 = vunpack.c.h.b16 %v1196
    %v1742 = vunpack.c.l.b16 %v1197
    %v1743 = vunpack.c.h.b16 %v1197
    %v1744 = vunpack.c.l.b16 %v1198
    %v1745 = vunpack.c.h.b16 %v1198
    %v1746 = vunpack.c.l.b16 %v1199
    %v1747 = vunpack.c.h.b16 %v1199
    %v1748 = vunpack.c.l.b16 %v1200
    %v1749 = vunpack.c.h.b16 %v1200
    %v1750 = vunpack.c.l.b16 %v1201
    %v1751 = vunpack.c.h.b16 %v1201
    %v1752 = vunpack.c.l.b16 %v1202
    %v1753 = vunpack.c.h.b16 %v1202
    %v1754 = vunpack.c.l.b16 %v1203
    %v1755 = vunpack.c.h.b16 %v1203
    %v1756 = vunpack.c.l.b16 %v1204
    %v1757 = vunpack.c.h.b16 %v1204
    %v1758 = vunpack.c.l.b16 %v1205
    %v1759 = vunpack.c.h.b16 %v1205
    %v1760 = vunpack.c.l.b16 %v1206
    %v1761 = vunpack.c.h.b16 %v1206
    %v1762 = vunpack.c.l.b16 %v1207
    %v1763 = vunpack.c.h.b16 %v1207
    %v1764 = vunpack.c.l.b16 %v1208
    %v1765 = vunpack.c.h.b16 %v1208
    %v1766 = vunpack.c.l.b16 %v1209
    %v1767 = vunpack.c.h.b16 %v1209
    %v1768 = vunpack.c.l.b16 %v1210
    %v1769 = vunpack.c.h.b16 %v1210
    %v1770 = vunpack.c.l.b16 %v1211
    %v1771 = vunpack.c.h.b16 %v1211
    %v1772 = vunpack.c.l.b16 %v1212
    %v1773 = vunpack.c.h.b16 %v1212
    %v1774 = vunpack.c.l.b16 %v1213
    %v1775 = vunpack.c.h.b16 %v1213
    %v1776 = vunpack.c.l.b16 %v1214
    %v1777 = vunpack.c.h.b16 %v1214
    %v1778 = vunpack.c.l.b16 %v1215
    %v1779 = vunpack.c.h.b16 %v1215
    %v1780 = vunpack.c.l.b16 %v1216
    %v1781 = vunpack.c.h.b16 %v1216
    %v1782 = vunpack.c.l.b16 %v1217
    %v1783 = vunpack.c.h.b16 %v1217
    %v1784 = vunpack.c.l.b16 %v1218
    %v1785 = vunpack.c.h.b16 %v1218
    %v1786 = vunpack.c.l.b16 %v1219
    %v1787 = vunpack.c.h.b16 %v1219
    %v1788 = vunpack.c.l.b16 %v1220
    %v1789 = vunpack.c.h.b16 %v1220
    %v1790 = vunpack.c.l.b16 %v1221
    %v1791 = vunpack.c.h.b16 %v1221
    %v1792 = vunpack.c.l.b16 %v1222
    %v1793 = vunpack.c.h.b16 %v1222
    %v1794 = vunpack.c.l.b16 %v1223
    %v1795 = vunpack.c.h.b16 %v1223
    %v1796 = vunpack.c.l.b16 %v1224
    %v1797 = vunpack.c.h.b16 %v1224
    %v1798 = vunpack.c.l.b16 %v1225
    %v1799 = vunpack.c.h.b16 %v1225
    %v1800 = vunpack.c.l.b16 %v1226
    %v1801 = vunpack.c.h.b16 %v1226
    %v1802 = vunpack.c.l.b16 %v1227
    %v1803 = vunpack.c.h.b16 %v1227
    %v1804 = vunpack.c.l.b16 %v1228
    %v1805 = vunpack.c.h.b16 %v1228
    %v1806 = vunpack.c.l.b16 %v1229
    %v1807 = vunpack.c.h.b16 %v1229
    %v1808 = vunpack.c.l.b16 %v1230
    %v1809 = vunpack.c.h.b16 %v1230
    %v1810 = vunpack.c.l.b16 %v1231
    %v1811 = vunpack.c.h.b16 %v1231
    %v1812 = vunpack.c.l.b16 %v1232
    %v1813 = vunpack.c.h.b16 %v1232
    %v1814 = vunpack.c.l.b16 %v1233
    %v1815 = vunpack.c.h.b16 %v1233
    %v1816 = vunpack.c.l.b16 %v1234
    %v1817 = vunpack.c.h.b16 %v1234
    %v1818 = vunpack.c.l.b16 %v1235
    %v1819 = vunpack.c.h.b16 %v1235
    %v1820 = vunpack.c.l.b16 %v1236
    %v1821 = vunpack.c.h.b16 %v1236
    %v1822 = vunpack.c.l.b16 %v1237
    %v1823 = vunpack.c.h.b16 %v1237
    %v1824 = vunpack.c.l.b16 %v1238
    %v1825 = vunpack.c.h.b16 %v1238
    %v1826 = vunpack.c.l.b16 %v1239
    %v1827 = vunpack.c.h.b16 %v1239
    %v1828 = vunpack.c.l.b16 %v1240
    %v1829 = vunpack.c.h.b16 %v1240
    %v1830 = vunpack.c.l.b16 %v1241
    %v1831 = vunpack.c.h.b16 %v1241
    %v1832 = vunpack.c.l.b16 %v1242
    %v1833 = vunpack.c.h.b16 %v1242
    %v1834 = vunpack.c.l.b16 %v1243
    %v1835 = vunpack.c.h.b16 %v1243
    %v1836 = vunpack.c.l.b16 %v1244
    %v1837 = vunpack.c.h.b16 %v1244
    %v1838 = vunpack.c.l.b16 %v1245
    %v1839 = vunpack.c.h.b16 %v1245
    %v1840 = vunpack.c.l.b16 %v1246
    %v1841 = vunpack.c.h.b16 %v1246
    %v1842 = vunpack.c.l.b16 %v1247
    %v1843 = vunpack.c.h.b16 %v1247
    %v1844 = vunpack.c.l.b16 %v1248
    %v1845 = vunpack.c.h.b16 %v1248
    %v1846 = vunpack.c.l.b16 %v1249
    %v1847 = vunpack.c.h.b16 %v1249
    %v1848 = vunpack.c.l.b16 %v1250
    %v1849 = vunpack.c.h.b16 %v1250
    %v1850 = vunpack.c.l.b16 %v1251
    %v1851 = vunpack.c.h.b16 %v1251
    %v1852 = vunpack.c.l.b16 %v1252
    %v1853 = vunpack.c.h.b16 %v1252
    %v1854 = vunpack.c.l.b16 %v1253
    %v1855 = vunpack.c.h.b16 %v1253
    %v1856 = vunpack.c.l.b16 %v1254
    %v1857 = vunpack.c.h.b16 %v1254
    %v1858 = vunpack.c.l.b16 %v1255
    %v1859 = vunpack.c.h.b16 %v1255
    %v1860 = vunpack.c.l.b16 %v1256
    %v1861 = vunpack.c.h.b16 %v1256
    %v1862 = vunpack.c.l.b16 %v1257
    %v1863 = vunpack.c.h.b16 %v1257
    %v1864 = vunpack.c.l.b16 %v1258
    %v1865 = vunpack.c.h.b16 %v1258
    %v1866 = vunpack.c.l.b16 %v1259
    %v1867 = vunpack.c.h.b16 %v1259
    %v1868 = vunpack.c.l.b16 %v1260
    %v1869 = vunpack.c.h.b16 %v1260
    %v1870 = vunpack.c.l.b16 %v1261
    %v1871 = vunpack.c.h.b16 %v1261
    %v1872 = vunpack.c.l.b16 %v1262
    %v1873 = vunpack.c.h.b16 %v1262
    %v1874 = vunpack.c.l.b16 %v1263
    %v1875 = vunpack.c.h.b16 %v1263
    %v1876 = vunpack.c.l.b16 %v1264
    %v1877 = vunpack.c.h.b16 %v1264
    %v1878 = vunpack.c.l.b16 %v1265
    %v1879 = vunpack.c.h.b16 %v1265
    %v1880 = vunpack.c.l.b16 %v1266
    %v1881 = vunpack.c.h.b16 %v1266
    %v1882 = vunpack.c.l.b16 %v1267
    %v1883 = vunpack.c.h.b16 %v1267
    %v1884 = vunpack.c.l.b16 %v1268
    %v1885 = vunpack.c.h.b16 %v1268
    %v1886 = vunpack.c.l.b16 %v1269
    %v1887 = vunpack.c.h.b16 %v1269
    %v1888 = vunpack.c.l.b16 %v1270
    %v1889 = vunpack.c.h.b16 %v1270
    %v1890 = vunpack.c.l.b16 %v1271
    %v1891 = vunpack.c.h.b16 %v1271
    %v1892 = vunpack.c.l.b16 %v1272
    %v1893 = vunpack.c.h.b16 %v1272
    %v1894 = vunpack.c.l.b16 %v1273
    %v1895 = vunpack.c.h.b16 %v1273
    %v1896 = vunpack.c.l.b16 %v1274
    %v1897 = vunpack.c.h.b16 %v1274
    %v1898 = vunpack.c.l.b16 %v1275
    %v1899 = vunpack.c.h.b16 %v1275
    %v1900 = vunpack.c.l.b16 %v1276
    %v1901 = vunpack.c.h.b16 %v1276
    %v1902 = vunpack.c.l.b16 %v1277
    %v1903 = vunpack.c.h.b16 %v1277
    %v1904 = vunpack.c.l.b16 %v1278
    %v1905 = vunpack.c.h.b16 %v1278
    %v1906 = vunpack.c.l.b16 %v1279
    %v1907 = vunpack.c.h.b16 %v1279
    %v1908 = vunpack.c.l.b16 %v1280
    %v1909 = vunpack.c.h.b16 %v1280
    %v1910 = vunpack.c.l.b16 %v1281
    %v1911 = vunpack.c.h.b16 %v1281
    %v1912 = vunpack.c.l.b16 %v1282
    %v1913 = vunpack.c.h.b16 %v1282
    %v1914 = vunpack.c.l.b16 %v1283
    %v1915 = vunpack.c.h.b16 %v1283
    %v1916 = vunpack.c.l.b16 %v1284
    %v1917 = vunpack.c.h.b16 %v1284
    %v1918 = vunpack.c.l.b16 %v1285
    %v1919 = vunpack.c.h.b16 %v1285
    %v1920 = vunpack.c.l.b16 %v1286
    %v1921 = vunpack.c.h.b16 %v1286
    %v1922 = vunpack.c.l.b16 %v1287
    %v1923 = vunpack.c.h.b16 %v1287
    %v1924 = vunpack.c.l.b16 %v1288
    %v1925 = vunpack.c.h.b16 %v1288
    %v1926 = vunpack.c.l.b16 %v1289
    %v1927 = vunpack.c.h.b16 %v1289
    %v1928 = vunpack.c.l.b16 %v1290
    %v1929 = vunpack.c.h.b16 %v1290
    %v1930 = vunpack.c.l.b16 %v1291
    %v1931 = vunpack.c.h.b16 %v1291
    %v1932 = vunpack.c.l.b16 %v1292
    %v1933 = vunpack.c.h.b16 %v1292
    %v1934 = vunpack.c.l.b16 %v1293
    %v1935 = vunpack.c.h.b16 %v1293
    %v1936 = vunpack.c.l.b16 %v1294
    %v1937 = vunpack.c.h.b16 %v1294
    %v1938 = vunpack.c.l.b16 %v1295
    %v1939 = vunpack.c.h.b16 %v1295
    %v1940 = vunpack.c.l.b16 %v1296
    %v1941 = vunpack.c.h.b16 %v1296
    %v1942 = vunpack.c.l.b16 %v1297
    %v1943 = vunpack.c.h.b16 %v1297
    %v1944 = vunpack.c.l.b16 %v1298
    %v1945 = vunpack.c.h.b16 %v1298
    %v1946 = vunpack.c.l.b16 %v1299
    %v1947 = vunpack.c.h.b16 %v1299
    %v1948 = vunpack.c.l.b16 %v1300
    %v1949 = vunpack.c.h.b16 %v1300
    %v1950 = vunpack.c.l.b16 %v1301
    %v1951 = vunpack.c.h.b16 %v1301
    %v1952 = vunpack.c.l.b16 %v1302
    %v1953 = vunpack.c.h.b16 %v1302
    %v1954 = vunpack.c.l.b16 %v1303
    %v1955 = vunpack.c.h.b16 %v1303
    %v1956 = vunpack.c.l.b16 %v1304
    %v1957 = vunpack.c.h.b16 %v1304
    %v1958 = vunpack.c.l.b16 %v1305
    %v1959 = vunpack.c.h.b16 %v1305
    %v1960 = vunpack.c.l.b16 %v1306
    %v1961 = vunpack.c.h.b16 %v1306
    %v1962 = vunpack.c.l.b16 %v1307
    %v1963 = vunpack.c.h.b16 %v1307
    %v1964 = vunpack.c.l.b16 %v1308
    %v1965 = vunpack.c.h.b16 %v1308
    %v1966 = vunpack.c.l.b16 %v1309
    %v1967 = vunpack.c.h.b16 %v1309
    %v1968 = vunpack.c.l.b16 %v1310
    %v1969 = vunpack.c.h.b16 %v1310
    %v1970 = vunpack.c.l.b16 %v1311
    %v1971 = vunpack.c.h.b16 %v1311
    %v1972 = vunpack.c.l.b16 %v1312
    %v1973 = vunpack.c.h.b16 %v1312
    %v1974 = vunpack.c.l.b16 %v1313
    %v1975 = vunpack.c.h.b16 %v1313
    %v1976 = vunpack.c.l.b16 %v1314
    %v1977 = vunpack.c.h.b16 %v1314
    %v1978 = vunpack.c.l.b16 %v1315
    %v1979 = vunpack.c.h.b16 %v1315
    %v1980 = vunpack.c.l.b16 %v1316
    %v1981 = vunpack.c.h.b16 %v1316
    %v1982 = vunpack.c.l.b16 %v1317
    %v1983 = vunpack.c.h.b16 %v1317
    %v1984 = vunpack.c.l.b16 %v1318
    %v1985 = vunpack.c.h.b16 %v1318
    %v1986 = vunpack.c.l.b16 %v1319
    %v1987 = vunpack.c.h.b16 %v1319
    %v1988 = vunpack.c.l.b16 %v1320
    %v1989 = vunpack.c.h.b16 %v1320
    %v1990 = vunpack.c.l.b16 %v1321
    %v1991 = vunpack.c.h.b16 %v1321
    %v1992 = vunpack.c.l.b16 %v1322
    %v1993 = vunpack.c.h.b16 %v1322
    %v1994 = vunpack.c.l.b16 %v1323
    %v1995 = vunpack.c.h.b16 %v1323
    %v1996 = vunpack.c.l.b16 %v1324
    %v1997 = vunpack.c.h.b16 %v1324
    %v1998 = vunpack.c.l.b16 %v1325
    %v1999 = vunpack.c.h.b16 %v1325
    %v2000 = vunpack.c.l.b16 %v1326
    %v2001 = vunpack.c.h.b16 %v1326
    %v2002 = vunpack.c.l.b16 %v1327
    %v2003 = vunpack.c.h.b16 %v1327
    %v2004 = vunpack.c.l.b16 %v1328
    %v2005 = vunpack.c.h.b16 %v1328
    %v2006 = vunpack.c.l.b16 %v1329
    %v2007 = vunpack.c.h.b16 %v1329
    %v2008 = vunpack.c.l.b16 %v1330
    %v2009 = vunpack.c.h.b16 %v1330
    %v2010 = vunpack.c.l.b16 %v1331
    %v2011 = vunpack.c.h.b16 %v1331
    %v2012 = vunpack.c.l.b16 %v1332
    %v2013 = vunpack.c.h.b16 %v1332
    %v2014 = vunpack.c.l.b16 %v1333
    %v2015 = vunpack.c.h.b16 %v1333
    %v2016 = vunpack.c.l.b16 %v1334
    %v2017 = vunpack.c.h.b16 %v1334
    %v2018 = vunpack.c.l.b16 %v1335
    %v2019 = vunpack.c.h.b16 %v1335
    %v2020 = vunpack.c.l.b16 %v1336
    %v2021 = vunpack.c.h.b16 %v1336
    %v2022 = vunpack.c.l.b16 %v1337
    %v2023 = vunpack.c.h.b16 %v1337
    %v2024 = vunpack.c.l.b16 %v1338
    %v2025 = vunpack.c.h.b16 %v1338
    %v2026 = vunpack.c.l.b16 %v1339
    %v2027 = vunpack.c.h.b16 %v1339
    %v2028 = vunpack.c.l.b16 %v1340
    %v2029 = vunpack.c.h.b16 %v1340
    %v2030 = vunpack.c.l.b16 %v1341
    %v2031 = vunpack.c.h.b16 %v1341
    %v2032 = vunpack.c.l.b16 %v1342
    %v2033 = vunpack.c.h.b16 %v1342
    %v2034 = vunpack.c.l.b16 %v1343
    %v2035 = vunpack.c.h.b16 %v1343
    %v2036 = vunpack.c.l.b16 %v1344
    %v2037 = vunpack.c.h.b16 %v1344
    %v2038 = vunpack.c.l.b16 %v1345
    %v2039 = vunpack.c.h.b16 %v1345
    %v2040 = vunpack.c.l.b16 %v1346
    %v2041 = vunpack.c.h.b16 %v1346
    %v2042 = vunpack.c.l.b16 %v1347
    %v2043 = vunpack.c.h.b16 %v1347
    %v2044 = vunpack.c.l.b16 %v1348
    %v2045 = vunpack.c.h.b16 %v1348
    %v2046 = vunpack.c.l.b16 %v1349
    %v2047 = vunpack.c.h.b16 %v1349
    %v2048 = vunpack.c.l.b16 %v1350
    %v2049 = vunpack.c.h.b16 %v1350
    %v2050 = vunpack.c.l.b16 %v1351
    %v2051 = vunpack.c.h.b16 %v1351
    %v2052 = vunpack.c.l.b16 %v1352
    %v2053 = vunpack.c.h.b16 %v1352
    %v2054 = vunpack.c.l.b16 %v1353
    %v2055 = vunpack.c.h.b16 %v1353
    %v2056 = vunpack.c.l.b16 %v1354
    %v2057 = vunpack.c.h.b16 %v1354
    %v2058 = vunpack.c.l.b16 %v1355
    %v2059 = vunpack.c.h.b16 %v1355
    %v2060 = vunpack.c.l.b16 %v1356
    %v2061 = vunpack.c.h.b16 %v1356
    %v2062 = vunpack.c.l.b16 %v1357
    %v2063 = vunpack.c.h.b16 %v1357
    %v2064 = vunpack.c.l.b16 %v1358
    %v2065 = vunpack.c.h.b16 %v1358
    %v2066 = vunpack.c.l.b16 %v1359
    %v2067 = vunpack.c.h.b16 %v1359
    %v2068 = vunpack.c.l.b16 %v1360
    %v2069 = vunpack.c.h.b16 %v1360
    %v2070 = vunpack.c.l.b16 %v1361
    %v2071 = vunpack.c.h.b16 %v1361
    %v2072 = vunpack.c.l.b16 %v1362
    %v2073 = vunpack.c.h.b16 %v1362
    %v2074 = vunpack.c.l.b16 %v1363
    %v2075 = vunpack.c.h.b16 %v1363
    %v2076 = vunpack.c.l.b16 %v1364
    %v2077 = vunpack.c.h.b16 %v1364
    %v2078 = vunpack.c.l.b16 %v1365
    %v2079 = vunpack.c.h.b16 %v1365
    %v2080 = vunpack.c.l.b16 %v1366
    %v2081 = vunpack.c.h.b16 %v1366
    %v2082 = vunpack.c.l.b16 %v1367
    %v2083 = vunpack.c.h.b16 %v1367
    %v2084 = vunpack.c.l.b16 %v1368
    %v2085 = vunpack.c.h.b16 %v1368
    %v2086 = vunpack.c.l.b16 %v1369
    %v2087 = vunpack.c.h.b16 %v1369
    %v2088 = vunpack.c.l.b16 %v1370
    %v2089 = vunpack.c.h.b16 %v1370
    %v2090 = vunpack.c.l.b16 %v1371
    %v2091 = vunpack.c.h.b16 %v1371
    %v2092 = vunpack.c.l.b16 %v1372
    %v2093 = vunpack.c.h.b16 %v1372
    %v2094 = vunpack.c.l.b16 %v1373
    %v2095 = vunpack.c.h.b16 %v1373
    %v2096 = vunpack.c.l.b16 %v1374
    %v2097 = vunpack.c.h.b16 %v1374
    %v2098 = vunpack.c.l.b16 %v1375
    %v2099 = vunpack.c.h.b16 %v1375
    %v2100 = vunpack.c.l.b16 %v1376
    %v2101 = vunpack.c.h.b16 %v1376
    %v2102 = vunpack.c.l.b16 %v1377
    %v2103 = vunpack.c.h.b16 %v1377
    %v2104 = vunpack.c.l.b16 %v1378
    %v2105 = vunpack.c.h.b16 %v1378
    %v2106 = vunpack.c.l.b16 %v1379
    %v2107 = vunpack.c.h.b16 %v1379
    %v2108 = vunpack.c.l.b16 %v1380
    %v2109 = vunpack.c.h.b16 %v1380
    %v2110 = vunpack.c.l.b16 %v1381
    %v2111 = vunpack.c.h.b16 %v1381
    %v2112 = vunpack.c.l.b16 %v1382
    %v2113 = vunpack.c.h.b16 %v1382
    %v2114 = vunpack.c.l.b16 %v1383
    %v2115 = vunpack.c.h.b16 %v1383
    %v2116 = vunpack.c.l.b16 %v1384
    %v2117 = vunpack.c.h.b16 %v1384
    %v2118 = vunpack.c.l.b16 %v1385
    %v2119 = vunpack.c.h.b16 %v1385
    %v2120 = vunpack.c.l.b16 %v1386
    %v2121 = vunpack.c.h.b16 %v1386
    %v2122 = vunpack.c.l.b16 %v1387
    %v2123 = vunpack.c.h.b16 %v1387
    %v2124 = vunpack.c.l.b16 %v1388
    %v2125 = vunpack.c.h.b16 %v1388
    %v2126 = vunpack.c.l.b16 %v1389
    %v2127 = vunpack.c.h.b16 %v1389
    %v2128 = vunpack.c.l.b16 %v1390
    %v2129 = vunpack.c.h.b16 %v1390
    %v2130 = vunpack.c.l.b16 %v1391
    %v2131 = vunpack.c.h.b16 %v1391
    %v2132 = vunpack.c.l.b16 %v1392
    %v2133 = vunpack.c.h.b16 %v1392
    %v2134 = vunpack.c.l.b16 %v1393
    %v2135 = vunpack.c.h.b16 %v1393
    %v2136 = vunpack.c.l.b16 %v1394
    %v2137 = vunpack.c.h.b16 %v1394
    %v2138 = vunpack.c.l.b16 %v1395
    %v2139 = vunpack.c.h.b16 %v1395
    %v2140 = vunpack.c.l.b16 %v1396
    %v2141 = vunpack.c.h.b16 %v1396
    %v2142 = vunpack.c.l.b16 %v1397
    %v2143 = vunpack.c.h.b16 %v1397
    %v2144 = vunpack.c.l.b16 %v1398
    %v2145 = vunpack.c.h.b16 %v1398
    %v2146 = vunpack.c.l.b16 %v1399
    %v2147 = vunpack.c.h.b16 %v1399
    %v2148 = vunpack.c.l.b16 %v1400
    %v2149 = vunpack.c.h.b16 %v1400
    %v2150 = vunpack.c.l.b16 %v1401
    %v2151 = vunpack.c.h.b16 %v1401
    %v2152 = vunpack.c.l.b16 %v1402
    %v2153 = vunpack.c.h.b16 %v1402
    %v2154 = vunpack.c.l.b16 %v1403
    %v2155 = vunpack.c.h.b16 %v1403
    %v2156 = vunpack.c.l.b16 %v1404
    %v2157 = vunpack.c.h.b16 %v1404
    %v2158 = vunpack.c.l.b16 %v1405
    %v2159 = vunpack.c.h.b16 %v1405
    %v2160 = vunpack.c.l.b16 %v1406
    %v2161 = vunpack.c.h.b16 %v1406
    %v2162 = vunpack.c.l.b16 %v1407
    %v2163 = vunpack.c.h.b16 %v1407
    %v2164 = vunpack.c.l.b16 %v1408
    %v2165 = vunpack.c.h.b16 %v1408
    %v2166 = vunpack.c.l.b16 %v1409
    %v2167 = vunpack.c.h.b16 %v1409
    %v2168 = vunpack.c.l.b16 %v1410
    %v2169 = vunpack.c.h.b16 %v1410
    %v2170 = vunpack.c.l.b16 %v1411
    %v2171 = vunpack.c.h.b16 %v1411
    %v2172 = vunpack.c.l.b16 %v1412
    %v2173 = vunpack.c.h.b16 %v1412
    %v2174 = vunpack.c.l.b16 %v1413
    %v2175 = vunpack.c.h.b16 %v1413
    %v2176 = vunpack.c.l.b16 %v1414
    %v2177 = vunpack.c.h.b16 %v1414
    %v2178 = vunpack.c.l.b16 %v1415
    %v2179 = vunpack.c.h.b16 %v1415
    %v2180 = vunpack.c.l.b16 %v1416
    %v2181 = vunpack.c.h.b16 %v1416
    %v2182 = vunpack.c.l.b16 %v1417
    %v2183 = vunpack.c.h.b16 %v1417
    %v2184 = vunpack.c.l.b16 %v1418
    %v2185 = vunpack.c.h.b16 %v1418
    %v2186 = vunpack.c.l.b16 %v1419
    %v2187 = vunpack.c.h.b16 %v1419
    %v2188 = vpack.c.b16 %v1684, %v1676
    %v2189 = vpack.c.b16 %v1685, %v1677
    %v2190 = vpack.c.b16 %v1686, %v1678
    %v2191 = vpack.c.b16 %v1687, %v1679
    %v2192 = vpack.c.b16 %v1688, %v1680
    %v2193 = vpack.c.b16 %v1689, %v1681
    %v2194 = vpack.c.b16 %v1690, %v1682
    %v2195 = vpack.c.b16 %v1691, %v1683
    %v2196 = vpack.c.b16 %v1700, %v1692
    %v2197 = vpack.c.b16 %v1701, %v1693
    %v2198 = vpack.c.b16 %v1702, %v1694
    %v2199 = vpack.c.b16 %v1703, %v1695
    %v2200 = vpack.c.b16 %v1704, %v1696
    %v2201 = vpack.c.b16 %v1705, %v1697
    %v2202 = vpack.c.b16 %v1706, %v1698
    %v2203 = vpack.c.b16 %v1707, %v1699
    %v2204 = vpack.c.b16 %v1716, %v1708
    %v2205 = vpack.c.b16 %v1717, %v1709
    %v2206 = vpack.c.b16 %v1718, %v1710
    %v2207 = vpack.c.b16 %v1719, %v1711
    %v2208 = vpack.c.b16 %v1720, %v1712
    %v2209 = vpack.c.b16 %v1721, %v1713
    %v2210 = vpack.c.b16 %v1722, %v1714
    %v2211 = vpack.c.b16 %v1723, %v1715
    %v2212 = vpack.c.b16 %v1732, %v1724
    %v2213 = vpack.c.b16 %v1733, %v1725
    %v2214 = vpack.c.b16 %v1734, %v1726
    %v2215 = vpack.c.b16 %v1735, %v1727
    %v2216 = vpack.c.b16 %v1736, %v1728
    %v2217 = vpack.c.b16 %v1737, %v1729
    %v2218 = vpack.c.b16 %v1738, %v1730
    %v2219 = vpack.c.b16 %v1739, %v1731
    %v2220 = vpack.c.b16 %v1748, %v1740
    %v2221 = vpack.c.b16 %v1749, %v1741
    %v2222 = vpack.c.b16 %v1750, %v1742
    %v2223 = vpack.c.b16 %v1751, %v1743
    %v2224 = vpack.c.b16 %v1752, %v1744
    %v2225 = vpack.c.b16 %v1753, %v1745
    %v2226 = vpack.c.b16 %v1754, %v1746
    %v2227 = vpack.c.b16 %v1755, %v1747
    %v2228 = vpack.c.b16 %v1764, %v1756
    %v2229 = vpack.c.b16 %v1765, %v1757
    %v2230 = vpack.c.b16 %v1766, %v1758
    %v2231 = vpack.c.b16 %v1767, %v1759
    %v2232 = vpack.c.b16 %v1768, %v1760
    %v2233 = vpack.c.b16 %v1769, %v1761
    %v2234 = vpack.c.b16 %v1770, %v1762
    %v2235 = vpack.c.b16 %v1771, %v1763
    %v2236 = vpack.c.b16 %v1780, %v1772
    %v2237 = vpack.c.b16 %v1781, %v1773
    %v2238 = vpack.c.b16 %v1782, %v1774
    %v2239 = vpack.c.b16 %v1783, %v1775
    %v2240 = vpack.c.b16 %v1784, %v1776
    %v2241 = vpack.c.b16 %v1785, %v1777
    %v2242 = vpack.c.b16 %v1786, %v1778
    %v2243 = vpack.c.b16 %v1787, %v1779
    %v2244 = vpack.c.b16 %v1796, %v1788
    %v2245 = vpack.c.b16 %v1797, %v1789
    %v2246 = vpack.c.b16 %v1798, %v1790
    %v2247 = vpack.c.b16 %v1799, %v1791
    %v2248 = vpack.c.b16 %v1800, %v1792
    %v2249 = vpack.c.b16 %v1801, %v1793
    %v2250 = vpack.c.b16 %v1802, %v1794
    %v2251 = vpack.c.b16 %v1803, %v1795
    %v2252 = vpack.c.b16 %v1812, %v1804
    %v2253 = vpack.c.b16 %v1813, %v1805
    %v2254 = vpack.c.b16 %v1814, %v1806
    %v2255 = vpack.c.b16 %v1815, %v1807
    %v2256 = vpack.c.b16 %v1816, %v1808
    %v2257 = vpack.c.b16 %v1817, %v1809
    %v2258 = vpack.c.b16 %v1818, %v1810
    %v2259 = vpack.c.b16 %v1819, %v1811
    %v2260 = vpack.c.b16 %v1828, %v1820
    %v2261 = vpack.c.b16 %v1829, %v1821
    %v2262 = vpack.c.b16 %v1830, %v1822
    %v2263 = vpack.c.b16 %v1831, %v1823
    %v2264 = vpack.c.b16 %v1832, %v1824
    %v2265 = vpack.c.b16 %v1833, %v1825
    %v2266 = vpack.c.b16 %v1834, %v1826
    %v2267 = vpack.c.b16 %v1835, %v1827
    %v2268 = vpack.c.b16 %v1844, %v1836
    %v2269 = vpack.c.b16 %v1845, %v1837
    %v2270 = vpack.c.b16 %v1846, %v1838
    %v2271 = vpack.c.b16 %v1847, %v1839
    %v2272 = vpack.c.b16 %v1848, %v1840
    %v2273 = vpack.c.b16 %v1849, %v1841
    %v2274 = vpack.c.b16 %v1850, %v1842
    %v2275 = vpack.c.b16 %v1851, %v1843
    %v2276 = vpack.c.b16 %v1860, %v1852
    %v2277 = vpack.c.b16 %v1861, %v1853
    %v2278 = vpack.c.b16 %v1862, %v1854
    %v2279 = vpack.c.b16 %v1863, %v1855
    %v2280 = vpack.c.b16 %v1864, %v1856
    %v2281 = vpack.c.b16 %v1865, %v1857
    %v2282 = vpack.c.b16 %v1866, %v1858
    %v2283 = vpack.c.b16 %v1867, %v1859
    %v2284 = vpack.c.b16 %v1876, %v1868
    %v2285 = vpack.c.b16 %v1877, %v1869
    %v2286 = vpack.c.b16 %v1878, %v1870
    %v2287 = vpack.c.b16 %v1879, %v1871
    %v2288 = vpack.c.b16 %v1880, %v1872
    %v2289 = vpack.c.b16 %v1881, %v1873
    %v2290 = vpack.c.b16 %v1882, %v1874
    %v2291 = vpack.c.b16 %v1883, %v1875
    %v2292 = vpack.c.b16 %v1892, %v1884
    %v2293 = vpack.c.b16 %v1893, %v1885
    %v2294 = vpack.c.b16 %v1894, %v1886
    %v2295 = vpack.c.b16 %v1895, %v1887
    %v2296 = vpack.c.b16 %v1896, %v1888
    %v2297 = vpack.c.b16 %v1897, %v1889
    %v2298 = vpack.c.b16 %v1898, %v1890
    %v2299 = vpack.c.b16 %v1899, %v1891
    %v2300 = vpack.c.b16 %v1908, %v1900
    %v2301 = vpack.c.b16 %v1909, %v1901
    %v2302 = vpack.c.b16 %v1910, %v1902
    %v2303 = vpack.c.b16 %v1911, %v1903
    %v2304 = vpack.c.b16 %v1912, %v1904
    %v2305 = vpack.c.b16 %v1913, %v1905
    %v2306 = vpack.c.b16 %v1914, %v1906
    %v2307 = vpack.c.b16 %v1915, %v1907
    %v2308 = vpack.c.b16 %v1924, %v1916
    %v2309 = vpack.c.b16 %v1925, %v1917
    %v2310 = vpack.c.b16 %v1926, %v1918
    %v2311 = vpack.c.b16 %v1927, %v1919
    %v2312 = vpack.c.b16 %v1928, %v1920
    %v2313 = vpack.c.b16 %v1929, %v1921
    %v2314 = vpack.c.b16 %v1930, %v1922
    %v2315 = vpack.c.b16 %v1931, %v1923
    %v2316 = vpack.c.b16 %v1940, %v1932
    %v2317 = vpack.c.b16 %v1941, %v1933
    %v2318 = vpack.c.b16 %v1942, %v1934
    %v2319 = vpack.c.b16 %v1943, %v1935
    %v2320 = vpack.c.b16 %v1944, %v1936
    %v2321 = vpack.c.b16 %v1945, %v1937
    %v2322 = vpack.c.b16 %v1946, %v1938
    %v2323 = vpack.c.b16 %v1947, %v1939
    %v2324 = vpack.c.b16 %v1956, %v1948
    %v2325 = vpack.c.b16 %v1957, %v1949
    %v2326 = vpack.c.b16 %v1958, %v1950
    %v2327 = vpack.c.b16 %v1959, %v1951
    %v2328 = vpack.c.b16 %v1960, %v1952
    %v2329 = vpack.c.b16 %v1961, %v1953
    %v2330 = vpack.c.b16 %v1962, %v1954
    %v2331 = vpack.c.b16 %v1963, %v1955
    %v2332 = vpack.c.b16 %v1972, %v1964
    %v2333 = vpack.c.b16 %v1973, %v1965
    %v2334 = vpack.c.b16 %v1974, %v1966
    %v2335 = vpack.c.b16 %v1975, %v1967
    %v2336 = vpack.c.b16 %v1976, %v1968
    %v2337 = vpack.c.b16 %v1977, %v1969
    %v2338 = vpack.c.b16 %v1978, %v1970
    %v2339 = vpack.c.b16 %v1979, %v1971
    %v2340 = vpack.c.b16 %v1988, %v1980
    %v2341 = vpack.c.b16 %v1989, %v1981
    %v2342 = vpack.c.b16 %v1990, %v1982
    %v2343 = vpack.c.b16 %v1991, %v1983
    %v2344 = vpack.c.b16 %v1992, %v1984
    %v2345 = vpack.c.b16 %v1993, %v1985
    %v2346 = vpack.c.b16 %v1994, %v1986
    %v2347 = vpack.c.b16 %v1995, %v1987
    %v2348 = vpack.c.b16 %v2004, %v1996
    %v2349 = vpack.c.b16 %v2005, %v1997
    %v2350 = vpack.c.b16 %v2006, %v1998
    %v2351 = vpack.c.b16 %v2007, %v1999
    %v2352 = vpack.c.b16 %v2008, %v2000
    %v2353 = vpack.c.b16 %v2009, %v2001
    %v2354 = vpack.c.b16 %v2010, %v2002
    %v2355 = vpack.c.b16 %v2011, %v2003
    %v2356 = vpack.c.b16 %v2020, %v2012
    %v2357 = vpack.c.b16 %v2021, %v2013
    %v2358 = vpack.c.b16 %v2022, %v2014
    %v2359 = vpack.c.b16 %v2023, %v2015
    %v2360 = vpack.c.b16 %v2024, %v2016
    %v2361 = vpack.c.b16 %v2025, %v2017
    %v2362 = vpack.c.b16 %v2026, %v2018
    %v2363 = vpack.c.b16 %v2027, %v2019
    %v2364 = vpack.c.b16 %v2036, %v2028
    %v2365 = vpack.c.b16 %v2037, %v2029
    %v2366 = vpack.c.b16 %v2038, %v2030
    %v2367 = vpack.c.b16 %v2039, %v2031
    %v2368 = vpack.c.b16 %v2040, %v2032
    %v2369 = vpack.c.b16 %v2041, %v2033
    %v2370 = vpack.c.b16 %v2042, %v2034
    %v2371 = vpack.c.b16 %v2043, %v2035
    %v2372 = vpack.c.b16 %v2052, %v2044
    %v2373 = vpack.c.b16 %v2053, %v2045
    %v2374 = vpack.c.b16 %v2054, %v2046
    %v2375 = vpack.c.b16 %v2055, %v2047
    %v2376 = vpack.c.b16 %v2056, %v2048
    %v2377 = vpack.c.b16 %v2057, %v2049
    %v2378 = vpack.c.b16 %v2058, %v2050
    %v2379 = vpack.c.b16 %v2059, %v2051
    %v2380 = vpack.c.b16 %v2068, %v2060
    %v2381 = vpack.c.b16 %v2069, %v2061
    %v2382 = vpack.c.b16 %v2070, %v2062
    %v2383 = vpack.c.b16 %v2071, %v2063
    %v2384 = vpack.c.b16 %v2072, %v2064
    %v2385 = vpack.c.b16 %v2073, %v2065
    %v2386 = vpack.c.b16 %v2074, %v2066
    %v2387 = vpack.c.b16 %v2075, %v2067
    %v2388 = vpack.c.b16 %v2084, %v2076
    %v2389 = vpack.c.b16 %v2085, %v2077
    %v2390 = vpack.c.b16 %v2086, %v2078
    %v2391 = vpack.c.b16 %v2087, %v2079
    %v2392 = vpack.c.b16 %v2088, %v2080
    %v2393 = vpack.c.b16 %v2089, %v2081
    %v2394 = vpack.c.b16 %v2090, %v2082
    %v2395 = vpack.c.b16 %v2091, %v2083
    %v2396 = vpack.c.b16 %v2100, %v2092
    %v2397 = vpack.c.b16 %v2101, %v2093
    %v2398 = vpack.c.b16 %v2102, %v2094
    %v2399 = vpack.c.b16 %v2103, %v2095
    %v2400 = vpack.c.b16 %v2104, %v2096
    %v2401 = vpack.c.b16 %v2105, %v2097
    %v2402 = vpack.c.b16 %v2106, %v2098
    %v2403 = vpack.c.b16 %v2107, %v2099
    %v2404 = vpack.c.b16 %v2116, %v2108
    %v2405 = vpack.c.b16 %v2117, %v2109
    %v2406 = vpack.c.b16 %v2118, %v2110
    %v2407 = vpack.c.b16 %v2119, %v2111
    %v2408 = vpack.c.b16 %v2120, %v2112
    %v2409 = vpack.c.b16 %v2121, %v2113
    %v2410 = vpack.c.b16 %v2122, %v2114
    %v2411 = vpack.c.b16 %v2123, %v2115
    %v2412 = vpack.c.b16 %v2132, %v2124
    %v2413 = vpack.c.b16 %v2133, %v2125
    %v2414 = vpack.c.b16 %v2134, %v2126
    %v2415 = vpack.c.b16 %v2135, %v2127
    %v2416 = vpack.c.b16 %v2136, %v2128
    %v2417 = vpack.c.b16 %v2137, %v2129
    %v2418 = vpack.c.b16 %v2138, %v2130
    %v2419 = vpack.c.b16 %v2139, %v2131
    %v2420 = vpack.c.b16 %v2148, %v2140
    %v2421 = vpack.c.b16 %v2149, %v2141
    %v2422 = vpack.c.b16 %v2150, %v2142
    %v2423 = vpack.c.b16 %v2151, %v2143
    %v2424 = vpack.c.b16 %v2152, %v2144
    %v2425 = vpack.c.b16 %v2153, %v2145
    %v2426 = vpack.c.b16 %v2154, %v2146
    %v2427 = vpack.c.b16 %v2155, %v2147
    %v2428 = vpack.c.b16 %v2164, %v2156
    %v2429 = vpack.c.b16 %v2165, %v2157
    %v2430 = vpack.c.b16 %v2166, %v2158
    %v2431 = vpack.c.b16 %v2167, %v2159
    %v2432 = vpack.c.b16 %v2168, %v2160
    %v2433 = vpack.c.b16 %v2169, %v2161
    %v2434 = vpack.c.b16 %v2170, %v2162
    %v2435 = vpack.c.b16 %v2171, %v2163
    %v2436 = vpack.c.b16 %v2180, %v2172
    %v2437 = vpack.c.b16 %v2181, %v2173
    %v2438 = vpack.c.b16 %v2182, %v2174
    %v2439 = vpack.c.b16 %v2183, %v2175
    %v2440 = vpack.c.b16 %v2184, %v2176
    %v2441 = vpack.c.b16 %v2185, %v2177
    %v2442 = vpack.c.b16 %v2186, %v2178
    %v2443 = vpack.c.b16 %v2187, %v2179
    %2700 = vmatprep.subr.bf16.mxu0 %v2189
    %2701 = vmatpush1.bf16.msra.mxu0 %v2188
    %2702 = vmatprep.subr.bf16.mxu0 %v2197
    %2703 = vmatpush1.bf16.msra.mxu0 %v2196
    %2704 = vmatprep.subr.bf16.mxu0 %v2205
    %2705 = vmatpush1.bf16.msra.mxu0 %v2204
    %2706 = vmatprep.subr.bf16.mxu0 %v2213
    %2707 = vmatpush1.bf16.msra.mxu0 %v2212
    %2708 = vmatprep.subr.bf16.mxu0 %v2221
    %2709 = vmatpush1.bf16.msra.mxu0 %v2220
    %2710 = vmatprep.subr.bf16.mxu0 %v2229
    %2711 = vmatpush1.bf16.msra.mxu0 %v2228
    %2712 = vmatprep.subr.bf16.mxu0 %v2237
    %2713 = vmatpush1.bf16.msra.mxu0 %v2236
    %2714 = vmatprep.subr.bf16.mxu0 %v2245
    %2715 = vmatpush1.bf16.msra.mxu0 %v2244
    %2716 = vmatprep.subr.bf16.mxu0 %v2253
    %2717 = vmatpush1.bf16.msra.mxu0 %v2252
    %2718 = vmatprep.subr.bf16.mxu0 %v2261
    %2719 = vmatpush1.bf16.msra.mxu0 %v2260
    %2720 = vmatprep.subr.bf16.mxu0 %v2269
    %2721 = vmatpush1.bf16.msra.mxu0 %v2268
    %2722 = vmatprep.subr.bf16.mxu0 %v2277
    %2723 = vmatpush1.bf16.msra.mxu0 %v2276
    %2724 = vmatprep.subr.bf16.mxu0 %v2285
    %2725 = vmatpush1.bf16.msra.mxu0 %v2284
    %2726 = vmatprep.subr.bf16.mxu0 %v2293
    %2727 = vmatpush1.bf16.msra.mxu0 %v2292
    %2728 = vmatprep.subr.bf16.mxu0 %v2301
    %2729 = vmatpush1.bf16.msra.mxu0 %v2300
    %2730 = vmatprep.subr.bf16.mxu0 %v2309
    %2731 = vmatpush1.bf16.msra.mxu0 %v2308
    %2732 = vmatprep.mubr.bf16.mxu0 %v1161
    %2733 = vmatmul.mubr.bf16.gmra.mrb[0].mxu0 %v1160
    %v2734 = vpop.f32.mrb[0].mxu0
    %v2735 = vadd.f32 0.0, %v2734
    %v2736 = vpop.f32.mrb[0].mxu0
    %v2737 = vadd.f32 0.0, %v2736
    %v2738 = vpop.f32.mrb[0].mxu0
    %v2739 = vpop.f32.mrb[0].mxu0
    %2740 = vdwg.mxu0
    %2741 = vmatprep.subr.bf16.mxu0 %v2317
    %2742 = vmatpush1.bf16.msra.mxu0 %v2316
    %2743 = vmatprep.subr.bf16.mxu0 %v2325
    %2744 = vmatpush1.bf16.msra.mxu0 %v2324
    %2745 = vmatprep.subr.bf16.mxu0 %v2333
    %2746 = vmatpush1.bf16.msra.mxu0 %v2332
    %2747 = vmatprep.subr.bf16.mxu0 %v2341
    %2748 = vmatpush1.bf16.msra.mxu0 %v2340
    %2749 = vmatprep.subr.bf16.mxu0 %v2349
    %2750 = vmatpush1.bf16.msra.mxu0 %v2348
    %2751 = vmatprep.subr.bf16.mxu0 %v2357
    %2752 = vmatpush1.bf16.msra.mxu0 %v2356
    %2753 = vmatprep.subr.bf16.mxu0 %v2365
    %2754 = vmatpush1.bf16.msra.mxu0 %v2364
    %2755 = vmatprep.subr.bf16.mxu0 %v2373
    %2756 = vmatpush1.bf16.msra.mxu0 %v2372
    %2757 = vmatprep.subr.bf16.mxu0 %v2381
    %2758 = vmatpush1.bf16.msra.mxu0 %v2380
    %2759 = vmatprep.subr.bf16.mxu0 %v2389
    %2760 = vmatpush1.bf16.msra.mxu0 %v2388
    %2761 = vmatprep.subr.bf16.mxu0 %v2397
    %2762 = vmatpush1.bf16.msra.mxu0 %v2396
    %2763 = vmatprep.subr.bf16.mxu0 %v2405
    %2764 = vmatpush1.bf16.msra.mxu0 %v2404
    %2765 = vmatprep.subr.bf16.mxu0 %v2413
    %2766 = vmatpush1.bf16.msra.mxu0 %v2412
    %2767 = vmatprep.subr.bf16.mxu0 %v2421
    %2768 = vmatpush1.bf16.msra.mxu0 %v2420
    %2769 = vmatprep.subr.bf16.mxu0 %v2429
    %2770 = vmatpush1.bf16.msra.mxu0 %v2428
    %2771 = vmatprep.subr.bf16.mxu0 %v2437
    %2772 = vmatpush1.bf16.msra.mxu0 %v2436
    %2773 = vmatprep.mubr.bf16.mxu0 %v1163
    %2774 = vmatmul.mubr.bf16.gmra.mrb[0].mxu0 %v1162
    %v2775 = vpop.f32.mrb[0].mxu0
    %v2776 = vadd.f32 %v2735, %v2775
    %v2777 = vpop.f32.mrb[0].mxu0
    %v2778 = vadd.f32 %v2737, %v2777
    %v2779 = vpop.f32.mrb[0].mxu0
    %v2780 = vpop.f32.mrb[0].mxu0
    %2781 = vdwg.mxu0
    %2782 = vmatprep.subr.bf16.mxu0 %v2191
    %2783 = vmatpush1.bf16.msra.mxu0 %v2190
    %2784 = vmatprep.subr.bf16.mxu0 %v2199
    %2785 = vmatpush1.bf16.msra.mxu0 %v2198
    %2786 = vmatprep.subr.bf16.mxu0 %v2207
    %2787 = vmatpush1.bf16.msra.mxu0 %v2206
    %2788 = vmatprep.subr.bf16.mxu0 %v2215
    %2789 = vmatpush1.bf16.msra.mxu0 %v2214
    %2790 = vmatprep.subr.bf16.mxu0 %v2223
    %2791 = vmatpush1.bf16.msra.mxu0 %v2222
    %2792 = vmatprep.subr.bf16.mxu0 %v2231
    %2793 = vmatpush1.bf16.msra.mxu0 %v2230
    %2794 = vmatprep.subr.bf16.mxu0 %v2239
    %2795 = vmatpush1.bf16.msra.mxu0 %v2238
    %2796 = vmatprep.subr.bf16.mxu0 %v2247
    %2797 = vmatpush1.bf16.msra.mxu0 %v2246
    %2798 = vmatprep.subr.bf16.mxu0 %v2255
    %2799 = vmatpush1.bf16.msra.mxu0 %v2254
    %2800 = vmatprep.subr.bf16.mxu0 %v2263
    %2801 = vmatpush1.bf16.msra.mxu0 %v2262
    %2802 = vmatprep.subr.bf16.mxu0 %v2271
    %2803 = vmatpush1.bf16.msra.mxu0 %v2270
    %2804 = vmatprep.subr.bf16.mxu0 %v2279
    %2805 = vmatpush1.bf16.msra.mxu0 %v2278
    %2806 = vmatprep.subr.bf16.mxu0 %v2287
    %2807 = vmatpush1.bf16.msra.mxu0 %v2286
    %2808 = vmatprep.subr.bf16.mxu0 %v2295
    %2809 = vmatpush1.bf16.msra.mxu0 %v2294
    %2810 = vmatprep.subr.bf16.mxu0 %v2303
    %2811 = vmatpush1.bf16.msra.mxu0 %v2302
    %2812 = vmatprep.subr.bf16.mxu0 %v2311
    %2813 = vmatpush1.bf16.msra.mxu0 %v2310
    %2814 = vmatprep.mubr.bf16.mxu0 %v1161
    %2815 = vmatmul.mubr.bf16.gmra.mrb[0].mxu0 %v1160
    %v2816 = vpop.f32.mrb[0].mxu0
    %v2817 = vadd.f32 0.0, %v2816
    %v2818 = vpop.f32.mrb[0].mxu0
    %v2819 = vadd.f32 0.0, %v2818
    %v2820 = vpop.f32.mrb[0].mxu0
    %v2821 = vpop.f32.mrb[0].mxu0
    %2822 = vdwg.mxu0
    %2823 = vmatprep.subr.bf16.mxu0 %v2319
    %2824 = vmatpush1.bf16.msra.mxu0 %v2318
    %2825 = vmatprep.subr.bf16.mxu0 %v2327
    %2826 = vmatpush1.bf16.msra.mxu0 %v2326
    %2827 = vmatprep.subr.bf16.mxu0 %v2335
    %2828 = vmatpush1.bf16.msra.mxu0 %v2334
    %2829 = vmatprep.subr.bf16.mxu0 %v2343
    %2830 = vmatpush1.bf16.msra.mxu0 %v2342
    %2831 = vmatprep.subr.bf16.mxu0 %v2351
    %2832 = vmatpush1.bf16.msra.mxu0 %v2350
    %2833 = vmatprep.subr.bf16.mxu0 %v2359
    %2834 = vmatpush1.bf16.msra.mxu0 %v2358
    %2835 = vmatprep.subr.bf16.mxu0 %v2367
    %2836 = vmatpush1.bf16.msra.mxu0 %v2366
    %2837 = vmatprep.subr.bf16.mxu0 %v2375
    %2838 = vmatpush1.bf16.msra.mxu0 %v2374
    %2839 = vmatprep.subr.bf16.mxu0 %v2383
    %2840 = vmatpush1.bf16.msra.mxu0 %v2382
    %2841 = vmatprep.subr.bf16.mxu0 %v2391
    %2842 = vmatpush1.bf16.msra.mxu0 %v2390
    %2843 = vmatprep.subr.bf16.mxu0 %v2399
    %2844 = vmatpush1.bf16.msra.mxu0 %v2398
    %2845 = vmatprep.subr.bf16.mxu0 %v2407
    %2846 = vmatpush1.bf16.msra.mxu0 %v2406
    %2847 = vmatprep.subr.bf16.mxu0 %v2415
    %2848 = vmatpush1.bf16.msra.mxu0 %v2414
    %2849 = vmatprep.subr.bf16.mxu0 %v2423
    %2850 = vmatpush1.bf16.msra.mxu0 %v2422
    %2851 = vmatprep.subr.bf16.mxu0 %v2431
    %2852 = vmatpush1.bf16.msra.mxu0 %v2430
    %2853 = vmatprep.subr.bf16.mxu0 %v2439
    %2854 = vmatpush1.bf16.msra.mxu0 %v2438
    %2855 = vmatprep.mubr.bf16.mxu0 %v1163
    %2856 = vmatmul.mubr.bf16.gmra.mrb[0].mxu0 %v1162
    %v2857 = vpop.f32.mrb[0].mxu0
    %v2858 = vadd.f32 %v2817, %v2857
    %v2859 = vpop.f32.mrb[0].mxu0
    %v2860 = vadd.f32 %v2819, %v2859
    %v2861 = vpop.f32.mrb[0].mxu0
    %v2862 = vpop.f32.mrb[0].mxu0
    %2863 = vdwg.mxu0
    %2864 = vmatprep.subr.bf16.mxu0 %v2193
    %2865 = vmatpush1.bf16.msra.mxu0 %v2192
    %2866 = vmatprep.subr.bf16.mxu0 %v2201
    %2867 = vmatpush1.bf16.msra.mxu0 %v2200
    %2868 = vmatprep.subr.bf16.mxu0 %v2209
    %2869 = vmatpush1.bf16.msra.mxu0 %v2208
    %2870 = vmatprep.subr.bf16.mxu0 %v2217
    %2871 = vmatpush1.bf16.msra.mxu0 %v2216
    %2872 = vmatprep.subr.bf16.mxu0 %v2225
    %2873 = vmatpush1.bf16.msra.mxu0 %v2224
    %2874 = vmatprep.subr.bf16.mxu0 %v2233
    %2875 = vmatpush1.bf16.msra.mxu0 %v2232
    %2876 = vmatprep.subr.bf16.mxu0 %v2241
    %2877 = vmatpush1.bf16.msra.mxu0 %v2240
    %2878 = vmatprep.subr.bf16.mxu0 %v2249
    %2879 = vmatpush1.bf16.msra.mxu0 %v2248
    %2880 = vmatprep.subr.bf16.mxu0 %v2257
    %2881 = vmatpush1.bf16.msra.mxu0 %v2256
    %2882 = vmatprep.subr.bf16.mxu0 %v2265
    %2883 = vmatpush1.bf16.msra.mxu0 %v2264
    %2884 = vmatprep.subr.bf16.mxu0 %v2273
    %2885 = vmatpush1.bf16.msra.mxu0 %v2272
    %2886 = vmatprep.subr.bf16.mxu0 %v2281
    %2887 = vmatpush1.bf16.msra.mxu0 %v2280
    %2888 = vmatprep.subr.bf16.mxu0 %v2289
    %2889 = vmatpush1.bf16.msra.mxu0 %v2288
    %2890 = vmatprep.subr.bf16.mxu0 %v2297
    %2891 = vmatpush1.bf16.msra.mxu0 %v2296
    %2892 = vmatprep.subr.bf16.mxu0 %v2305
    %2893 = vmatpush1.bf16.msra.mxu0 %v2304
    %2894 = vmatprep.subr.bf16.mxu0 %v2313
    %2895 = vmatpush1.bf16.msra.mxu0 %v2312
    %2896 = vmatprep.mubr.bf16.mxu0 %v1161
    %2897 = vmatmul.mubr.bf16.gmra.mrb[0].mxu0 %v1160
    %v2898 = vpop.f32.mrb[0].mxu0
    %v2899 = vadd.f32 0.0, %v2898
    %v2900 = vpop.f32.mrb[0].mxu0
    %v2901 = vadd.f32 0.0, %v2900
    %v2902 = vpop.f32.mrb[0].mxu0
    %v2903 = vpop.f32.mrb[0].mxu0
    %2904 = vdwg.mxu0
    %2905 = vmatprep.subr.bf16.mxu0 %v2321
    %2906 = vmatpush1.bf16.msra.mxu0 %v2320
    %2907 = vmatprep.subr.bf16.mxu0 %v2329
    %2908 = vmatpush1.bf16.msra.mxu0 %v2328
    %2909 = vmatprep.subr.bf16.mxu0 %v2337
    %2910 = vmatpush1.bf16.msra.mxu0 %v2336
    %2911 = vmatprep.subr.bf16.mxu0 %v2345
    %2912 = vmatpush1.bf16.msra.mxu0 %v2344
    %2913 = vmatprep.subr.bf16.mxu0 %v2353
    %2914 = vmatpush1.bf16.msra.mxu0 %v2352
    %2915 = vmatprep.subr.bf16.mxu0 %v2361
    %2916 = vmatpush1.bf16.msra.mxu0 %v2360
    %2917 = vmatprep.subr.bf16.mxu0 %v2369
    %2918 = vmatpush1.bf16.msra.mxu0 %v2368
    %2919 = vmatprep.subr.bf16.mxu0 %v2377
    %2920 = vmatpush1.bf16.msra.mxu0 %v2376
    %2921 = vmatprep.subr.bf16.mxu0 %v2385
    %2922 = vmatpush1.bf16.msra.mxu0 %v2384
    %2923 = vmatprep.subr.bf16.mxu0 %v2393
    %2924 = vmatpush1.bf16.msra.mxu0 %v2392
    %2925 = vmatprep.subr.bf16.mxu0 %v2401
    %2926 = vmatpush1.bf16.msra.mxu0 %v2400
    %2927 = vmatprep.subr.bf16.mxu0 %v2409
    %2928 = vmatpush1.bf16.msra.mxu0 %v2408
    %2929 = vmatprep.subr.bf16.mxu0 %v2417
    %2930 = vmatpush1.bf16.msra.mxu0 %v2416
    %2931 = vmatprep.subr.bf16.mxu0 %v2425
    %2932 = vmatpush1.bf16.msra.mxu0 %v2424
    %2933 = vmatprep.subr.bf16.mxu0 %v2433
    %2934 = vmatpush1.bf16.msra.mxu0 %v2432
    %2935 = vmatprep.subr.bf16.mxu0 %v2441
    %2936 = vmatpush1.bf16.msra.mxu0 %v2440
    %2937 = vmatprep.mubr.bf16.mxu0 %v1163
    %2938 = vmatmul.mubr.bf16.gmra.mrb[0].mxu0 %v1162
    %v2939 = vpop.f32.mrb[0].mxu0
    %v2940 = vadd.f32 %v2899, %v2939
    %v2941 = vpop.f32.mrb[0].mxu0
    %v2942 = vadd.f32 %v2901, %v2941
    %v2943 = vpop.f32.mrb[0].mxu0
    %v2944 = vpop.f32.mrb[0].mxu0
    %2945 = vdwg.mxu0
    %2946 = vmatprep.subr.bf16.mxu0 %v2195
    %2947 = vmatpush1.bf16.msra.mxu0 %v2194
    %2948 = vmatprep.subr.bf16.mxu0 %v2203
    %2949 = vmatpush1.bf16.msra.mxu0 %v2202
    %2950 = vmatprep.subr.bf16.mxu0 %v2211
    %2951 = vmatpush1.bf16.msra.mxu0 %v2210
    %2952 = vmatprep.subr.bf16.mxu0 %v2219
    %2953 = vmatpush1.bf16.msra.mxu0 %v2218
    %2954 = vmatprep.subr.bf16.mxu0 %v2227
    %2955 = vmatpush1.bf16.msra.mxu0 %v2226
    %2956 = vmatprep.subr.bf16.mxu0 %v2235
    %2957 = vmatpush1.bf16.msra.mxu0 %v2234
    %2958 = vmatprep.subr.bf16.mxu0 %v2243
    %2959 = vmatpush1.bf16.msra.mxu0 %v2242
    %2960 = vmatprep.subr.bf16.mxu0 %v2251
    %2961 = vmatpush1.bf16.msra.mxu0 %v2250
    %2962 = vmatprep.subr.bf16.mxu0 %v2259
    %2963 = vmatpush1.bf16.msra.mxu0 %v2258
    %2964 = vmatprep.subr.bf16.mxu0 %v2267
    %2965 = vmatpush1.bf16.msra.mxu0 %v2266
    %2966 = vmatprep.subr.bf16.mxu0 %v2275
    %2967 = vmatpush1.bf16.msra.mxu0 %v2274
    %2968 = vmatprep.subr.bf16.mxu0 %v2283
    %2969 = vmatpush1.bf16.msra.mxu0 %v2282
    %2970 = vmatprep.subr.bf16.mxu0 %v2291
    %2971 = vmatpush1.bf16.msra.mxu0 %v2290
    %2972 = vmatprep.subr.bf16.mxu0 %v2299
    %2973 = vmatpush1.bf16.msra.mxu0 %v2298
    %2974 = vmatprep.subr.bf16.mxu0 %v2307
    %2975 = vmatpush1.bf16.msra.mxu0 %v2306
    %2976 = vmatprep.subr.bf16.mxu0 %v2315
    %2977 = vmatpush1.bf16.msra.mxu0 %v2314
    %2978 = vmatprep.mubr.bf16.mxu0 %v1161
    %2979 = vmatmul.mubr.bf16.gmra.mrb[0].mxu0 %v1160
    %v2980 = vpop.f32.mrb[0].mxu0
    %v2981 = vadd.f32 0.0, %v2980
    %v2982 = vpop.f32.mrb[0].mxu0
    %v2983 = vadd.f32 0.0, %v2982
    %v2984 = vpop.f32.mrb[0].mxu0
    %v2985 = vpop.f32.mrb[0].mxu0
    %2986 = vdwg.mxu0
    %2987 = vmatprep.subr.bf16.mxu0 %v2323
    %2988 = vmatpush1.bf16.msra.mxu0 %v2322
    %2989 = vmatprep.subr.bf16.mxu0 %v2331
    %2990 = vmatpush1.bf16.msra.mxu0 %v2330
    %2991 = vmatprep.subr.bf16.mxu0 %v2339
    %2992 = vmatpush1.bf16.msra.mxu0 %v2338
    %2993 = vmatprep.subr.bf16.mxu0 %v2347
    %2994 = vmatpush1.bf16.msra.mxu0 %v2346
    %2995 = vmatprep.subr.bf16.mxu0 %v2355
    %2996 = vmatpush1.bf16.msra.mxu0 %v2354
    %2997 = vmatprep.subr.bf16.mxu0 %v2363
    %2998 = vmatpush1.bf16.msra.mxu0 %v2362
    %2999 = vmatprep.subr.bf16.mxu0 %v2371
    %3000 = vmatpush1.bf16.msra.mxu0 %v2370
    %3001 = vmatprep.subr.bf16.mxu0 %v2379
    %3002 = vmatpush1.bf16.msra.mxu0 %v2378
    %3003 = vmatprep.subr.bf16.mxu0 %v2387
    %3004 = vmatpush1.bf16.msra.mxu0 %v2386
    %3005 = vmatprep.subr.bf16.mxu0 %v2395
    %3006 = vmatpush1.bf16.msra.mxu0 %v2394
    %3007 = vmatprep.subr.bf16.mxu0 %v2403
    %3008 = vmatpush1.bf16.msra.mxu0 %v2402
    %3009 = vmatprep.subr.bf16.mxu0 %v2411
    %3010 = vmatpush1.bf16.msra.mxu0 %v2410
    %3011 = vmatprep.subr.bf16.mxu0 %v2419
    %3012 = vmatpush1.bf16.msra.mxu0 %v2418
    %3013 = vmatprep.subr.bf16.mxu0 %v2427
    %3014 = vmatpush1.bf16.msra.mxu0 %v2426
    %3015 = vmatprep.subr.bf16.mxu0 %v2435
    %3016 = vmatpush1.bf16.msra.mxu0 %v2434
    %3017 = vmatprep.subr.bf16.mxu0 %v2443
    %3018 = vmatpush1.bf16.msra.mxu0 %v2442
    %3019 = vmatprep.mubr.bf16.mxu0 %v1163
    %3020 = vmatmul.mubr.bf16.gmra.mrb[0].mxu0 %v1162
    %v3021 = vpop.f32.mrb[0].mxu0
    %v3022 = vadd.f32 %v2981, %v3021
    %v3023 = vpop.f32.mrb[0].mxu0
    %v3024 = vadd.f32 %v2983, %v3023
    %v3025 = vpop.f32.mrb[0].mxu0
    %v3026 = vpop.f32.mrb[0].mxu0
    %3027 = vdwg.mxu0
    %v3028 = vld [vmem:[#allocation12] sm:$0xff]
    %v3029 = vld [vmem:[#allocation13] sm:$0xff]
    %v3030 = vrot.slane %v2776, 4
    %v3031 = vadd.f32 %v2776, %v3030
    %v3032 = vrot.slane %v3031, 2
    %v3033 = vadd.f32 %v3031, %v3032
    %v3034 = vrot.slane %v3033, 1
    %v3035 = vadd.f32 %v3033, %v3034
    %v3036 = vrot.slane %v2778, 4
    %v3037 = vadd.f32 %v2778, %v3036
    %v3038 = vrot.slane %v3037, 2
    %v3039 = vadd.f32 %v3037, %v3038
    %v3040 = vrot.slane %v3039, 1
    %v3041 = vadd.f32 %v3039, %v3040
    %v3042 = vrot.slane %v2858, 4
    %v3043 = vadd.f32 %v2858, %v3042
    %v3044 = vrot.slane %v3043, 2
    %v3045 = vadd.f32 %v3043, %v3044
    %v3046 = vrot.slane %v3045, 1
    %v3047 = vadd.f32 %v3045, %v3046
    %v3048 = vrot.slane %v2860, 4
    %v3049 = vadd.f32 %v2860, %v3048
    %v3050 = vrot.slane %v3049, 2
    %v3051 = vadd.f32 %v3049, %v3050
    %v3052 = vrot.slane %v3051, 1
    %v3053 = vadd.f32 %v3051, %v3052
    %v3054 = vrot.slane %v2940, 4
    %v3055 = vadd.f32 %v2940, %v3054
    %v3056 = vrot.slane %v3055, 2
    %v3057 = vadd.f32 %v3055, %v3056
    %v3058 = vrot.slane %v3057, 1
    %v3059 = vadd.f32 %v3057, %v3058
    %v3060 = vrot.slane %v2942, 4
    %v3061 = vadd.f32 %v2942, %v3060
    %v3062 = vrot.slane %v3061, 2
    %v3063 = vadd.f32 %v3061, %v3062
    %v3064 = vrot.slane %v3063, 1
    %v3065 = vadd.f32 %v3063, %v3064
    %v3066 = vrot.slane %v3022, 4
    %v3067 = vadd.f32 %v3022, %v3066
    %v3068 = vrot.slane %v3067, 2
    %v3069 = vadd.f32 %v3067, %v3068
    %v3070 = vrot.slane %v3069, 1
    %v3071 = vadd.f32 %v3069, %v3070
    %v3072 = vrot.slane %v3024, 4
    %v3073 = vadd.f32 %v3024, %v3072
    %v3074 = vrot.slane %v3073, 2
    %v3075 = vadd.f32 %v3073, %v3074
    %v3076 = vrot.slane %v3075, 1
    %v3077 = vadd.f32 %v3075, %v3076
    %v3078 = vmul.f32 %v3035, 0.125
    %v3079 = vmul.f32 %v3041, 0.125
    %v3080 = vmul.f32 %v3047, 0.125
    %v3081 = vmul.f32 %v3053, 0.125
    %v3082 = vmul.f32 %v3059, 0.125
    %v3083 = vmul.f32 %v3065, 0.125
    %v3084 = vmul.f32 %v3071, 0.125
    %v3085 = vmul.f32 %v3077, 0.125
    %v3086 = vmul.f32 %v2776, %v2776
    %v3087 = vmul.f32 %v2778, %v2778
    %v3088 = vmul.f32 %v2858, %v2858
    %v3089 = vmul.f32 %v2860, %v2860
    %v3090 = vmul.f32 %v2940, %v2940
    %v3091 = vmul.f32 %v2942, %v2942
    %v3092 = vmul.f32 %v3022, %v3022
    %v3093 = vmul.f32 %v3024, %v3024
    %v3094 = vrot.slane %v3086, 4
    %v3095 = vadd.f32 %v3086, %v3094
    %v3096 = vrot.slane %v3095, 2
    %v3097 = vadd.f32 %v3095, %v3096
    %v3098 = vrot.slane %v3097, 1
    %v3099 = vadd.f32 %v3097, %v3098
    %v3100 = vrot.slane %v3087, 4
    %v3101 = vadd.f32 %v3087, %v3100
    %v3102 = vrot.slane %v3101, 2
    %v3103 = vadd.f32 %v3101, %v3102
    %v3104 = vrot.slane %v3103, 1
    %v3105 = vadd.f32 %v3103, %v3104
    %v3106 = vrot.slane %v3088, 4
    %v3107 = vadd.f32 %v3088, %v3106
    %v3108 = vrot.slane %v3107, 2
    %v3109 = vadd.f32 %v3107, %v3108
    %v3110 = vrot.slane %v3109, 1
    %v3111 = vadd.f32 %v3109, %v3110
    %v3112 = vrot.slane %v3089, 4
    %v3113 = vadd.f32 %v3089, %v3112
    %v3114 = vrot.slane %v3113, 2
    %v3115 = vadd.f32 %v3113, %v3114
    %v3116 = vrot.slane %v3115, 1
    %v3117 = vadd.f32 %v3115, %v3116
    %v3118 = vrot.slane %v3090, 4
    %v3119 = vadd.f32 %v3090, %v3118
    %v3120 = vrot.slane %v3119, 2
    %v3121 = vadd.f32 %v3119, %v3120
    %v3122 = vrot.slane %v3121, 1
    %v3123 = vadd.f32 %v3121, %v3122
    %v3124 = vrot.slane %v3091, 4
    %v3125 = vadd.f32 %v3091, %v3124
    %v3126 = vrot.slane %v3125, 2
    %v3127 = vadd.f32 %v3125, %v3126
    %v3128 = vrot.slane %v3127, 1
    %v3129 = vadd.f32 %v3127, %v3128
    %v3130 = vrot.slane %v3092, 4
    %v3131 = vadd.f32 %v3092, %v3130
    %v3132 = vrot.slane %v3131, 2
    %v3133 = vadd.f32 %v3131, %v3132
    %v3134 = vrot.slane %v3133, 1
    %v3135 = vadd.f32 %v3133, %v3134
    %v3136 = vrot.slane %v3093, 4
    %v3137 = vadd.f32 %v3093, %v3136
    %v3138 = vrot.slane %v3137, 2
    %v3139 = vadd.f32 %v3137, %v3138
    %v3140 = vrot.slane %v3139, 1
    %v3141 = vadd.f32 %v3139, %v3140
    %v3142 = vmul.f32 %v3099, 0.125
    %v3143 = vmul.f32 %v3105, 0.125
    %v3144 = vmul.f32 %v3111, 0.125
    %v3145 = vmul.f32 %v3117, 0.125
    %v3146 = vmul.f32 %v3123, 0.125
    %v3147 = vmul.f32 %v3129, 0.125
    %v3148 = vmul.f32 %v3135, 0.125
    %v3149 = vmul.f32 %v3141, 0.125
    %v3150 = vmul.f32 %v3078, %v3078
    %v3151 = vmul.f32 %v3079, %v3079
    %v3152 = vmul.f32 %v3080, %v3080
    %v3153 = vmul.f32 %v3081, %v3081
    %v3154 = vmul.f32 %v3082, %v3082
    %v3155 = vmul.f32 %v3083, %v3083
    %v3156 = vmul.f32 %v3084, %v3084
    %v3157 = vmul.f32 %v3085, %v3085
    %v3158 = vsub.f32 %v3142, %v3150
    %v3159 = vsub.f32 %v3143, %v3151
    %v3160 = vsub.f32 %v3144, %v3152
    %v3161 = vsub.f32 %v3145, %v3153
    %v3162 = vsub.f32 %v3146, %v3154
    %v3163 = vsub.f32 %v3147, %v3155
    %v3164 = vsub.f32 %v3148, %v3156
    %v3165 = vsub.f32 %v3149, %v3157
    %v3166 = vadd.f32 %v3158, 0.8
    %v3167 = vadd.f32 %v3159, 0.8
    %v3168 = vadd.f32 %v3160, 0.8
    %v3169 = vadd.f32 %v3161, 0.8
    %v3170 = vadd.f32 %v3162, 0.8
    %v3171 = vadd.f32 %v3163, 0.8
    %v3172 = vadd.f32 %v3164, 0.8
    %v3173 = vadd.f32 %v3165, 0.8
    %v3174 = vrsqrt.pop %v3166
    %v3175 = vrsqrt.pop %v3167
    %v3176 = vrsqrt.pop %v3168
    %v3177 = vrsqrt.pop %v3169
    %v3178 = vrsqrt.pop %v3170
    %v3179 = vrsqrt.pop %v3171
    %v3180 = vrsqrt.pop %v3172
    %v3181 = vrsqrt.pop %v3173
    %v3190 = vcombine.low %v3174, %v3175
    %v3191 = vcombine.low %v3176, %v3177
    %v3192 = vcombine.low %v3178, %v3179
    %v3193 = vcombine.low %v3180, %v3181
    %v3195 = vunpack.c.l.s4 1966171168
    %v3196 = vunpack.c.0.s8 %v3195
    %v3197 = vlaneseq
    %v3198 = vshrl.u32 %v3197, 7
    %v3199 = vsub.s32 %v3196, %v3198
    %v3200 = vrot.slane %v3190, %v3199
    %v3202 = vunpack.c.l.s4 1966171168
    %v3203 = vunpack.c.0.s8 %v3202
    %v3204 = vlaneseq
    %v3205 = vshrl.u32 %v3204, 7
    %v3206 = vsub.s32 %v3203, %v3205
    %v3207 = vrot.slane %v3191, %v3206
    %v3209 = vunpack.c.l.s4 1966171168
    %v3210 = vunpack.c.0.s8 %v3209
    %v3211 = vlaneseq
    %v3212 = vshrl.u32 %v3211, 7
    %v3213 = vsub.s32 %v3210, %v3212
    %v3214 = vrot.slane %v3192, %v3213
    %v3216 = vunpack.c.l.s4 1966171168
    %v3217 = vunpack.c.0.s8 %v3216
    %v3218 = vlaneseq
    %v3219 = vshrl.u32 %v3218, 7
    %v3220 = vsub.s32 %v3217, %v3219
    %v3221 = vrot.slane %v3193, %v3220
    %v3222 = vcombine.low %v3200, %v3207
    %v3223 = vcombine.low %v3214, %v3221
    %v3225 = vunpack.c.l.s4 1966171168
    %v3226 = vunpack.c.0.s8 %v3225
    %v3227 = vlaneseq
    %v3228 = vshrl.u32 %v3227, 7
    %v3229 = vsub.s32 %v3226, %v3228
    %v3230 = vrot.slane %v3222, %v3229
    %v3232 = vunpack.c.l.s4 1966171168
    %v3233 = vunpack.c.0.s8 %v3232
    %v3234 = vlaneseq
    %v3235 = vshrl.u32 %v3234, 7
    %v3236 = vsub.s32 %v3233, %v3235
    %v3237 = vrot.slane %v3223, %v3236
    %v3238 = vcombine.low %v3230, %v3237
    %v3240 = vmul.f32 %v3028, %v3238
    %v3242 = vlaneseq
    %v3243 = vshrl.u32 %v3242, 7
    %v3244 = vsub.s32 0, %v3243
    %v3245 = vrot.slane %v3240, %v3244
    %v3246 = vlaneseq
    %v3247 = vshrl.u32 %v3246, 7
    %v3248 = vsub.s32 1, %v3247
    %v3249 = vrot.slane %v3240, %v3248
    %v3250 = vlaneseq
    %v3251 = vshrl.u32 %v3250, 7
    %v3252 = vsub.s32 2, %v3251
    %v3253 = vrot.slane %v3240, %v3252
    %v3254 = vlaneseq
    %v3255 = vshrl.u32 %v3254, 7
    %v3256 = vsub.s32 3, %v3255
    %v3257 = vrot.slane %v3240, %v3256
    %v3258 = vlaneseq
    %v3259 = vshrl.u32 %v3258, 7
    %v3260 = vsub.s32 4, %v3259
    %v3261 = vrot.slane %v3240, %v3260
    %v3262 = vlaneseq
    %v3263 = vshrl.u32 %v3262, 7
    %v3264 = vsub.s32 5, %v3263
    %v3265 = vrot.slane %v3240, %v3264
    %v3266 = vlaneseq
    %v3267 = vshrl.u32 %v3266, 7
    %v3268 = vsub.s32 6, %v3267
    %v3269 = vrot.slane %v3240, %v3268
    %v3270 = vlaneseq
    %v3271 = vshrl.u32 %v3270, 7
    %v3272 = vsub.s32 7, %v3271
    %v3273 = vrot.slane %v3240, %v3272
    %v3282 = vmul.f32 %v3078, %v3245
    %v3283 = vmul.f32 %v3079, %v3249
    %v3284 = vmul.f32 %v3080, %v3253
    %v3285 = vmul.f32 %v3081, %v3257
    %v3286 = vmul.f32 %v3082, %v3261
    %v3287 = vmul.f32 %v3083, %v3265
    %v3288 = vmul.f32 %v3084, %v3269
    %v3289 = vmul.f32 %v3085, %v3273
    %v3298 = vcombine.low %v3282, %v3283
    %v3299 = vcombine.low %v3284, %v3285
    %v3300 = vcombine.low %v3286, %v3287
    %v3301 = vcombine.low %v3288, %v3289
    %v3303 = vunpack.c.l.s4 1966171168
    %v3304 = vunpack.c.0.s8 %v3303
    %v3305 = vlaneseq
    %v3306 = vshrl.u32 %v3305, 7
    %v3307 = vsub.s32 %v3304, %v3306
    %v3308 = vrot.slane %v3298, %v3307
    %v3310 = vunpack.c.l.s4 1966171168
    %v3311 = vunpack.c.0.s8 %v3310
    %v3312 = vlaneseq
    %v3313 = vshrl.u32 %v3312, 7
    %v3314 = vsub.s32 %v3311, %v3313
    %v3315 = vrot.slane %v3299, %v3314
    %v3317 = vunpack.c.l.s4 1966171168
    %v3318 = vunpack.c.0.s8 %v3317
    %v3319 = vlaneseq
    %v3320 = vshrl.u32 %v3319, 7
    %v3321 = vsub.s32 %v3318, %v3320
    %v3322 = vrot.slane %v3300, %v3321
    %v3324 = vunpack.c.l.s4 1966171168
    %v3325 = vunpack.c.0.s8 %v3324
    %v3326 = vlaneseq
    %v3327 = vshrl.u32 %v3326, 7
    %v3328 = vsub.s32 %v3325, %v3327
    %v3329 = vrot.slane %v3301, %v3328
    %v3330 = vcombine.low %v3308, %v3315
    %v3331 = vcombine.low %v3322, %v3329
    %v3333 = vunpack.c.l.s4 1966171168
    %v3334 = vunpack.c.0.s8 %v3333
    %v3335 = vlaneseq
    %v3336 = vshrl.u32 %v3335, 7
    %v3337 = vsub.s32 %v3334, %v3336
    %v3338 = vrot.slane %v3330, %v3337
    %v3340 = vunpack.c.l.s4 1966171168
    %v3341 = vunpack.c.0.s8 %v3340
    %v3342 = vlaneseq
    %v3343 = vshrl.u32 %v3342, 7
    %v3344 = vsub.s32 %v3341, %v3343
    %v3345 = vrot.slane %v3331, %v3344
    %v3346 = vcombine.low %v3338, %v3345
    %v3348 = vsub.f32 %v3029, %v3346
    %v3349 = vmul.f32 %v2776, %v3245
    %v3350 = vmul.f32 %v2778, %v3249
    %v3351 = vmul.f32 %v2858, %v3253
    %v3352 = vmul.f32 %v2860, %v3257
    %v3353 = vmul.f32 %v2940, %v3261
    %v3354 = vmul.f32 %v2942, %v3265
    %v3355 = vmul.f32 %v3022, %v3269
    %v3356 = vmul.f32 %v3024, %v3273
    %v3358 = vlaneseq
    %v3359 = vshrl.u32 %v3358, 7
    %v3360 = vsub.s32 0, %v3359
    %v3361 = vrot.slane %v3348, %v3360
    %v3362 = vlaneseq
    %v3363 = vshrl.u32 %v3362, 7
    %v3364 = vsub.s32 1, %v3363
    %v3365 = vrot.slane %v3348, %v3364
    %v3366 = vlaneseq
    %v3367 = vshrl.u32 %v3366, 7
    %v3368 = vsub.s32 2, %v3367
    %v3369 = vrot.slane %v3348, %v3368
    %v3370 = vlaneseq
    %v3371 = vshrl.u32 %v3370, 7
    %v3372 = vsub.s32 3, %v3371
    %v3373 = vrot.slane %v3348, %v3372
    %v3374 = vlaneseq
    %v3375 = vshrl.u32 %v3374, 7
    %v3376 = vsub.s32 4, %v3375
    %v3377 = vrot.slane %v3348, %v3376
    %v3378 = vlaneseq
    %v3379 = vshrl.u32 %v3378, 7
    %v3380 = vsub.s32 5, %v3379
    %v3381 = vrot.slane %v3348, %v3380
    %v3382 = vlaneseq
    %v3383 = vshrl.u32 %v3382, 7
    %v3384 = vsub.s32 6, %v3383
    %v3385 = vrot.slane %v3348, %v3384
    %v3386 = vlaneseq
    %v3387 = vshrl.u32 %v3386, 7
    %v3388 = vsub.s32 7, %v3387
    %v3389 = vrot.slane %v3348, %v3388
    %v3398 = vadd.f32 %v3349, %v3361
    %v3399 = vadd.f32 %v3350, %v3365
    %v3400 = vadd.f32 %v3351, %v3369
    %v3401 = vadd.f32 %v3352, %v3373
    %v3402 = vadd.f32 %v3353, %v3377
    %v3403 = vadd.f32 %v3354, %v3381
    %v3404 = vadd.f32 %v3355, %v3385
    %v3405 = vadd.f32 %v3356, %v3389
    %vm3406 = vcmp.gt.f32.partialorder %v3398, 0.0
    %vm3407 = vcmp.gt.f32.partialorder %v3399, 0.0
    %vm3408 = vcmp.gt.f32.partialorder %v3400, 0.0
    %vm3409 = vcmp.gt.f32.partialorder %v3401, 0.0
    %vm3410 = vcmp.gt.f32.partialorder %v3402, 0.0
    %vm3411 = vcmp.gt.f32.partialorder %v3403, 0.0
    %vm3412 = vcmp.gt.f32.partialorder %v3404, 0.0
    %vm3413 = vcmp.gt.f32.partialorder %v3405, 0.0
    %v3414 = vmul.f32 %v3398, 0.2
    %v3415 = vmul.f32 %v3399, 0.2
    %v3416 = vmul.f32 %v3400, 0.2
    %v3417 = vmul.f32 %v3401, 0.2
    %v3418 = vmul.f32 %v3402, 0.2
    %v3419 = vmul.f32 %v3403, 0.2
    %v3420 = vmul.f32 %v3404, 0.2
    %v3421 = vmul.f32 %v3405, 0.2
    %v3422 = vsel %vm3406, %v3398, %v3414
    %v3423 = vsel %vm3407, %v3399, %v3415
    %v3424 = vsel %vm3408, %v3400, %v3416
    %v3425 = vsel %vm3409, %v3401, %v3417
    %v3426 = vsel %vm3410, %v3402, %v3418
    %v3427 = vsel %vm3411, %v3403, %v3419
    %v3428 = vsel %vm3412, %v3404, %v3420
    %v3429 = vsel %vm3413, %v3405, %v3421
    %v3430 = vpack.c.bf16 %v3422, %v3422
    %v3431 = vpack.c.bf16 %v3423, %v3423
    %v3432 = vpack.c.bf16 %v3424, %v3424
    %v3433 = vpack.c.bf16 %v3425, %v3425
    %v3434 = vpack.c.bf16 %v3426, %v3426
    %v3435 = vpack.c.bf16 %v3427, %v3427
    %v3436 = vpack.c.bf16 %v3428, %v3428
    %v3437 = vpack.c.bf16 %v3429, %v3429
    %v3438 = vld [vmem:[#allocation15] sm:$0xff]
    %v3439 = vld [vmem:[#allocation15 + $0x8] sm:$0xff]
    %v3440 = vld [vmem:[#allocation15 + $0x10] sm:$0xff]
    %v3441 = vld [vmem:[#allocation15 + $0x18] sm:$0xff]
    %v3442 = vld [vmem:[#allocation15 + $0x20] sm:$0xff]
    %v3443 = vld [vmem:[#allocation15 + $0x28] sm:$0xff]
    %v3444 = vld [vmem:[#allocation15 + $0x30] sm:$0xff]
    %v3445 = vld [vmem:[#allocation15 + $0x38] sm:$0xff]
    %v3446 = vld [vmem:[#allocation15 + $0x40] sm:$0xff]
    %v3447 = vld [vmem:[#allocation15 + $0x48] sm:$0xff]
    %v3448 = vld [vmem:[#allocation15 + $0x50] sm:$0xff]
    %v3449 = vld [vmem:[#allocation15 + $0x58] sm:$0xff]
    %v3450 = vld [vmem:[#allocation15 + $0x60] sm:$0xff]
    %v3451 = vld [vmem:[#allocation15 + $0x68] sm:$0xff]
    %v3452 = vld [vmem:[#allocation15 + $0x70] sm:$0xff]
    %v3453 = vld [vmem:[#allocation15 + $0x78] sm:$0xff]
    %v3454 = vld [vmem:[#allocation15 + $0x80] sm:$0xff]
    %v3455 = vld [vmem:[#allocation15 + $0x88] sm:$0xff]
    %v3456 = vld [vmem:[#allocation15 + $0x90] sm:$0xff]
    %v3457 = vld [vmem:[#allocation15 + $0x98] sm:$0xff]
    %v3458 = vld [vmem:[#allocation15 + $0xa0] sm:$0xff]
    %v3459 = vld [vmem:[#allocation15 + $0xa8] sm:$0xff]
    %v3460 = vld [vmem:[#allocation15 + $0xb0] sm:$0xff]
    %v3461 = vld [vmem:[#allocation15 + $0xb8] sm:$0xff]
    %v3462 = vld [vmem:[#allocation15 + $0xc0] sm:$0xff]
    %v3463 = vld [vmem:[#allocation15 + $0xc8] sm:$0xff]
    %v3464 = vld [vmem:[#allocation15 + $0xd0] sm:$0xff]
    %v3465 = vld [vmem:[#allocation15 + $0xd8] sm:$0xff]
    %v3466 = vld [vmem:[#allocation15 + $0xe0] sm:$0xff]
    %v3467 = vld [vmem:[#allocation15 + $0xe8] sm:$0xff]
    %v3468 = vld [vmem:[#allocation15 + $0xf0] sm:$0xff]
    %v3469 = vld [vmem:[#allocation15 + $0xf8] sm:$0xff]
    %v3470 = vld [vmem:[#allocation15 + $0x100] sm:$0xff]
    %v3471 = vld [vmem:[#allocation15 + $0x108] sm:$0xff]
    %v3472 = vld [vmem:[#allocation15 + $0x110] sm:$0xff]
    %v3473 = vld [vmem:[#allocation15 + $0x118] sm:$0xff]
    %v3474 = vld [vmem:[#allocation15 + $0x120] sm:$0xff]
    %v3475 = vld [vmem:[#allocation15 + $0x128] sm:$0xff]
    %v3476 = vld [vmem:[#allocation15 + $0x130] sm:$0xff]
    %v3477 = vld [vmem:[#allocation15 + $0x138] sm:$0xff]
    %v3478 = vld [vmem:[#allocation15 + $0x140] sm:$0xff]
    %v3479 = vld [vmem:[#allocation15 + $0x148] sm:$0xff]
    %v3480 = vld [vmem:[#allocation15 + $0x150] sm:$0xff]
    %v3481 = vld [vmem:[#allocation15 + $0x158] sm:$0xff]
    %v3482 = vld [vmem:[#allocation15 + $0x160] sm:$0xff]
    %v3483 = vld [vmem:[#allocation15 + $0x168] sm:$0xff]
    %v3484 = vld [vmem:[#allocation15 + $0x170] sm:$0xff]
    %v3485 = vld [vmem:[#allocation15 + $0x178] sm:$0xff]
    %v3486 = vld [vmem:[#allocation15 + $0x180] sm:$0xff]
    %v3487 = vld [vmem:[#allocation15 + $0x188] sm:$0xff]
    %v3488 = vld [vmem:[#allocation15 + $0x190] sm:$0xff]
    %v3489 = vld [vmem:[#allocation15 + $0x198] sm:$0xff]
    %v3490 = vld [vmem:[#allocation15 + $0x1a0] sm:$0xff]
    %v3491 = vld [vmem:[#allocation15 + $0x1a8] sm:$0xff]
    %v3492 = vld [vmem:[#allocation15 + $0x1b0] sm:$0xff]
    %v3493 = vld [vmem:[#allocation15 + $0x1b8] sm:$0xff]
    %v3494 = vld [vmem:[#allocation15 + $0x1c0] sm:$0xff]
    %v3495 = vld [vmem:[#allocation15 + $0x1c8] sm:$0xff]
    %v3496 = vld [vmem:[#allocation15 + $0x1d0] sm:$0xff]
    %v3497 = vld [vmem:[#allocation15 + $0x1d8] sm:$0xff]
    %v3498 = vld [vmem:[#allocation15 + $0x1e0] sm:$0xff]
    %v3499 = vld [vmem:[#allocation15 + $0x1e8] sm:$0xff]
    %v3500 = vld [vmem:[#allocation15 + $0x1f0] sm:$0xff]
    %v3501 = vld [vmem:[#allocation15 + $0x1f8] sm:$0xff]
    %v3502 = vld [vmem:[#allocation15 + $0x200] sm:$0xff]
    %v3503 = vld [vmem:[#allocation15 + $0x208] sm:$0xff]
    %v3504 = vld [vmem:[#allocation15 + $0x210] sm:$0xff]
    %v3505 = vld [vmem:[#allocation15 + $0x218] sm:$0xff]
    %v3506 = vld [vmem:[#allocation15 + $0x220] sm:$0xff]
    %v3507 = vld [vmem:[#allocation15 + $0x228] sm:$0xff]
    %v3508 = vld [vmem:[#allocation15 + $0x230] sm:$0xff]
    %v3509 = vld [vmem:[#allocation15 + $0x238] sm:$0xff]
    %v3510 = vld [vmem:[#allocation15 + $0x240] sm:$0xff]
    %v3511 = vld [vmem:[#allocation15 + $0x248] sm:$0xff]
    %v3512 = vld [vmem:[#allocation15 + $0x250] sm:$0xff]
    %v3513 = vld [vmem:[#allocation15 + $0x258] sm:$0xff]
    %v3514 = vld [vmem:[#allocation15 + $0x260] sm:$0xff]
    %v3515 = vld [vmem:[#allocation15 + $0x268] sm:$0xff]
    %v3516 = vld [vmem:[#allocation15 + $0x270] sm:$0xff]
    %v3517 = vld [vmem:[#allocation15 + $0x278] sm:$0xff]
    %v3518 = vld [vmem:[#allocation15 + $0x280] sm:$0xff]
    %v3519 = vld [vmem:[#allocation15 + $0x288] sm:$0xff]
    %v3520 = vld [vmem:[#allocation15 + $0x290] sm:$0xff]
    %v3521 = vld [vmem:[#allocation15 + $0x298] sm:$0xff]
    %v3522 = vld [vmem:[#allocation15 + $0x2a0] sm:$0xff]
    %v3523 = vld [vmem:[#allocation15 + $0x2a8] sm:$0xff]
    %v3524 = vld [vmem:[#allocation15 + $0x2b0] sm:$0xff]
    %v3525 = vld [vmem:[#allocation15 + $0x2b8] sm:$0xff]
    %v3526 = vld [vmem:[#allocation15 + $0x2c0] sm:$0xff]
    %v3527 = vld [vmem:[#allocation15 + $0x2c8] sm:$0xff]
    %v3528 = vld [vmem:[#allocation15 + $0x2d0] sm:$0xff]
    %v3529 = vld [vmem:[#allocation15 + $0x2d8] sm:$0xff]
    %v3530 = vld [vmem:[#allocation15 + $0x2e0] sm:$0xff]
    %v3531 = vld [vmem:[#allocation15 + $0x2e8] sm:$0xff]
    %v3532 = vld [vmem:[#allocation15 + $0x2f0] sm:$0xff]
    %v3533 = vld [vmem:[#allocation15 + $0x2f8] sm:$0xff]
    %v3534 = vld [vmem:[#allocation15 + $0x300] sm:$0xff]
    %v3535 = vld [vmem:[#allocation15 + $0x308] sm:$0xff]
    %v3536 = vld [vmem:[#allocation15 + $0x310] sm:$0xff]
    %v3537 = vld [vmem:[#allocation15 + $0x318] sm:$0xff]
    %v3538 = vld [vmem:[#allocation15 + $0x320] sm:$0xff]
    %v3539 = vld [vmem:[#allocation15 + $0x328] sm:$0xff]
    %v3540 = vld [vmem:[#allocation15 + $0x330] sm:$0xff]
    %v3541 = vld [vmem:[#allocation15 + $0x338] sm:$0xff]
    %v3542 = vld [vmem:[#allocation15 + $0x340] sm:$0xff]
    %v3543 = vld [vmem:[#allocation15 + $0x348] sm:$0xff]
    %v3544 = vld [vmem:[#allocation15 + $0x350] sm:$0xff]
    %v3545 = vld [vmem:[#allocation15 + $0x358] sm:$0xff]
    %v3546 = vld [vmem:[#allocation15 + $0x360] sm:$0xff]
    %v3547 = vld [vmem:[#allocation15 + $0x368] sm:$0xff]
    %v3548 = vld [vmem:[#allocation15 + $0x370] sm:$0xff]
    %v3549 = vld [vmem:[#allocation15 + $0x378] sm:$0xff]
    %v3550 = vld [vmem:[#allocation15 + $0x380] sm:$0xff]
    %v3551 = vld [vmem:[#allocation15 + $0x388] sm:$0xff]
    %v3552 = vld [vmem:[#allocation15 + $0x390] sm:$0xff]
    %v3553 = vld [vmem:[#allocation15 + $0x398] sm:$0xff]
    %v3554 = vld [vmem:[#allocation15 + $0x3a0] sm:$0xff]
    %v3555 = vld [vmem:[#allocation15 + $0x3a8] sm:$0xff]
    %v3556 = vld [vmem:[#allocation15 + $0x3b0] sm:$0xff]
    %v3557 = vld [vmem:[#allocation15 + $0x3b8] sm:$0xff]
    %v3558 = vld [vmem:[#allocation15 + $0x3c0] sm:$0xff]
    %v3559 = vld [vmem:[#allocation15 + $0x3c8] sm:$0xff]
    %v3560 = vld [vmem:[#allocation15 + $0x3d0] sm:$0xff]
    %v3561 = vld [vmem:[#allocation15 + $0x3d8] sm:$0xff]
    %v3562 = vld [vmem:[#allocation15 + $0x3e0] sm:$0xff]
    %v3563 = vld [vmem:[#allocation15 + $0x3e8] sm:$0xff]
    %v3564 = vld [vmem:[#allocation15 + $0x3f0] sm:$0xff]
    %v3565 = vld [vmem:[#allocation15 + $0x3f8] sm:$0xff]
    %v3566 = vld [vmem:[#allocation16] sm:$0x3]
    %v3568 = vlaneseq
    %v3569 = vshrl.u32 %v3568, 7
    %v3570 = vsub.s32 0, %v3569
    %v3571 = vrot.slane %v3566, %v3570
    %v3572 = vlaneseq
    %v3573 = vshrl.u32 %v3572, 7
    %v3574 = vsub.s32 1, %v3573
    %v3575 = vrot.slane %v3566, %v3574
    %v3706 = vunpack.c.l.b16 %v3438
    %v3707 = vunpack.c.h.b16 %v3438
    %v3708 = vunpack.c.l.b16 %v3439
    %v3709 = vunpack.c.h.b16 %v3439
    %v3710 = vunpack.c.l.b16 %v3440
    %v3711 = vunpack.c.h.b16 %v3440
    %v3712 = vunpack.c.l.b16 %v3441
    %v3713 = vunpack.c.h.b16 %v3441
    %v3714 = vunpack.c.l.b16 %v3442
    %v3715 = vunpack.c.h.b16 %v3442
    %v3716 = vunpack.c.l.b16 %v3443
    %v3717 = vunpack.c.h.b16 %v3443
    %v3718 = vunpack.c.l.b16 %v3444
    %v3719 = vunpack.c.h.b16 %v3444
    %v3720 = vunpack.c.l.b16 %v3445
    %v3721 = vunpack.c.h.b16 %v3445
    %v3722 = vunpack.c.l.b16 %v3446
    %v3723 = vunpack.c.h.b16 %v3446
    %v3724 = vunpack.c.l.b16 %v3447
    %v3725 = vunpack.c.h.b16 %v3447
    %v3726 = vunpack.c.l.b16 %v3448
    %v3727 = vunpack.c.h.b16 %v3448
    %v3728 = vunpack.c.l.b16 %v3449
    %v3729 = vunpack.c.h.b16 %v3449
    %v3730 = vunpack.c.l.b16 %v3450
    %v3731 = vunpack.c.h.b16 %v3450
    %v3732 = vunpack.c.l.b16 %v3451
    %v3733 = vunpack.c.h.b16 %v3451
    %v3734 = vunpack.c.l.b16 %v3452
    %v3735 = vunpack.c.h.b16 %v3452
    %v3736 = vunpack.c.l.b16 %v3453
    %v3737 = vunpack.c.h.b16 %v3453
    %v3738 = vunpack.c.l.b16 %v3454
    %v3739 = vunpack.c.h.b16 %v3454
    %v3740 = vunpack.c.l.b16 %v3455
    %v3741 = vunpack.c.h.b16 %v3455
    %v3742 = vunpack.c.l.b16 %v3456
    %v3743 = vunpack.c.h.b16 %v3456
    %v3744 = vunpack.c.l.b16 %v3457
    %v3745 = vunpack.c.h.b16 %v3457
    %v3746 = vunpack.c.l.b16 %v3458
    %v3747 = vunpack.c.h.b16 %v3458
    %v3748 = vunpack.c.l.b16 %v3459
    %v3749 = vunpack.c.h.b16 %v3459
    %v3750 = vunpack.c.l.b16 %v3460
    %v3751 = vunpack.c.h.b16 %v3460
    %v3752 = vunpack.c.l.b16 %v3461
    %v3753 = vunpack.c.h.b16 %v3461
    %v3754 = vunpack.c.l.b16 %v3462
    %v3755 = vunpack.c.h.b16 %v3462
    %v3756 = vunpack.c.l.b16 %v3463
    %v3757 = vunpack.c.h.b16 %v3463
    %v3758 = vunpack.c.l.b16 %v3464
    %v3759 = vunpack.c.h.b16 %v3464
    %v3760 = vunpack.c.l.b16 %v3465
    %v3761 = vunpack.c.h.b16 %v3465
    %v3762 = vunpack.c.l.b16 %v3466
    %v3763 = vunpack.c.h.b16 %v3466
    %v3764 = vunpack.c.l.b16 %v3467
    %v3765 = vunpack.c.h.b16 %v3467
    %v3766 = vunpack.c.l.b16 %v3468
    %v3767 = vunpack.c.h.b16 %v3468
    %v3768 = vunpack.c.l.b16 %v3469
    %v3769 = vunpack.c.h.b16 %v3469
    %v3770 = vunpack.c.l.b16 %v3470
    %v3771 = vunpack.c.h.b16 %v3470
    %v3772 = vunpack.c.l.b16 %v3471
    %v3773 = vunpack.c.h.b16 %v3471
    %v3774 = vunpack.c.l.b16 %v3472
    %v3775 = vunpack.c.h.b16 %v3472
    %v3776 = vunpack.c.l.b16 %v3473
    %v3777 = vunpack.c.h.b16 %v3473
    %v3778 = vunpack.c.l.b16 %v3474
    %v3779 = vunpack.c.h.b16 %v3474
    %v3780 = vunpack.c.l.b16 %v3475
    %v3781 = vunpack.c.h.b16 %v3475
    %v3782 = vunpack.c.l.b16 %v3476
    %v3783 = vunpack.c.h.b16 %v3476
    %v3784 = vunpack.c.l.b16 %v3477
    %v3785 = vunpack.c.h.b16 %v3477
    %v3786 = vunpack.c.l.b16 %v3478
    %v3787 = vunpack.c.h.b16 %v3478
    %v3788 = vunpack.c.l.b16 %v3479
    %v3789 = vunpack.c.h.b16 %v3479
    %v3790 = vunpack.c.l.b16 %v3480
    %v3791 = vunpack.c.h.b16 %v3480
    %v3792 = vunpack.c.l.b16 %v3481
    %v3793 = vunpack.c.h.b16 %v3481
    %v3794 = vunpack.c.l.b16 %v3482
    %v3795 = vunpack.c.h.b16 %v3482
    %v3796 = vunpack.c.l.b16 %v3483
    %v3797 = vunpack.c.h.b16 %v3483
    %v3798 = vunpack.c.l.b16 %v3484
    %v3799 = vunpack.c.h.b16 %v3484
    %v3800 = vunpack.c.l.b16 %v3485
    %v3801 = vunpack.c.h.b16 %v3485
    %v3802 = vunpack.c.l.b16 %v3486
    %v3803 = vunpack.c.h.b16 %v3486
    %v3804 = vunpack.c.l.b16 %v3487
    %v3805 = vunpack.c.h.b16 %v3487
    %v3806 = vunpack.c.l.b16 %v3488
    %v3807 = vunpack.c.h.b16 %v3488
    %v3808 = vunpack.c.l.b16 %v3489
    %v3809 = vunpack.c.h.b16 %v3489
    %v3810 = vunpack.c.l.b16 %v3490
    %v3811 = vunpack.c.h.b16 %v3490
    %v3812 = vunpack.c.l.b16 %v3491
    %v3813 = vunpack.c.h.b16 %v3491
    %v3814 = vunpack.c.l.b16 %v3492
    %v3815 = vunpack.c.h.b16 %v3492
    %v3816 = vunpack.c.l.b16 %v3493
    %v3817 = vunpack.c.h.b16 %v3493
    %v3818 = vunpack.c.l.b16 %v3494
    %v3819 = vunpack.c.h.b16 %v3494
    %v3820 = vunpack.c.l.b16 %v3495
    %v3821 = vunpack.c.h.b16 %v3495
    %v3822 = vunpack.c.l.b16 %v3496
    %v3823 = vunpack.c.h.b16 %v3496
    %v3824 = vunpack.c.l.b16 %v3497
    %v3825 = vunpack.c.h.b16 %v3497
    %v3826 = vunpack.c.l.b16 %v3498
    %v3827 = vunpack.c.h.b16 %v3498
    %v3828 = vunpack.c.l.b16 %v3499
    %v3829 = vunpack.c.h.b16 %v3499
    %v3830 = vunpack.c.l.b16 %v3500
    %v3831 = vunpack.c.h.b16 %v3500
    %v3832 = vunpack.c.l.b16 %v3501
    %v3833 = vunpack.c.h.b16 %v3501
    %v3834 = vunpack.c.l.b16 %v3502
    %v3835 = vunpack.c.h.b16 %v3502
    %v3836 = vunpack.c.l.b16 %v3503
    %v3837 = vunpack.c.h.b16 %v3503
    %v3838 = vunpack.c.l.b16 %v3504
    %v3839 = vunpack.c.h.b16 %v3504
    %v3840 = vunpack.c.l.b16 %v3505
    %v3841 = vunpack.c.h.b16 %v3505
    %v3842 = vunpack.c.l.b16 %v3506
    %v3843 = vunpack.c.h.b16 %v3506
    %v3844 = vunpack.c.l.b16 %v3507
    %v3845 = vunpack.c.h.b16 %v3507
    %v3846 = vunpack.c.l.b16 %v3508
    %v3847 = vunpack.c.h.b16 %v3508
    %v3848 = vunpack.c.l.b16 %v3509
    %v3849 = vunpack.c.h.b16 %v3509
    %v3850 = vunpack.c.l.b16 %v3510
    %v3851 = vunpack.c.h.b16 %v3510
    %v3852 = vunpack.c.l.b16 %v3511
    %v3853 = vunpack.c.h.b16 %v3511
    %v3854 = vunpack.c.l.b16 %v3512
    %v3855 = vunpack.c.h.b16 %v3512
    %v3856 = vunpack.c.l.b16 %v3513
    %v3857 = vunpack.c.h.b16 %v3513
    %v3858 = vunpack.c.l.b16 %v3514
    %v3859 = vunpack.c.h.b16 %v3514
    %v3860 = vunpack.c.l.b16 %v3515
    %v3861 = vunpack.c.h.b16 %v3515
    %v3862 = vunpack.c.l.b16 %v3516
    %v3863 = vunpack.c.h.b16 %v3516
    %v3864 = vunpack.c.l.b16 %v3517
    %v3865 = vunpack.c.h.b16 %v3517
    %v3866 = vunpack.c.l.b16 %v3518
    %v3867 = vunpack.c.h.b16 %v3518
    %v3868 = vunpack.c.l.b16 %v3519
    %v3869 = vunpack.c.h.b16 %v3519
    %v3870 = vunpack.c.l.b16 %v3520
    %v3871 = vunpack.c.h.b16 %v3520
    %v3872 = vunpack.c.l.b16 %v3521
    %v3873 = vunpack.c.h.b16 %v3521
    %v3874 = vunpack.c.l.b16 %v3522
    %v3875 = vunpack.c.h.b16 %v3522
    %v3876 = vunpack.c.l.b16 %v3523
    %v3877 = vunpack.c.h.b16 %v3523
    %v3878 = vunpack.c.l.b16 %v3524
    %v3879 = vunpack.c.h.b16 %v3524
    %v3880 = vunpack.c.l.b16 %v3525
    %v3881 = vunpack.c.h.b16 %v3525
    %v3882 = vunpack.c.l.b16 %v3526
    %v3883 = vunpack.c.h.b16 %v3526
    %v3884 = vunpack.c.l.b16 %v3527
    %v3885 = vunpack.c.h.b16 %v3527
    %v3886 = vunpack.c.l.b16 %v3528
    %v3887 = vunpack.c.h.b16 %v3528
    %v3888 = vunpack.c.l.b16 %v3529
    %v3889 = vunpack.c.h.b16 %v3529
    %v3890 = vunpack.c.l.b16 %v3530
    %v3891 = vunpack.c.h.b16 %v3530
    %v3892 = vunpack.c.l.b16 %v3531
    %v3893 = vunpack.c.h.b16 %v3531
    %v3894 = vunpack.c.l.b16 %v3532
    %v3895 = vunpack.c.h.b16 %v3532
    %v3896 = vunpack.c.l.b16 %v3533
    %v3897 = vunpack.c.h.b16 %v3533
    %v3898 = vunpack.c.l.b16 %v3534
    %v3899 = vunpack.c.h.b16 %v3534
    %v3900 = vunpack.c.l.b16 %v3535
    %v3901 = vunpack.c.h.b16 %v3535
    %v3902 = vunpack.c.l.b16 %v3536
    %v3903 = vunpack.c.h.b16 %v3536
    %v3904 = vunpack.c.l.b16 %v3537
    %v3905 = vunpack.c.h.b16 %v3537
    %v3906 = vunpack.c.l.b16 %v3538
    %v3907 = vunpack.c.h.b16 %v3538
    %v3908 = vunpack.c.l.b16 %v3539
    %v3909 = vunpack.c.h.b16 %v3539
    %v3910 = vunpack.c.l.b16 %v3540
    %v3911 = vunpack.c.h.b16 %v3540
    %v3912 = vunpack.c.l.b16 %v3541
    %v3913 = vunpack.c.h.b16 %v3541
    %v3914 = vunpack.c.l.b16 %v3542
    %v3915 = vunpack.c.h.b16 %v3542
    %v3916 = vunpack.c.l.b16 %v3543
    %v3917 = vunpack.c.h.b16 %v3543
    %v3918 = vunpack.c.l.b16 %v3544
    %v3919 = vunpack.c.h.b16 %v3544
    %v3920 = vunpack.c.l.b16 %v3545
    %v3921 = vunpack.c.h.b16 %v3545
    %v3922 = vunpack.c.l.b16 %v3546
    %v3923 = vunpack.c.h.b16 %v3546
    %v3924 = vunpack.c.l.b16 %v3547
    %v3925 = vunpack.c.h.b16 %v3547
    %v3926 = vunpack.c.l.b16 %v3548
    %v3927 = vunpack.c.h.b16 %v3548
    %v3928 = vunpack.c.l.b16 %v3549
    %v3929 = vunpack.c.h.b16 %v3549
    %v3930 = vunpack.c.l.b16 %v3550
    %v3931 = vunpack.c.h.b16 %v3550
    %v3932 = vunpack.c.l.b16 %v3551
    %v3933 = vunpack.c.h.b16 %v3551
    %v3934 = vunpack.c.l.b16 %v3552
    %v3935 = vunpack.c.h.b16 %v3552
    %v3936 = vunpack.c.l.b16 %v3553
    %v3937 = vunpack.c.h.b16 %v3553
    %v3938 = vunpack.c.l.b16 %v3554
    %v3939 = vunpack.c.h.b16 %v3554
    %v3940 = vunpack.c.l.b16 %v3555
    %v3941 = vunpack.c.h.b16 %v3555
    %v3942 = vunpack.c.l.b16 %v3556
    %v3943 = vunpack.c.h.b16 %v3556
    %v3944 = vunpack.c.l.b16 %v3557
    %v3945 = vunpack.c.h.b16 %v3557
    %v3946 = vunpack.c.l.b16 %v3558
    %v3947 = vunpack.c.h.b16 %v3558
    %v3948 = vunpack.c.l.b16 %v3559
    %v3949 = vunpack.c.h.b16 %v3559
    %v3950 = vunpack.c.l.b16 %v3560
    %v3951 = vunpack.c.h.b16 %v3560
    %v3952 = vunpack.c.l.b16 %v3561
    %v3953 = vunpack.c.h.b16 %v3561
    %v3954 = vunpack.c.l.b16 %v3562
    %v3955 = vunpack.c.h.b16 %v3562
    %v3956 = vunpack.c.l.b16 %v3563
    %v3957 = vunpack.c.h.b16 %v3563
    %v3958 = vunpack.c.l.b16 %v3564
    %v3959 = vunpack.c.h.b16 %v3564
    %v3960 = vunpack.c.l.b16 %v3565
    %v3961 = vunpack.c.h.b16 %v3565
    %v3962 = vpack.c.b16 %v3708, %v3706
    %v3963 = vpack.c.b16 %v3709, %v3707
    %v3964 = vpack.c.b16 %v3712, %v3710
    %v3965 = vpack.c.b16 %v3713, %v3711
    %v3966 = vpack.c.b16 %v3716, %v3714
    %v3967 = vpack.c.b16 %v3717, %v3715
    %v3968 = vpack.c.b16 %v3720, %v3718
    %v3969 = vpack.c.b16 %v3721, %v3719
    %v3970 = vpack.c.b16 %v3724, %v3722
    %v3971 = vpack.c.b16 %v3725, %v3723
    %v3972 = vpack.c.b16 %v3728, %v3726
    %v3973 = vpack.c.b16 %v3729, %v3727
    %v3974 = vpack.c.b16 %v3732, %v3730
    %v3975 = vpack.c.b16 %v3733, %v3731
    %v3976 = vpack.c.b16 %v3736, %v3734
    %v3977 = vpack.c.b16 %v3737, %v3735
    %v3978 = vpack.c.b16 %v3740, %v3738
    %v3979 = vpack.c.b16 %v3741, %v3739
    %v3980 = vpack.c.b16 %v3744, %v3742
    %v3981 = vpack.c.b16 %v3745, %v3743
    %v3982 = vpack.c.b16 %v3748, %v3746
    %v3983 = vpack.c.b16 %v3749, %v3747
    %v3984 = vpack.c.b16 %v3752, %v3750
    %v3985 = vpack.c.b16 %v3753, %v3751
    %v3986 = vpack.c.b16 %v3756, %v3754
    %v3987 = vpack.c.b16 %v3757, %v3755
    %v3988 = vpack.c.b16 %v3760, %v3758
    %v3989 = vpack.c.b16 %v3761, %v3759
    %v3990 = vpack.c.b16 %v3764, %v3762
    %v3991 = vpack.c.b16 %v3765, %v3763
    %v3992 = vpack.c.b16 %v3768, %v3766
    %v3993 = vpack.c.b16 %v3769, %v3767
    %v3994 = vpack.c.b16 %v3772, %v3770
    %v3995 = vpack.c.b16 %v3773, %v3771
    %v3996 = vpack.c.b16 %v3776, %v3774
    %v3997 = vpack.c.b16 %v3777, %v3775
    %v3998 = vpack.c.b16 %v3780, %v3778
    %v3999 = vpack.c.b16 %v3781, %v3779
    %v4000 = vpack.c.b16 %v3784, %v3782
    %v4001 = vpack.c.b16 %v3785, %v3783
    %v4002 = vpack.c.b16 %v3788, %v3786
    %v4003 = vpack.c.b16 %v3789, %v3787
    %v4004 = vpack.c.b16 %v3792, %v3790
    %v4005 = vpack.c.b16 %v3793, %v3791
    %v4006 = vpack.c.b16 %v3796, %v3794
    %v4007 = vpack.c.b16 %v3797, %v3795
    %v4008 = vpack.c.b16 %v3800, %v3798
    %v4009 = vpack.c.b16 %v3801, %v3799
    %v4010 = vpack.c.b16 %v3804, %v3802
    %v4011 = vpack.c.b16 %v3805, %v3803
    %v4012 = vpack.c.b16 %v3808, %v3806
    %v4013 = vpack.c.b16 %v3809, %v3807
    %v4014 = vpack.c.b16 %v3812, %v3810
    %v4015 = vpack.c.b16 %v3813, %v3811
    %v4016 = vpack.c.b16 %v3816, %v3814
    %v4017 = vpack.c.b16 %v3817, %v3815
    %v4018 = vpack.c.b16 %v3820, %v3818
    %v4019 = vpack.c.b16 %v3821, %v3819
    %v4020 = vpack.c.b16 %v3824, %v3822
    %v4021 = vpack.c.b16 %v3825, %v3823
    %v4022 = vpack.c.b16 %v3828, %v3826
    %v4023 = vpack.c.b16 %v3829, %v3827
    %v4024 = vpack.c.b16 %v3832, %v3830
    %v4025 = vpack.c.b16 %v3833, %v3831
    %v4026 = vpack.c.b16 %v3836, %v3834
    %v4027 = vpack.c.b16 %v3837, %v3835
    %v4028 = vpack.c.b16 %v3840, %v3838
    %v4029 = vpack.c.b16 %v3841, %v3839
    %v4030 = vpack.c.b16 %v3844, %v3842
    %v4031 = vpack.c.b16 %v3845, %v3843
    %v4032 = vpack.c.b16 %v3848, %v3846
    %v4033 = vpack.c.b16 %v3849, %v3847
    %v4034 = vpack.c.b16 %v3852, %v3850
    %v4035 = vpack.c.b16 %v3853, %v3851
    %v4036 = vpack.c.b16 %v3856, %v3854
    %v4037 = vpack.c.b16 %v3857, %v3855
    %v4038 = vpack.c.b16 %v3860, %v3858
    %v4039 = vpack.c.b16 %v3861, %v3859
    %v4040 = vpack.c.b16 %v3864, %v3862
    %v4041 = vpack.c.b16 %v3865, %v3863
    %v4042 = vpack.c.b16 %v3868, %v3866
    %v4043 = vpack.c.b16 %v3869, %v3867
    %v4044 = vpack.c.b16 %v3872, %v3870
    %v4045 = vpack.c.b16 %v3873, %v3871
    %v4046 = vpack.c.b16 %v3876, %v3874
    %v4047 = vpack.c.b16 %v3877, %v3875
    %v4048 = vpack.c.b16 %v3880, %v3878
    %v4049 = vpack.c.b16 %v3881, %v3879
    %v4050 = vpack.c.b16 %v3884, %v3882
    %v4051 = vpack.c.b16 %v3885, %v3883
    %v4052 = vpack.c.b16 %v3888, %v3886
    %v4053 = vpack.c.b16 %v3889, %v3887
    %v4054 = vpack.c.b16 %v3892, %v3890
    %v4055 = vpack.c.b16 %v3893, %v3891
    %v4056 = vpack.c.b16 %v3896, %v3894
    %v4057 = vpack.c.b16 %v3897, %v3895
    %v4058 = vpack.c.b16 %v3900, %v3898
    %v4059 = vpack.c.b16 %v3901, %v3899
    %v4060 = vpack.c.b16 %v3904, %v3902
    %v4061 = vpack.c.b16 %v3905, %v3903
    %v4062 = vpack.c.b16 %v3908, %v3906
    %v4063 = vpack.c.b16 %v3909, %v3907
    %v4064 = vpack.c.b16 %v3912, %v3910
    %v4065 = vpack.c.b16 %v3913, %v3911
    %v4066 = vpack.c.b16 %v3916, %v3914
    %v4067 = vpack.c.b16 %v3917, %v3915
    %v4068 = vpack.c.b16 %v3920, %v3918
    %v4069 = vpack.c.b16 %v3921, %v3919
    %v4070 = vpack.c.b16 %v3924, %v3922
    %v4071 = vpack.c.b16 %v3925, %v3923
    %v4072 = vpack.c.b16 %v3928, %v3926
    %v4073 = vpack.c.b16 %v3929, %v3927
    %v4074 = vpack.c.b16 %v3932, %v3930
    %v4075 = vpack.c.b16 %v3933, %v3931
    %v4076 = vpack.c.b16 %v3936, %v3934
    %v4077 = vpack.c.b16 %v3937, %v3935
    %v4078 = vpack.c.b16 %v3940, %v3938
    %v4079 = vpack.c.b16 %v3941, %v3939
    %v4080 = vpack.c.b16 %v3944, %v3942
    %v4081 = vpack.c.b16 %v3945, %v3943
    %v4082 = vpack.c.b16 %v3948, %v3946
    %v4083 = vpack.c.b16 %v3949, %v3947
    %v4084 = vpack.c.b16 %v3952, %v3950
    %v4085 = vpack.c.b16 %v3953, %v3951
    %v4086 = vpack.c.b16 %v3956, %v3954
    %v4087 = vpack.c.b16 %v3957, %v3955
    %v4088 = vpack.c.b16 %v3960, %v3958
    %v4089 = vpack.c.b16 %v3961, %v3959
    %4218 = vmatprep.subr.bf16.mxu0 %v3963
    %4219 = vmatpush1.bf16.msra.mxu0 %v3962
    %4220 = vmatprep.subr.bf16.mxu0 %v3965
    %4221 = vmatpush1.bf16.msra.mxu0 %v3964
    %4222 = vmatprep.subr.bf16.mxu0 %v3967
    %4223 = vmatpush1.bf16.msra.mxu0 %v3966
    %4224 = vmatprep.subr.bf16.mxu0 %v3969
    %4225 = vmatpush1.bf16.msra.mxu0 %v3968
    %4226 = vmatprep.subr.bf16.mxu0 %v3971
    %4227 = vmatpush1.bf16.msra.mxu0 %v3970
    %4228 = vmatprep.subr.bf16.mxu0 %v3973
    %4229 = vmatpush1.bf16.msra.mxu0 %v3972
    %4230 = vmatprep.subr.bf16.mxu0 %v3975
    %4231 = vmatpush1.bf16.msra.mxu0 %v3974
    %4232 = vmatprep.subr.bf16.mxu0 %v3977
    %4233 = vmatpush1.bf16.msra.mxu0 %v3976
    %4234 = vmatprep.subr.bf16.mxu0 %v3979
    %4235 = vmatpush1.bf16.msra.mxu0 %v3978
    %4236 = vmatprep.subr.bf16.mxu0 %v3981
    %4237 = vmatpush1.bf16.msra.mxu0 %v3980
    %4238 = vmatprep.subr.bf16.mxu0 %v3983
    %4239 = vmatpush1.bf16.msra.mxu0 %v3982
    %4240 = vmatprep.subr.bf16.mxu0 %v3985
    %4241 = vmatpush1.bf16.msra.mxu0 %v3984
    %4242 = vmatprep.subr.bf16.mxu0 %v3987
    %4243 = vmatpush1.bf16.msra.mxu0 %v3986
    %4244 = vmatprep.subr.bf16.mxu0 %v3989
    %4245 = vmatpush1.bf16.msra.mxu0 %v3988
    %4246 = vmatprep.subr.bf16.mxu0 %v3991
    %4247 = vmatpush1.bf16.msra.mxu0 %v3990
    %4248 = vmatprep.subr.bf16.mxu0 %v3993
    %4249 = vmatpush1.bf16.msra.mxu0 %v3992
    %4250 = vmatprep.mubr.bf16.mxu0 %v3431
    %4251 = vmatmul.mubr.bf16.gmra.mrb[0].mxu0 %v3430
    %v4252 = vpop.f32.mrb[0].mxu0
    %v4253 = vadd.f32 %v3571, %v4252
    %v4254 = vpop.f32.mrb[0].mxu0
    %v4255 = vadd.f32 %v3575, %v4254
    %v4256 = vpop.f32.mrb[0].mxu0
    %v4257 = vpop.f32.mrb[0].mxu0
    %4258 = vdwg.mxu0
    %4259 = vmatprep.subr.bf16.mxu0 %v3995
    %4260 = vmatpush1.bf16.msra.mxu0 %v3994
    %4261 = vmatprep.subr.bf16.mxu0 %v3997
    %4262 = vmatpush1.bf16.msra.mxu0 %v3996
    %4263 = vmatprep.subr.bf16.mxu0 %v3999
    %4264 = vmatpush1.bf16.msra.mxu0 %v3998
    %4265 = vmatprep.subr.bf16.mxu0 %v4001
    %4266 = vmatpush1.bf16.msra.mxu0 %v4000
    %4267 = vmatprep.subr.bf16.mxu0 %v4003
    %4268 = vmatpush1.bf16.msra.mxu0 %v4002
    %4269 = vmatprep.subr.bf16.mxu0 %v4005
    %4270 = vmatpush1.bf16.msra.mxu0 %v4004
    %4271 = vmatprep.subr.bf16.mxu0 %v4007
    %4272 = vmatpush1.bf16.msra.mxu0 %v4006
    %4273 = vmatprep.subr.bf16.mxu0 %v4009
    %4274 = vmatpush1.bf16.msra.mxu0 %v4008
    %4275 = vmatprep.subr.bf16.mxu0 %v4011
    %4276 = vmatpush1.bf16.msra.mxu0 %v4010
    %4277 = vmatprep.subr.bf16.mxu0 %v4013
    %4278 = vmatpush1.bf16.msra.mxu0 %v4012
    %4279 = vmatprep.subr.bf16.mxu0 %v4015
    %4280 = vmatpush1.bf16.msra.mxu0 %v4014
    %4281 = vmatprep.subr.bf16.mxu0 %v4017
    %4282 = vmatpush1.bf16.msra.mxu0 %v4016
    %4283 = vmatprep.subr.bf16.mxu0 %v4019
    %4284 = vmatpush1.bf16.msra.mxu0 %v4018
    %4285 = vmatprep.subr.bf16.mxu0 %v4021
    %4286 = vmatpush1.bf16.msra.mxu0 %v4020
    %4287 = vmatprep.subr.bf16.mxu0 %v4023
    %4288 = vmatpush1.bf16.msra.mxu0 %v4022
    %4289 = vmatprep.subr.bf16.mxu0 %v4025
    %4290 = vmatpush1.bf16.msra.mxu0 %v4024
    %4291 = vmatprep.mubr.bf16.mxu0 %v3433
    %4292 = vmatmul.mubr.bf16.gmra.mrb[0].mxu0 %v3432
    %v4293 = vpop.f32.mrb[0].mxu0
    %v4294 = vadd.f32 %v4253, %v4293
    %v4295 = vpop.f32.mrb[0].mxu0
    %v4296 = vadd.f32 %v4255, %v4295
    %v4297 = vpop.f32.mrb[0].mxu0
    %v4298 = vpop.f32.mrb[0].mxu0
    %4299 = vdwg.mxu0
    %4300 = vmatprep.subr.bf16.mxu0 %v4027
    %4301 = vmatpush1.bf16.msra.mxu0 %v4026
    %4302 = vmatprep.subr.bf16.mxu0 %v4029
    %4303 = vmatpush1.bf16.msra.mxu0 %v4028
    %4304 = vmatprep.subr.bf16.mxu0 %v4031
    %4305 = vmatpush1.bf16.msra.mxu0 %v4030
    %4306 = vmatprep.subr.bf16.mxu0 %v4033
    %4307 = vmatpush1.bf16.msra.mxu0 %v4032
    %4308 = vmatprep.subr.bf16.mxu0 %v4035
    %4309 = vmatpush1.bf16.msra.mxu0 %v4034
    %4310 = vmatprep.subr.bf16.mxu0 %v4037
    %4311 = vmatpush1.bf16.msra.mxu0 %v4036
    %4312 = vmatprep.subr.bf16.mxu0 %v4039
    %4313 = vmatpush1.bf16.msra.mxu0 %v4038
    %4314 = vmatprep.subr.bf16.mxu0 %v4041
    %4315 = vmatpush1.bf16.msra.mxu0 %v4040
    %4316 = vmatprep.subr.bf16.mxu0 %v4043
    %4317 = vmatpush1.bf16.msra.mxu0 %v4042
    %4318 = vmatprep.subr.bf16.mxu0 %v4045
    %4319 = vmatpush1.bf16.msra.mxu0 %v4044
    %4320 = vmatprep.subr.bf16.mxu0 %v4047
    %4321 = vmatpush1.bf16.msra.mxu0 %v4046
    %4322 = vmatprep.subr.bf16.mxu0 %v4049
    %4323 = vmatpush1.bf16.msra.mxu0 %v4048
    %4324 = vmatprep.subr.bf16.mxu0 %v4051
    %4325 = vmatpush1.bf16.msra.mxu0 %v4050
    %4326 = vmatprep.subr.bf16.mxu0 %v4053
    %4327 = vmatpush1.bf16.msra.mxu0 %v4052
    %4328 = vmatprep.subr.bf16.mxu0 %v4055
    %4329 = vmatpush1.bf16.msra.mxu0 %v4054
    %4330 = vmatprep.subr.bf16.mxu0 %v4057
    %4331 = vmatpush1.bf16.msra.mxu0 %v4056
    %4332 = vmatprep.mubr.bf16.mxu0 %v3435
    %4333 = vmatmul.mubr.bf16.gmra.mrb[0].mxu0 %v3434
    %v4334 = vpop.f32.mrb[0].mxu0
    %v4335 = vadd.f32 %v4294, %v4334
    %v4336 = vpop.f32.mrb[0].mxu0
    %v4337 = vadd.f32 %v4296, %v4336
    %v4338 = vpop.f32.mrb[0].mxu0
    %v4339 = vpop.f32.mrb[0].mxu0
    %4340 = vdwg.mxu0
    %4341 = vmatprep.subr.bf16.mxu0 %v4059
    %4342 = vmatpush1.bf16.msra.mxu0 %v4058
    %4343 = vmatprep.subr.bf16.mxu0 %v4061
    %4344 = vmatpush1.bf16.msra.mxu0 %v4060
    %4345 = vmatprep.subr.bf16.mxu0 %v4063
    %4346 = vmatpush1.bf16.msra.mxu0 %v4062
    %4347 = vmatprep.subr.bf16.mxu0 %v4065
    %4348 = vmatpush1.bf16.msra.mxu0 %v4064
    %4349 = vmatprep.subr.bf16.mxu0 %v4067
    %4350 = vmatpush1.bf16.msra.mxu0 %v4066
    %4351 = vmatprep.subr.bf16.mxu0 %v4069
    %4352 = vmatpush1.bf16.msra.mxu0 %v4068
    %4353 = vmatprep.subr.bf16.mxu0 %v4071
    %4354 = vmatpush1.bf16.msra.mxu0 %v4070
    %4355 = vmatprep.subr.bf16.mxu0 %v4073
    %4356 = vmatpush1.bf16.msra.mxu0 %v4072
    %4357 = vmatprep.subr.bf16.mxu0 %v4075
    %4358 = vmatpush1.bf16.msra.mxu0 %v4074
    %4359 = vmatprep.subr.bf16.mxu0 %v4077
    %4360 = vmatpush1.bf16.msra.mxu0 %v4076
    %4361 = vmatprep.subr.bf16.mxu0 %v4079
    %4362 = vmatpush1.bf16.msra.mxu0 %v4078
    %4363 = vmatprep.subr.bf16.mxu0 %v4081
    %4364 = vmatpush1.bf16.msra.mxu0 %v4080
    %4365 = vmatprep.subr.bf16.mxu0 %v4083
    %4366 = vmatpush1.bf16.msra.mxu0 %v4082
    %4367 = vmatprep.subr.bf16.mxu0 %v4085
    %4368 = vmatpush1.bf16.msra.mxu0 %v4084
    %4369 = vmatprep.subr.bf16.mxu0 %v4087
    %4370 = vmatpush1.bf16.msra.mxu0 %v4086
    %4371 = vmatprep.subr.bf16.mxu0 %v4089
    %4372 = vmatpush1.bf16.msra.mxu0 %v4088
    %4373 = vmatprep.mubr.bf16.mxu0 %v3437
    %4374 = vmatmul.mubr.bf16.gmra.mrb[0].mxu0 %v3436
    %v4375 = vpop.f32.mrb[0].mxu0
    %v4376 = vadd.f32 %v4335, %v4375
    %v4377 = vpop.f32.mrb[0].mxu0
    %v4378 = vadd.f32 %v4337, %v4377
    %v4379 = vpop.f32.mrb[0].mxu0
    %v4380 = vpop.f32.mrb[0].mxu0
    %4381 = vdwg.mxu0
    %v4382 = vtanh.pop %v4376
    %v4383 = vtanh.pop %v4378
    %4384 = vst [vmem:[%s14] sm:$0xff] %v4382
    %4385 = vst [vmem:[%s14 + $0x8] sm:$0xff] %v4383
    // Predicated region
    $region98: #{generator_forward.1} parent=1 // pred_check
      _
    $region99: #{generator_forward.1} parent=1 // pred_check_branch
      %4387 = sbr.rel (0) target = $region101
    $region100: #{generator_forward.1} parent=1 // pred_region
      _
    $region101: #{generator_forward.1} parent=1 // pred_fallthru
      _
    // Predicated region
    $region102: #{generator_forward.1} parent=1 // pred_check
      _
    $region103: #{generator_forward.1} parent=1 // pred_check_branch
      %4389 = sbr.rel (0) target = $region105
    $region104: #{generator_forward.1} parent=1 // pred_region
      _
    $region105: #{generator_forward.1} parent=1 // pred_fallthru
      _
    %4390 = vsyncpa [#allocation3], 1
    %4391 = vsyncpa [#allocation5], 1
    %4392 = vsyncpa [#allocation8], 1
    %4393 = vsyncpa [#allocation11], 1
    %4394 = vsyncpa [#allocation14], 1
    %4395 = vsyncpa [#allocation17], 1

</llo_original>
